<compile_context>
chip_gen: v7x
topology: tpu7x:2x2x1
jax: 0.10.0
libtpu: 0.0.40
codegen_flags: <defaults>
</compile_context>

<pallas_src>
import functools

import jax
import jax.numpy as jnp
from jax.experimental import pallas as pl
from jax.experimental.pallas import tpu as pltpu


def _round_up(x, m):
    return ((x + m - 1) // m) * m


# ----------------------------------------------------------------------------
# Fused Pallas kernel (one batch tile per grid step)
# ----------------------------------------------------------------------------
def _lstm_classifier_kernel(
    x_ref,       # (1, T*Bt, E)   time-major embedded inputs for this batch tile (compute dtype)
    wih0_ref,    # (E,   8Hp)     layer-0 input->gates  [i_f i_b | f_f f_b | g_f g_b | o_f o_b]
    whh0_ref,    # (2Hp, 8Hp)     layer-0 hidden->gates, block-diagonal (fwd rows / bwd rows)
    b0_ref,      # (1,   8Hp)     f32 (i/f/o columns pre-halved for the tanh-sigmoid fold)
    wih1_ref,    # (2Hp, 8Hp)     layer-1 input->gates (single matmul, no zero-padded halves)
    whh1_ref,    # (2Hp, 8Hp)
    b1_ref,      # (1,   8Hp)     f32
    fcw_ref,     # (2Hp, OP)      FC weight, output lanes padded to OP (multiple of 128)
    fcb_ref,     # (1,   OP)      f32
    out_ref,     # (Bt,  OP)      f32 logits (lane-dense store)
    comb_ref,    # scratch (T*Bt, 2Hp): row t = [layer0 out_fwd(t) | layer0 out_bwd(t)]
    *, seq_len, batch_tile, hidden_p,
):
    T, Bt, Hp = seq_len, batch_tile, hidden_p
    H2, G = 2 * Hp, 8 * Hp
    cdt = x_ref.dtype  # MXU operand dtype (bf16 or f32)

    # ---- hoisted per-lane constants ----
    colB = jax.lax.broadcasted_iota(jnp.int32, (Bt, G), 1)
    is_fwd = colB < Hp
    for q in range(1, 4):
        lo = 2 * q * Hp
        is_fwd = is_fwd | ((colB >= lo) & (colB < lo + Hp))
    col1 = jax.lax.broadcasted_iota(jnp.int32, (1, G), 1)
    is_g = (col1 >= 4 * Hp) & (col1 < 6 * Hp)
    # sigmoid(z) = 0.5 + 0.5*tanh(z/2); the /2 is folded into packed i/f/o weights+bias, so the
    # cell only needs one tanh over the full vreg plus this affine fixup.
    scl = jnp.where(is_g, 1.0, 0.5).astype(jnp.float32)    # (1, G)
    off = jnp.where(is_g, 0.0, 0.5).astype(jnp.float32)    # (1, G)

    rows = [slice(t * Bt, (t + 1) * Bt) for t in range(T)]

    def cell(gx, h, c, whh):
        gates = gx + jnp.dot(h.astype(cdt), whh, preferred_element_type=jnp.float32)  # (Bt, 8Hp)
        act = off + scl * jnp.tanh(gates)                  # single EUP pass; whole-vreg slices
        i_g = act[:, 0 * H2:1 * H2]
        f_g = act[:, 1 * H2:2 * H2]
        g_g = act[:, 2 * H2:3 * H2]
        o_g = act[:, 3 * H2:4 * H2]
        c_new = f_g * c + i_g * g_g
        h_new = o_g * jnp.tanh(c_new)
        return h_new, c_new

    # ---- layer 0: one hoisted input-projection matmul + hoisted fwd/bwd row select ----
    gx0 = (jnp.dot(x_ref[0], wih0_ref[...], preferred_element_type=jnp.float32)
           + b0_ref[...])                                  # (T*Bt, 8Hp), f32
    gsel0 = [jnp.where(is_fwd, gx0[rows[s]], gx0[rows[T - 1 - s]]) for s in range(T)]

    whh0 = whh0_ref[...]
    h = jnp.zeros((Bt, H2), jnp.float32)
    c = jnp.zeros((Bt, H2), jnp.float32)
    # TODO(synk): for long sequences switch this full unroll to lax.fori_loop(..., unroll=2..4).
    for s in range(T):
        h, c = cell(gsel0[s], h, c, whh0)
        hc = h.astype(comb_ref.dtype)
        comb_ref[rows[s], 0:Hp] = hc[:, 0:Hp]              # fwd output belongs to time s
        comb_ref[rows[T - 1 - s], Hp:H2] = hc[:, Hp:H2]    # bwd output belongs to time T-1-s
    # Inter-layer dropout (p=0.5): identity in eval mode.

    # ---- layer 1: single hoisted projection of the [fwd|bwd] layer-0 outputs ----
    gx1 = (jnp.dot(comb_ref[...], wih1_ref[...], preferred_element_type=jnp.float32)
           + b1_ref[...])                                  # (T*Bt, 8Hp), f32
    gsel1 = [jnp.where(is_fwd, gx1[rows[s]], gx1[rows[T - 1 - s]]) for s in range(T)]

    whh1 = whh1_ref[...]
    h = jnp.zeros((Bt, H2), jnp.float32)
    c = jnp.zeros((Bt, H2), jnp.float32)
    for s in range(T):
        h, c = cell(gsel1[s], h, c, whh1)

    # ---- FC head (final dropout is identity in eval mode); h == cat(hidden[-2], hidden[-1]) ----
    out_ref[...] = (jnp.dot(h.astype(cdt), fcw_ref[...], preferred_element_type=jnp.float32)
                    + fcb_ref[...])


# ----------------------------------------------------------------------------
# Wrapper
# ----------------------------------------------------------------------------
def lstm_classifier_forward(tokens, embedding, packed, *, batch_tile=8):
    """tokens: (B, T) int32 -> logits (B, output_dim) float32."""
    B, T = tokens.shape
    E = embedding.shape[1]
    Hp = packed["whh0"].shape[0] // 2
    OP = packed["fc_w"].shape[1]
    O = packed["output_dim"]
    cdt = packed["wih0"].dtype

    bt = batch_tile
    nb = -(-B // bt)
    B_pad = nb * bt

    tokens_p = jnp.pad(tokens, ((0, B_pad - B), (0, 0)))   # pad rows use padding_idx=0
    # TODO(synk): at production vocab/seq sizes, fuse this gather into the kernel via
    # PrefetchScalarGridSpec + per-row DMA to avoid materializing the (B, T, E) sequence in HBM.
    x = jnp.take(embedding, tokens_p, axis=0).astype(cdt)  # (B_pad, T, E)
    # Arrange so each batch tile is a contiguous (T*bt, E) slab, time-major within the tile.
    x = x.reshape(nb, bt, T, E).transpose(0, 2, 1, 3).reshape(nb, T * bt, E)

    kernel = functools.partial(_lstm_classifier_kernel,
                               seq_len=T, batch_tile=bt, hidden_p=Hp)

    def resident(a):  # full-array block, constant index map -> stays VMEM-resident
        return pl.BlockSpec(a.shape, lambda i, _nd=a.ndim: (0,) * _nd)

    out = pl.pallas_call(
        kernel,
        out_shape=jax.ShapeDtypeStruct((B_pad, OP), jnp.float32),
        grid=(nb,),
        in_specs=[
            pl.BlockSpec((1, T * bt, E), lambda i: (i, 0, 0)),
            resident(packed["wih0"]), resident(packed["whh0"]), resident(packed["b0"]),
            resident(packed["wih1"]), resident(packed["whh1"]), resident(packed["b1"]),
            resident(packed["fc_w"]), resident(packed["fc_b"]),
        ],
        out_specs=pl.BlockSpec((bt, OP), lambda i: (i, 0)),
        scratch_shapes=[pltpu.VMEM((T * bt, 2 * Hp), cdt)],
        compiler_params=pltpu.CompilerParams(
            dimension_semantics=("parallel",),
            vmem_limit_bytes=64 * 1024 * 1024),
    )(x, packed["wih0"], packed["whh0"], packed["b0"],
      packed["wih1"], packed["whh1"], packed["b1"],
      packed["fc_w"], packed["fc_b"])
    return out[:B, :O]


# ----------------------------------------------------------------------------
# Parameter init (torch-like per-direction shapes)
# ----------------------------------------------------------------------------
def init_params(key, vocab_size, embed_dim, hidden_dim, output_dim):
    keys = iter(jax.random.split(key, 32))
    H = hidden_dim
    k = 1.0 / jnp.sqrt(jnp.float32(H))

    def u(shape, scale):
        return jax.random.uniform(next(keys), shape, jnp.float32, -scale, scale)

    emb = jax.random.normal(next(keys), (vocab_size, embed_dim), jnp.float32)
    emb = emb.at[0].set(0.0)  # padding_idx=0

    def lstm_dir(in_dim):
        # torch stores (4H, in)/(4H, H); kept transposed for x @ W layout, gate order i|f|g|o.
        w_ih = u((in_dim, 4 * H), k)
        w_hh = u((H, 4 * H), k)
        b = u((1, 4 * H), k) + u((1, 4 * H), k)  # b_ih + b_hh
        return (w_ih, w_hh, b)

    kf = 1.0 / jnp.sqrt(jnp.float32(H * 2))
    return {
        "embedding": emb,
        "l0_fwd": lstm_dir(embed_dim),
        "l0_bwd": lstm_dir(embed_dim),
        "l1_fwd": lstm_dir(H * 2),
        "l1_bwd": lstm_dir(H * 2),
        "fc_w": u((H * 2, output_dim), kf),
        "fc_b": u((1, output_dim), kf),
    }


# ----------------------------------------------------------------------------
# Packing: pad hidden to a multiple of 64, fuse fwd/bwd, fold sigmoid-as-tanh /2 into weights
# ----------------------------------------------------------------------------
def pack_params(raw, hidden_dim, compute_dtype=jnp.bfloat16):
    H = hidden_dim
    Hp = _round_up(H, 64)
    G = 8 * Hp
    O = raw["fc_w"].shape[1]
    OP = _round_up(O, 128)

    def pad_gate_cols(w):                       # (R, 4H) -> (R, 4Hp)
        out = jnp.zeros((w.shape[0], 4 * Hp), jnp.float32)
        for q in range(4):
            out = out.at[:, q * Hp:q * Hp + H].set(w[:, q * H:(q + 1) * H])
        return out

    def pad_hidden_rows(w):                     # (H, C) -> (Hp, C)
        return jnp.zeros((Hp, w.shape[1]), jnp.float32).at[:H].set(w)

    def pad_cat_rows(w):                        # (2H, C) -> (2Hp, C): [0:H] and [Hp:Hp+H]
        out = jnp.zeros((2 * Hp, w.shape[1]), jnp.float32)
        out = out.at[:H].set(w[:H])
        out = out.at[Hp:Hp + H].set(w[H:])
        return out

    def interleave(w_f, w_b):                   # per-dir (R, 4Hp) -> fused (R, 8Hp)
        blocks = []
        for q in range(4):
            blocks.append(w_f[:, q * Hp:(q + 1) * Hp])
            blocks.append(w_b[:, q * Hp:(q + 1) * Hp])
        return jnp.concatenate(blocks, axis=1)

    # sigmoid(z) = 0.5 + 0.5*tanh(z/2): halve all i/f/o (non-g) columns of weights and biases.
    col = jnp.arange(G)
    col_scale = jnp.where((col >= 4 * Hp) & (col < 6 * Hp), 1.0, 0.5).astype(jnp.float32)

    def finish_w(w):
        return (w * col_scale).astype(compute_dtype)

    def finish_b(b):
        return (b * col_scale).astype(jnp.float32)

    def blockdiag_hh(whh_f, whh_b):
        f_p = pad_gate_cols(pad_hidden_rows(whh_f))
        b_p = pad_gate_cols(pad_hidden_rows(whh_b))
        top = interleave(f_p, jnp.zeros_like(f_p))   # rows = h_fwd lanes
        bot = interleave(jnp.zeros_like(b_p), b_p)   # rows = h_bwd lanes
        return jnp.concatenate([top, bot], axis=0)   # (2Hp, 8Hp)

    wih0_f, whh0_f, b0_f = raw["l0_fwd"]
    wih0_b, whh0_b, b0_b = raw["l0_bwd"]
    wih1_f, whh1_f, b1_f = raw["l1_fwd"]
    wih1_b, whh1_b, b1_b = raw["l1_bwd"]

    fcw = pad_cat_rows(raw["fc_w"])                                   # (2Hp, O)
    fcw = jnp.zeros((2 * Hp, OP), jnp.float32).at[:, :O].set(fcw)
    fcb = jnp.zeros((1, OP), jnp.float32).at[:, :O].set(raw["fc_b"])

    return {
        "wih0": finish_w(interleave(pad_gate_cols(wih0_f), pad_gate_cols(wih0_b))),
        "whh0": finish_w(blockdiag_hh(whh0_f, whh0_b)),
        "b0": finish_b(interleave(pad_gate_cols(b0_f), pad_gate_cols(b0_b))),
        "wih1": finish_w(interleave(pad_gate_cols(pad_cat_rows(wih1_f)),
                                    pad_gate_cols(pad_cat_rows(wih1_b)))),
        "whh1": finish_w(blockdiag_hh(whh1_f, whh1_b)),
        "b1": finish_b(interleave(pad_gate_cols(b1_f), pad_gate_cols(b1_b))),
        "fc_w": fcw.astype(compute_dtype),
        "fc_b": fcb,
        "output_dim": O,
    }


# ----------------------------------------------------------------------------
# Pure-JAX reference (eval-mode forward) for numerical self-check
# ----------------------------------------------------------------------------
def lstm_classifier_reference(tokens, raw, hidden_dim):
    H = hidden_dim
    hi = jax.lax.Precision.HIGHEST
    x = jnp.take(raw["embedding"], tokens, axis=0)   # (B, T, E)

    def run_dir(seq, w_ih, w_hh, b, reverse):
        B, T, _ = seq.shape
        h = jnp.zeros((B, H), jnp.float32)
        c = jnp.zeros((B, H), jnp.float32)
        outs = [None] * T
        order = range(T - 1, -1, -1) if reverse else range(T)
        for t in order:
            g = (jnp.dot(seq[:, t], w_ih, precision=hi)
                 + jnp.dot(h, w_hh, precision=hi) + b)
            i = jax.nn.sigmoid(g[:, 0 * H:1 * H])
            f = jax.nn.sigmoid(g[:, 1 * H:2 * H])
            gg = jnp.tanh(g[:, 2 * H:3 * H])
            o = jax.nn.sigmoid(g[:, 3 * H:4 * H])
            c = f * c + i * gg
            h = o * jnp.tanh(c)
            outs[t] = h
        return jnp.stack(outs, axis=1), h

    of, _ = run_dir(x, *raw["l0_fwd"], reverse=False)
    ob, _ = run_dir(x, *raw["l0_bwd"], reverse=True)
    x1 = jnp.concatenate([of, ob], axis=-1)
    _, hf = run_dir(x1, *raw["l1_fwd"], reverse=False)
    _, hb = run_dir(x1, *raw["l1_bwd"], reverse=True)
    hidden = jnp.concatenate([hf, hb], axis=-1)
    return jnp.dot(hidden, raw["fc_w"], precision=hi) + raw["fc_b"]


# ----------------------------------------------------------------------------
if __name__ == "__main__":
    VOCAB = 1000      # small synthetic vocab (module default is 100000)
    EMBED = 16
    HIDDEN = 32
    OUT = 4
    B, T = 2, 8

    key = jax.random.PRNGKey(0)
    k_params, k_tok = jax.random.split(key)
    raw = init_params(k_params, VOCAB, EMBED, HIDDEN, OUT)
    tokens = jax.random.randint(k_tok, (B, T), 0, VOCAB, dtype=jnp.int32)

    ref = jax.block_until_ready(lstm_classifier_reference(tokens, raw, HIDDEN))

    # f32 MXU-operand variant: tight-ish check of layout / gate packing / tanh-sigmoid fold.
    packed_f32 = pack_params(raw, HIDDEN, compute_dtype=jnp.float32)
    out_f32 = jax.block_until_ready(
        lstm_classifier_forward(tokens, raw["embedding"], packed_f32))
    assert out_f32.shape == (B, OUT) and out_f32.dtype == jnp.float32
    assert bool(jnp.all(jnp.isfinite(out_f32)))
    assert jnp.allclose(out_f32, ref, rtol=5e-3, atol=5e-3), (out_f32, ref)

    # bf16 MXU-operand fast path (default): looser tolerance appropriate for bf16 operands.
    packed_bf16 = pack_params(raw, HIDDEN, compute_dtype=jnp.bfloat16)
    out_bf16 = jax.block_until_ready(
        lstm_classifier_forward(tokens, raw["embedding"], packed_bf16))
    assert out_bf16.shape == (B, OUT) and out_bf16.dtype == jnp.float32
    assert bool(jnp.all(jnp.isfinite(out_bf16)))
    assert jnp.allclose(out_bf16, ref, rtol=3e-2, atol=3e-2), (out_bf16, ref)

    print("KERNEL_OK")
</pallas_src>

<mosaic_0001>
module attributes {stable_mosaic.version = 11 : i64} {
  func.func @_lstm_classifier_kernel(%arg0: i32, %arg1: memref<1x64x16xf32, #tpu.memory_space<vmem>>, %arg2: memref<16x512xf32, #tpu.memory_space<vmem>>, %arg3: memref<128x512xf32, #tpu.memory_space<vmem>>, %arg4: memref<1x512xf32, #tpu.memory_space<vmem>>, %arg5: memref<128x512xf32, #tpu.memory_space<vmem>>, %arg6: memref<128x512xf32, #tpu.memory_space<vmem>>, %arg7: memref<1x512xf32, #tpu.memory_space<vmem>>, %arg8: memref<128x128xf32, #tpu.memory_space<vmem>>, %arg9: memref<1x128xf32, #tpu.memory_space<vmem>>, %arg10: memref<8x128xf32, #tpu.memory_space<vmem>>, %arg11: memref<64x128xf32, #tpu.memory_space<vmem>>) attributes {dimension_semantics = [#tpu.dimension_semantics<parallel>], iteration_bounds = array<i64: 1>, scalar_prefetch = 0 : i64, scratch_operands = 1 : i64, tpu.core_type = #tpu.core_type<tc>, window_params = [{transform_indices = @transform_0, window_bounds = array<i64: 1, 64, 16>}, {pipeline_mode = #tpu.pipeline_mode<synchronous>, transform_indices = @transform_1, window_bounds = array<i64: 16, 512>}, {pipeline_mode = #tpu.pipeline_mode<synchronous>, transform_indices = @transform_2, window_bounds = array<i64: 128, 512>}, {pipeline_mode = #tpu.pipeline_mode<synchronous>, transform_indices = @transform_3, window_bounds = array<i64: 1, 512>}, {pipeline_mode = #tpu.pipeline_mode<synchronous>, transform_indices = @transform_4, window_bounds = array<i64: 128, 512>}, {pipeline_mode = #tpu.pipeline_mode<synchronous>, transform_indices = @transform_5, window_bounds = array<i64: 128, 512>}, {pipeline_mode = #tpu.pipeline_mode<synchronous>, transform_indices = @transform_6, window_bounds = array<i64: 1, 512>}, {pipeline_mode = #tpu.pipeline_mode<synchronous>, transform_indices = @transform_7, window_bounds = array<i64: 128, 128>}, {pipeline_mode = #tpu.pipeline_mode<synchronous>, transform_indices = @transform_8, window_bounds = array<i64: 1, 128>}, {transform_indices = @transform_9, window_bounds = array<i64: 8, 128>}]} {
    %0 = tpu.iota {dimensions = array<i32: 1>} : vector<8x512xi32>
    %c64_i32 = arith.constant 64 : i32
    %1 = vector.broadcast %c64_i32 : i32 to vector<8x512xi32>
    %2 = arith.cmpi slt, %0, %1 : vector<8x512xi32>
    %c128_i32 = arith.constant 128 : i32
    %3 = vector.broadcast %c128_i32 : i32 to vector<8x512xi32>
    %4 = arith.cmpi sge, %0, %3 : vector<8x512xi32>
    %c192_i32 = arith.constant 192 : i32
    %5 = vector.broadcast %c192_i32 : i32 to vector<8x512xi32>
    %6 = arith.cmpi slt, %0, %5 : vector<8x512xi32>
    %7 = arith.andi %4, %6 : vector<8x512xi1>
    %8 = arith.ori %2, %7 : vector<8x512xi1>
    %c256_i32 = arith.constant 256 : i32
    %9 = vector.broadcast %c256_i32 : i32 to vector<8x512xi32>
    %10 = arith.cmpi sge, %0, %9 : vector<8x512xi32>
    %c320_i32 = arith.constant 320 : i32
    %11 = vector.broadcast %c320_i32 : i32 to vector<8x512xi32>
    %12 = arith.cmpi slt, %0, %11 : vector<8x512xi32>
    %13 = arith.andi %10, %12 : vector<8x512xi1>
    %14 = arith.ori %8, %13 : vector<8x512xi1>
    %c384_i32 = arith.constant 384 : i32
    %15 = vector.broadcast %c384_i32 : i32 to vector<8x512xi32>
    %16 = arith.cmpi sge, %0, %15 : vector<8x512xi32>
    %c448_i32 = arith.constant 448 : i32
    %17 = vector.broadcast %c448_i32 : i32 to vector<8x512xi32>
    %18 = arith.cmpi slt, %0, %17 : vector<8x512xi32>
    %19 = arith.andi %16, %18 : vector<8x512xi1>
    %20 = arith.ori %14, %19 : vector<8x512xi1>
    %21 = tpu.iota {dimensions = array<i32: 1>} : vector<1x512xi32>
    %c256_i32_0 = arith.constant 256 : i32
    %22 = vector.broadcast %c256_i32_0 : i32 to vector<1x512xi32>
    %23 = arith.cmpi sge, %21, %22 : vector<1x512xi32>
    %c384_i32_1 = arith.constant 384 : i32
    %24 = vector.broadcast %c384_i32_1 : i32 to vector<1x512xi32>
    %25 = arith.cmpi slt, %21, %24 : vector<1x512xi32>
    %26 = arith.andi %23, %25 : vector<1x512xi1>
    %cst = arith.constant 1.000000e+00 : f32
    %cst_2 = arith.constant 5.000000e-01 : f32
    %27 = vector.broadcast %cst : f32 to vector<1x512xf32>
    %28 = vector.broadcast %cst_2 : f32 to vector<1x512xf32>
    %29 = arith.select %26, %27, %28 : vector<1x512xi1>, vector<1x512xf32>
    %cst_3 = arith.constant 0.000000e+00 : f32
    %cst_4 = arith.constant 5.000000e-01 : f32
    %30 = vector.broadcast %cst_3 : f32 to vector<1x512xf32>
    %31 = vector.broadcast %cst_4 : f32 to vector<1x512xf32>
    %32 = arith.select %26, %30, %31 : vector<1x512xi1>, vector<1x512xf32>
    %c0 = arith.constant 0 : index
    %c0_5 = arith.constant 0 : index
    %c0_6 = arith.constant 0 : index
    %33 = vector.load %arg1[%c0, %c0_5, %c0_6] : memref<1x64x16xf32, #tpu.memory_space<vmem>>, vector<1x64x16xf32>
    %34 = vector.shape_cast %33 : vector<1x64x16xf32> to vector<64x16xf32>
    %c0_7 = arith.constant 0 : index
    %c0_8 = arith.constant 0 : index
    %35 = vector.load %arg2[%c0_7, %c0_8] : memref<16x512xf32, #tpu.memory_space<vmem>>, vector<16x512xf32>
    %cst_9 = arith.constant dense<0.000000e+00> : vector<64x512xf32>
    %36 = tpu.matmul %34, %35, %cst_9 {dimension_numbers = #tpu.dot_dimension_numbers<[1], [0], [0], [1], [0, 0, 1, 1], [], []>} : vector<64x16xf32>, vector<16x512xf32>, vector<64x512xf32> -> vector<64x512xf32>
    %c0_10 = arith.constant 0 : index
    %c0_11 = arith.constant 0 : index
    %37 = vector.load %arg4[%c0_10, %c0_11] : memref<1x512xf32, #tpu.memory_space<vmem>>, vector<1x512xf32>
    %38 = vector.broadcast %37 : vector<1x512xf32> to vector<64x512xf32>
    %39 = arith.addf %36, %38 : vector<64x512xf32>
    %40 = vector.extract_strided_slice %39 {offsets = [0, 0], sizes = [8, 512], strides = [1, 1]} : vector<64x512xf32> to vector<8x512xf32>
    %41 = vector.extract_strided_slice %39 {offsets = [56, 0], sizes = [8, 512], strides = [1, 1]} : vector<64x512xf32> to vector<8x512xf32>
    %42 = arith.select %20, %40, %41 : vector<8x512xi1>, vector<8x512xf32>
    %43 = vector.extract_strided_slice %39 {offsets = [8, 0], sizes = [8, 512], strides = [1, 1]} : vector<64x512xf32> to vector<8x512xf32>
    %44 = vector.extract_strided_slice %39 {offsets = [48, 0], sizes = [8, 512], strides = [1, 1]} : vector<64x512xf32> to vector<8x512xf32>
    %45 = arith.select %20, %43, %44 : vector<8x512xi1>, vector<8x512xf32>
    %46 = vector.extract_strided_slice %39 {offsets = [16, 0], sizes = [8, 512], strides = [1, 1]} : vector<64x512xf32> to vector<8x512xf32>
    %47 = vector.extract_strided_slice %39 {offsets = [40, 0], sizes = [8, 512], strides = [1, 1]} : vector<64x512xf32> to vector<8x512xf32>
    %48 = arith.select %20, %46, %47 : vector<8x512xi1>, vector<8x512xf32>
    %49 = vector.extract_strided_slice %39 {offsets = [24, 0], sizes = [8, 512], strides = [1, 1]} : vector<64x512xf32> to vector<8x512xf32>
    %50 = vector.extract_strided_slice %39 {offsets = [32, 0], sizes = [8, 512], strides = [1, 1]} : vector<64x512xf32> to vector<8x512xf32>
    %51 = arith.select %20, %49, %50 : vector<8x512xi1>, vector<8x512xf32>
    %52 = vector.extract_strided_slice %39 {offsets = [32, 0], sizes = [8, 512], strides = [1, 1]} : vector<64x512xf32> to vector<8x512xf32>
    %53 = vector.extract_strided_slice %39 {offsets = [24, 0], sizes = [8, 512], strides = [1, 1]} : vector<64x512xf32> to vector<8x512xf32>
    %54 = arith.select %20, %52, %53 : vector<8x512xi1>, vector<8x512xf32>
    %55 = vector.extract_strided_slice %39 {offsets = [40, 0], sizes = [8, 512], strides = [1, 1]} : vector<64x512xf32> to vector<8x512xf32>
    %56 = vector.extract_strided_slice %39 {offsets = [16, 0], sizes = [8, 512], strides = [1, 1]} : vector<64x512xf32> to vector<8x512xf32>
    %57 = arith.select %20, %55, %56 : vector<8x512xi1>, vector<8x512xf32>
    %58 = vector.extract_strided_slice %39 {offsets = [48, 0], sizes = [8, 512], strides = [1, 1]} : vector<64x512xf32> to vector<8x512xf32>
    %59 = vector.extract_strided_slice %39 {offsets = [8, 0], sizes = [8, 512], strides = [1, 1]} : vector<64x512xf32> to vector<8x512xf32>
    %60 = arith.select %20, %58, %59 : vector<8x512xi1>, vector<8x512xf32>
    %61 = vector.extract_strided_slice %39 {offsets = [56, 0], sizes = [8, 512], strides = [1, 1]} : vector<64x512xf32> to vector<8x512xf32>
    %62 = vector.extract_strided_slice %39 {offsets = [0, 0], sizes = [8, 512], strides = [1, 1]} : vector<64x512xf32> to vector<8x512xf32>
    %63 = arith.select %20, %61, %62 : vector<8x512xi1>, vector<8x512xf32>
    %c0_12 = arith.constant 0 : index
    %c0_13 = arith.constant 0 : index
    %64 = vector.load %arg3[%c0_12, %c0_13] : memref<128x512xf32, #tpu.memory_space<vmem>>, vector<128x512xf32>
    %cst_14 = arith.constant 0.000000e+00 : f32
    %65 = vector.broadcast %cst_14 : f32 to vector<8x128xf32>
    %cst_15 = arith.constant 0.000000e+00 : f32
    %66 = vector.broadcast %cst_15 : f32 to vector<8x128xf32>
    %cst_16 = arith.constant dense<0.000000e+00> : vector<8x512xf32>
    %67 = tpu.matmul %65, %64, %cst_16 {dimension_numbers = #tpu.dot_dimension_numbers<[1], [0], [0], [1], [0, 0, 1, 1], [], []>} : vector<8x128xf32>, vector<128x512xf32>, vector<8x512xf32> -> vector<8x512xf32>
    %68 = arith.addf %42, %67 : vector<8x512xf32>
    %69 = math.tanh %68 : vector<8x512xf32>
    %70 = vector.broadcast %29 : vector<1x512xf32> to vector<8x512xf32>
    %71 = arith.mulf %70, %69 : vector<8x512xf32>
    %72 = vector.broadcast %32 : vector<1x512xf32> to vector<8x512xf32>
    %73 = arith.addf %72, %71 : vector<8x512xf32>
    %74 = vector.extract_strided_slice %73 {offsets = [0, 0], sizes = [8, 128], strides = [1, 1]} : vector<8x512xf32> to vector<8x128xf32>
    %75 = vector.extract_strided_slice %73 {offsets = [0, 128], sizes = [8, 128], strides = [1, 1]} : vector<8x512xf32> to vector<8x128xf32>
    %76 = vector.extract_strided_slice %73 {offsets = [0, 256], sizes = [8, 128], strides = [1, 1]} : vector<8x512xf32> to vector<8x128xf32>
    %77 = vector.extract_strided_slice %73 {offsets = [0, 384], sizes = [8, 128], strides = [1, 1]} : vector<8x512xf32> to vector<8x128xf32>
    %78 = arith.mulf %75, %66 : vector<8x128xf32>
    %79 = arith.mulf %74, %76 : vector<8x128xf32>
    %80 = arith.addf %78, %79 : vector<8x128xf32>
    %81 = math.tanh %80 : vector<8x128xf32>
    %82 = arith.mulf %77, %81 : vector<8x128xf32>
    %83 = vector.extract_strided_slice %82 {offsets = [0, 0], sizes = [8, 64], strides = [1, 1]} : vector<8x128xf32> to vector<8x64xf32>
    %c0_17 = arith.constant 0 : index
    %c0_18 = arith.constant 0 : index
    %84 = vector.load %arg11[%c0_17, %c0_18] : memref<64x128xf32, #tpu.memory_space<vmem>>, vector<8x64xf32>
    tpu.vector_store %arg11[%c0_17, %c0_18], %83 {strides = array<i32>} : memref<64x128xf32, #tpu.memory_space<vmem>>, vector<8x64xf32>,
    %85 = vector.extract_strided_slice %82 {offsets = [0, 64], sizes = [8, 64], strides = [1, 1]} : vector<8x128xf32> to vector<8x64xf32>
    %c56 = arith.constant 56 : index
    %c64 = arith.constant 64 : index
    %86 = vector.load %arg11[%c56, %c64] : memref<64x128xf32, #tpu.memory_space<vmem>>, vector<8x64xf32>
    tpu.vector_store %arg11[%c56, %c64], %85 {strides = array<i32>} : memref<64x128xf32, #tpu.memory_space<vmem>>, vector<8x64xf32>,
    %cst_19 = arith.constant dense<0.000000e+00> : vector<8x512xf32>
    %87 = tpu.matmul %82, %64, %cst_19 {dimension_numbers = #tpu.dot_dimension_numbers<[1], [0], [0], [1], [0, 0, 1, 1], [], []>} : vector<8x128xf32>, vector<128x512xf32>, vector<8x512xf32> -> vector<8x512xf32>
    %88 = arith.addf %45, %87 : vector<8x512xf32>
    %89 = math.tanh %88 : vector<8x512xf32>
    %90 = vector.broadcast %29 : vector<1x512xf32> to vector<8x512xf32>
    %91 = arith.mulf %90, %89 : vector<8x512xf32>
    %92 = vector.broadcast %32 : vector<1x512xf32> to vector<8x512xf32>
    %93 = arith.addf %92, %91 : vector<8x512xf32>
    %94 = vector.extract_strided_slice %93 {offsets = [0, 0], sizes = [8, 128], strides = [1, 1]} : vector<8x512xf32> to vector<8x128xf32>
    %95 = vector.extract_strided_slice %93 {offsets = [0, 128], sizes = [8, 128], strides = [1, 1]} : vector<8x512xf32> to vector<8x128xf32>
    %96 = vector.extract_strided_slice %93 {offsets = [0, 256], sizes = [8, 128], strides = [1, 1]} : vector<8x512xf32> to vector<8x128xf32>
    %97 = vector.extract_strided_slice %93 {offsets = [0, 384], sizes = [8, 128], strides = [1, 1]} : vector<8x512xf32> to vector<8x128xf32>
    %98 = arith.mulf %95, %80 : vector<8x128xf32>
    %99 = arith.mulf %94, %96 : vector<8x128xf32>
    %100 = arith.addf %98, %99 : vector<8x128xf32>
    %101 = math.tanh %100 : vector<8x128xf32>
    %102 = arith.mulf %97, %101 : vector<8x128xf32>
    %103 = vector.extract_strided_slice %102 {offsets = [0, 0], sizes = [8, 64], strides = [1, 1]} : vector<8x128xf32> to vector<8x64xf32>
    %c8 = arith.constant 8 : index
    %c0_20 = arith.constant 0 : index
    %104 = vector.load %arg11[%c8, %c0_20] : memref<64x128xf32, #tpu.memory_space<vmem>>, vector<8x64xf32>
    tpu.vector_store %arg11[%c8, %c0_20], %103 {strides = array<i32>} : memref<64x128xf32, #tpu.memory_space<vmem>>, vector<8x64xf32>,
    %105 = vector.extract_strided_slice %102 {offsets = [0, 64], sizes = [8, 64], strides = [1, 1]} : vector<8x128xf32> to vector<8x64xf32>
    %c48 = arith.constant 48 : index
    %c64_21 = arith.constant 64 : index
    %106 = vector.load %arg11[%c48, %c64_21] : memref<64x128xf32, #tpu.memory_space<vmem>>, vector<8x64xf32>
    tpu.vector_store %arg11[%c48, %c64_21], %105 {strides = array<i32>} : memref<64x128xf32, #tpu.memory_space<vmem>>, vector<8x64xf32>,
    %cst_22 = arith.constant dense<0.000000e+00> : vector<8x512xf32>
    %107 = tpu.matmul %102, %64, %cst_22 {dimension_numbers = #tpu.dot_dimension_numbers<[1], [0], [0], [1], [0, 0, 1, 1], [], []>} : vector<8x128xf32>, vector<128x512xf32>, vector<8x512xf32> -> vector<8x512xf32>
    %108 = arith.addf %48, %107 : vector<8x512xf32>
    %109 = math.tanh %108 : vector<8x512xf32>
    %110 = vector.broadcast %29 : vector<1x512xf32> to vector<8x512xf32>
    %111 = arith.mulf %110, %109 : vector<8x512xf32>
    %112 = vector.broadcast %32 : vector<1x512xf32> to vector<8x512xf32>
    %113 = arith.addf %112, %111 : vector<8x512xf32>
    %114 = vector.extract_strided_slice %113 {offsets = [0, 0], sizes = [8, 128], strides = [1, 1]} : vector<8x512xf32> to vector<8x128xf32>
    %115 = vector.extract_strided_slice %113 {offsets = [0, 128], sizes = [8, 128], strides = [1, 1]} : vector<8x512xf32> to vector<8x128xf32>
    %116 = vector.extract_strided_slice %113 {offsets = [0, 256], sizes = [8, 128], strides = [1, 1]} : vector<8x512xf32> to vector<8x128xf32>
    %117 = vector.extract_strided_slice %113 {offsets = [0, 384], sizes = [8, 128], strides = [1, 1]} : vector<8x512xf32> to vector<8x128xf32>
    %118 = arith.mulf %115, %100 : vector<8x128xf32>
    %119 = arith.mulf %114, %116 : vector<8x128xf32>
    %120 = arith.addf %118, %119 : vector<8x128xf32>
    %121 = math.tanh %120 : vector<8x128xf32>
    %122 = arith.mulf %117, %121 : vector<8x128xf32>
    %123 = vector.extract_strided_slice %122 {offsets = [0, 0], sizes = [8, 64], strides = [1, 1]} : vector<8x128xf32> to vector<8x64xf32>
    %c16 = arith.constant 16 : index
    %c0_23 = arith.constant 0 : index
    %124 = vector.load %arg11[%c16, %c0_23] : memref<64x128xf32, #tpu.memory_space<vmem>>, vector<8x64xf32>
    tpu.vector_store %arg11[%c16, %c0_23], %123 {strides = array<i32>} : memref<64x128xf32, #tpu.memory_space<vmem>>, vector<8x64xf32>,
    %125 = vector.extract_strided_slice %122 {offsets = [0, 64], sizes = [8, 64], strides = [1, 1]} : vector<8x128xf32> to vector<8x64xf32>
    %c40 = arith.constant 40 : index
    %c64_24 = arith.constant 64 : index
    %126 = vector.load %arg11[%c40, %c64_24] : memref<64x128xf32, #tpu.memory_space<vmem>>, vector<8x64xf32>
    tpu.vector_store %arg11[%c40, %c64_24], %125 {strides = array<i32>} : memref<64x128xf32, #tpu.memory_space<vmem>>, vector<8x64xf32>,
    %cst_25 = arith.constant dense<0.000000e+00> : vector<8x512xf32>
    %127 = tpu.matmul %122, %64, %cst_25 {dimension_numbers = #tpu.dot_dimension_numbers<[1], [0], [0], [1], [0, 0, 1, 1], [], []>} : vector<8x128xf32>, vector<128x512xf32>, vector<8x512xf32> -> vector<8x512xf32>
    %128 = arith.addf %51, %127 : vector<8x512xf32>
    %129 = math.tanh %128 : vector<8x512xf32>
    %130 = vector.broadcast %29 : vector<1x512xf32> to vector<8x512xf32>
    %131 = arith.mulf %130, %129 : vector<8x512xf32>
    %132 = vector.broadcast %32 : vector<1x512xf32> to vector<8x512xf32>
    %133 = arith.addf %132, %131 : vector<8x512xf32>
    %134 = vector.extract_strided_slice %133 {offsets = [0, 0], sizes = [8, 128], strides = [1, 1]} : vector<8x512xf32> to vector<8x128xf32>
    %135 = vector.extract_strided_slice %133 {offsets = [0, 128], sizes = [8, 128], strides = [1, 1]} : vector<8x512xf32> to vector<8x128xf32>
    %136 = vector.extract_strided_slice %133 {offsets = [0, 256], sizes = [8, 128], strides = [1, 1]} : vector<8x512xf32> to vector<8x128xf32>
    %137 = vector.extract_strided_slice %133 {offsets = [0, 384], sizes = [8, 128], strides = [1, 1]} : vector<8x512xf32> to vector<8x128xf32>
    %138 = arith.mulf %135, %120 : vector<8x128xf32>
    %139 = arith.mulf %134, %136 : vector<8x128xf32>
    %140 = arith.addf %138, %139 : vector<8x128xf32>
    %141 = math.tanh %140 : vector<8x128xf32>
    %142 = arith.mulf %137, %141 : vector<8x128xf32>
    %143 = vector.extract_strided_slice %142 {offsets = [0, 0], sizes = [8, 64], strides = [1, 1]} : vector<8x128xf32> to vector<8x64xf32>
    %c24 = arith.constant 24 : index
    %c0_26 = arith.constant 0 : index
    %144 = vector.load %arg11[%c24, %c0_26] : memref<64x128xf32, #tpu.memory_space<vmem>>, vector<8x64xf32>
    tpu.vector_store %arg11[%c24, %c0_26], %143 {strides = array<i32>} : memref<64x128xf32, #tpu.memory_space<vmem>>, vector<8x64xf32>,
    %145 = vector.extract_strided_slice %142 {offsets = [0, 64], sizes = [8, 64], strides = [1, 1]} : vector<8x128xf32> to vector<8x64xf32>
    %c32 = arith.constant 32 : index
    %c64_27 = arith.constant 64 : index
    %146 = vector.load %arg11[%c32, %c64_27] : memref<64x128xf32, #tpu.memory_space<vmem>>, vector<8x64xf32>
    tpu.vector_store %arg11[%c32, %c64_27], %145 {strides = array<i32>} : memref<64x128xf32, #tpu.memory_space<vmem>>, vector<8x64xf32>,
    %cst_28 = arith.constant dense<0.000000e+00> : vector<8x512xf32>
    %147 = tpu.matmul %142, %64, %cst_28 {dimension_numbers = #tpu.dot_dimension_numbers<[1], [0], [0], [1], [0, 0, 1, 1], [], []>} : vector<8x128xf32>, vector<128x512xf32>, vector<8x512xf32> -> vector<8x512xf32>
    %148 = arith.addf %54, %147 : vector<8x512xf32>
    %149 = math.tanh %148 : vector<8x512xf32>
    %150 = vector.broadcast %29 : vector<1x512xf32> to vector<8x512xf32>
    %151 = arith.mulf %150, %149 : vector<8x512xf32>
    %152 = vector.broadcast %32 : vector<1x512xf32> to vector<8x512xf32>
    %153 = arith.addf %152, %151 : vector<8x512xf32>
    %154 = vector.extract_strided_slice %153 {offsets = [0, 0], sizes = [8, 128], strides = [1, 1]} : vector<8x512xf32> to vector<8x128xf32>
    %155 = vector.extract_strided_slice %153 {offsets = [0, 128], sizes = [8, 128], strides = [1, 1]} : vector<8x512xf32> to vector<8x128xf32>
    %156 = vector.extract_strided_slice %153 {offsets = [0, 256], sizes = [8, 128], strides = [1, 1]} : vector<8x512xf32> to vector<8x128xf32>
    %157 = vector.extract_strided_slice %153 {offsets = [0, 384], sizes = [8, 128], strides = [1, 1]} : vector<8x512xf32> to vector<8x128xf32>
    %158 = arith.mulf %155, %140 : vector<8x128xf32>
    %159 = arith.mulf %154, %156 : vector<8x128xf32>
    %160 = arith.addf %158, %159 : vector<8x128xf32>
    %161 = math.tanh %160 : vector<8x128xf32>
    %162 = arith.mulf %157, %161 : vector<8x128xf32>
    %163 = vector.extract_strided_slice %162 {offsets = [0, 0], sizes = [8, 64], strides = [1, 1]} : vector<8x128xf32> to vector<8x64xf32>
    %c32_29 = arith.constant 32 : index
    %c0_30 = arith.constant 0 : index
    %164 = vector.load %arg11[%c32_29, %c0_30] : memref<64x128xf32, #tpu.memory_space<vmem>>, vector<8x64xf32>
    tpu.vector_store %arg11[%c32_29, %c0_30], %163 {strides = array<i32>} : memref<64x128xf32, #tpu.memory_space<vmem>>, vector<8x64xf32>,
    %165 = vector.extract_strided_slice %162 {offsets = [0, 64], sizes = [8, 64], strides = [1, 1]} : vector<8x128xf32> to vector<8x64xf32>
    %c24_31 = arith.constant 24 : index
    %c64_32 = arith.constant 64 : index
    %166 = vector.load %arg11[%c24_31, %c64_32] : memref<64x128xf32, #tpu.memory_space<vmem>>, vector<8x64xf32>
    tpu.vector_store %arg11[%c24_31, %c64_32], %165 {strides = array<i32>} : memref<64x128xf32, #tpu.memory_space<vmem>>, vector<8x64xf32>,
    %cst_33 = arith.constant dense<0.000000e+00> : vector<8x512xf32>
    %167 = tpu.matmul %162, %64, %cst_33 {dimension_numbers = #tpu.dot_dimension_numbers<[1], [0], [0], [1], [0, 0, 1, 1], [], []>} : vector<8x128xf32>, vector<128x512xf32>, vector<8x512xf32> -> vector<8x512xf32>
    %168 = arith.addf %57, %167 : vector<8x512xf32>
    %169 = math.tanh %168 : vector<8x512xf32>
    %170 = vector.broadcast %29 : vector<1x512xf32> to vector<8x512xf32>
    %171 = arith.mulf %170, %169 : vector<8x512xf32>
    %172 = vector.broadcast %32 : vector<1x512xf32> to vector<8x512xf32>
    %173 = arith.addf %172, %171 : vector<8x512xf32>
    %174 = vector.extract_strided_slice %173 {offsets = [0, 0], sizes = [8, 128], strides = [1, 1]} : vector<8x512xf32> to vector<8x128xf32>
    %175 = vector.extract_strided_slice %173 {offsets = [0, 128], sizes = [8, 128], strides = [1, 1]} : vector<8x512xf32> to vector<8x128xf32>
    %176 = vector.extract_strided_slice %173 {offsets = [0, 256], sizes = [8, 128], strides = [1, 1]} : vector<8x512xf32> to vector<8x128xf32>
    %177 = vector.extract_strided_slice %173 {offsets = [0, 384], sizes = [8, 128], strides = [1, 1]} : vector<8x512xf32> to vector<8x128xf32>
    %178 = arith.mulf %175, %160 : vector<8x128xf32>
    %179 = arith.mulf %174, %176 : vector<8x128xf32>
    %180 = arith.addf %178, %179 : vector<8x128xf32>
    %181 = math.tanh %180 : vector<8x128xf32>
    %182 = arith.mulf %177, %181 : vector<8x128xf32>
    %183 = vector.extract_strided_slice %182 {offsets = [0, 0], sizes = [8, 64], strides = [1, 1]} : vector<8x128xf32> to vector<8x64xf32>
    %c40_34 = arith.constant 40 : index
    %c0_35 = arith.constant 0 : index
    %184 = vector.load %arg11[%c40_34, %c0_35] : memref<64x128xf32, #tpu.memory_space<vmem>>, vector<8x64xf32>
    tpu.vector_store %arg11[%c40_34, %c0_35], %183 {strides = array<i32>} : memref<64x128xf32, #tpu.memory_space<vmem>>, vector<8x64xf32>,
    %185 = vector.extract_strided_slice %182 {offsets = [0, 64], sizes = [8, 64], strides = [1, 1]} : vector<8x128xf32> to vector<8x64xf32>
    %c16_36 = arith.constant 16 : index
    %c64_37 = arith.constant 64 : index
    %186 = vector.load %arg11[%c16_36, %c64_37] : memref<64x128xf32, #tpu.memory_space<vmem>>, vector<8x64xf32>
    tpu.vector_store %arg11[%c16_36, %c64_37], %185 {strides = array<i32>} : memref<64x128xf32, #tpu.memory_space<vmem>>, vector<8x64xf32>,
    %cst_38 = arith.constant dense<0.000000e+00> : vector<8x512xf32>
    %187 = tpu.matmul %182, %64, %cst_38 {dimension_numbers = #tpu.dot_dimension_numbers<[1], [0], [0], [1], [0, 0, 1, 1], [], []>} : vector<8x128xf32>, vector<128x512xf32>, vector<8x512xf32> -> vector<8x512xf32>
    %188 = arith.addf %60, %187 : vector<8x512xf32>
    %189 = math.tanh %188 : vector<8x512xf32>
    %190 = vector.broadcast %29 : vector<1x512xf32> to vector<8x512xf32>
    %191 = arith.mulf %190, %189 : vector<8x512xf32>
    %192 = vector.broadcast %32 : vector<1x512xf32> to vector<8x512xf32>
    %193 = arith.addf %192, %191 : vector<8x512xf32>
    %194 = vector.extract_strided_slice %193 {offsets = [0, 0], sizes = [8, 128], strides = [1, 1]} : vector<8x512xf32> to vector<8x128xf32>
    %195 = vector.extract_strided_slice %193 {offsets = [0, 128], sizes = [8, 128], strides = [1, 1]} : vector<8x512xf32> to vector<8x128xf32>
    %196 = vector.extract_strided_slice %193 {offsets = [0, 256], sizes = [8, 128], strides = [1, 1]} : vector<8x512xf32> to vector<8x128xf32>
    %197 = vector.extract_strided_slice %193 {offsets = [0, 384], sizes = [8, 128], strides = [1, 1]} : vector<8x512xf32> to vector<8x128xf32>
    %198 = arith.mulf %195, %180 : vector<8x128xf32>
    %199 = arith.mulf %194, %196 : vector<8x128xf32>
    %200 = arith.addf %198, %199 : vector<8x128xf32>
    %201 = math.tanh %200 : vector<8x128xf32>
    %202 = arith.mulf %197, %201 : vector<8x128xf32>
    %203 = vector.extract_strided_slice %202 {offsets = [0, 0], sizes = [8, 64], strides = [1, 1]} : vector<8x128xf32> to vector<8x64xf32>
    %c48_39 = arith.constant 48 : index
    %c0_40 = arith.constant 0 : index
    %204 = vector.load %arg11[%c48_39, %c0_40] : memref<64x128xf32, #tpu.memory_space<vmem>>, vector<8x64xf32>
    tpu.vector_store %arg11[%c48_39, %c0_40], %203 {strides = array<i32>} : memref<64x128xf32, #tpu.memory_space<vmem>>, vector<8x64xf32>,
    %205 = vector.extract_strided_slice %202 {offsets = [0, 64], sizes = [8, 64], strides = [1, 1]} : vector<8x128xf32> to vector<8x64xf32>
    %c8_41 = arith.constant 8 : index
    %c64_42 = arith.constant 64 : index
    %206 = vector.load %arg11[%c8_41, %c64_42] : memref<64x128xf32, #tpu.memory_space<vmem>>, vector<8x64xf32>
    tpu.vector_store %arg11[%c8_41, %c64_42], %205 {strides = array<i32>} : memref<64x128xf32, #tpu.memory_space<vmem>>, vector<8x64xf32>,
    %cst_43 = arith.constant dense<0.000000e+00> : vector<8x512xf32>
    %207 = tpu.matmul %202, %64, %cst_43 {dimension_numbers = #tpu.dot_dimension_numbers<[1], [0], [0], [1], [0, 0, 1, 1], [], []>} : vector<8x128xf32>, vector<128x512xf32>, vector<8x512xf32> -> vector<8x512xf32>
    %208 = arith.addf %63, %207 : vector<8x512xf32>
    %209 = math.tanh %208 : vector<8x512xf32>
    %210 = vector.broadcast %29 : vector<1x512xf32> to vector<8x512xf32>
    %211 = arith.mulf %210, %209 : vector<8x512xf32>
    %212 = vector.broadcast %32 : vector<1x512xf32> to vector<8x512xf32>
    %213 = arith.addf %212, %211 : vector<8x512xf32>
    %214 = vector.extract_strided_slice %213 {offsets = [0, 0], sizes = [8, 128], strides = [1, 1]} : vector<8x512xf32> to vector<8x128xf32>
    %215 = vector.extract_strided_slice %213 {offsets = [0, 128], sizes = [8, 128], strides = [1, 1]} : vector<8x512xf32> to vector<8x128xf32>
    %216 = vector.extract_strided_slice %213 {offsets = [0, 256], sizes = [8, 128], strides = [1, 1]} : vector<8x512xf32> to vector<8x128xf32>
    %217 = vector.extract_strided_slice %213 {offsets = [0, 384], sizes = [8, 128], strides = [1, 1]} : vector<8x512xf32> to vector<8x128xf32>
    %218 = arith.mulf %215, %200 : vector<8x128xf32>
    %219 = arith.mulf %214, %216 : vector<8x128xf32>
    %220 = arith.addf %218, %219 : vector<8x128xf32>
    %221 = math.tanh %220 : vector<8x128xf32>
    %222 = arith.mulf %217, %221 : vector<8x128xf32>
    %223 = vector.extract_strided_slice %222 {offsets = [0, 0], sizes = [8, 64], strides = [1, 1]} : vector<8x128xf32> to vector<8x64xf32>
    %c56_44 = arith.constant 56 : index
    %c0_45 = arith.constant 0 : index
    %224 = vector.load %arg11[%c56_44, %c0_45] : memref<64x128xf32, #tpu.memory_space<vmem>>, vector<8x64xf32>
    tpu.vector_store %arg11[%c56_44, %c0_45], %223 {strides = array<i32>} : memref<64x128xf32, #tpu.memory_space<vmem>>, vector<8x64xf32>,
    %225 = vector.extract_strided_slice %222 {offsets = [0, 64], sizes = [8, 64], strides = [1, 1]} : vector<8x128xf32> to vector<8x64xf32>
    %c0_46 = arith.constant 0 : index
    %c64_47 = arith.constant 64 : index
    %226 = vector.load %arg11[%c0_46, %c64_47] : memref<64x128xf32, #tpu.memory_space<vmem>>, vector<8x64xf32>
    tpu.vector_store %arg11[%c0_46, %c64_47], %225 {strides = array<i32>} : memref<64x128xf32, #tpu.memory_space<vmem>>, vector<8x64xf32>,
    %c0_48 = arith.constant 0 : index
    %c0_49 = arith.constant 0 : index
    %227 = vector.load %arg11[%c0_48, %c0_49] : memref<64x128xf32, #tpu.memory_space<vmem>>, vector<64x128xf32>
    %c0_50 = arith.constant 0 : index
    %c0_51 = arith.constant 0 : index
    %228 = vector.load %arg5[%c0_50, %c0_51] : memref<128x512xf32, #tpu.memory_space<vmem>>, vector<128x512xf32>
    %cst_52 = arith.constant dense<0.000000e+00> : vector<64x512xf32>
    %229 = tpu.matmul %227, %228, %cst_52 {dimension_numbers = #tpu.dot_dimension_numbers<[1], [0], [0], [1], [0, 0, 1, 1], [], []>} : vector<64x128xf32>, vector<128x512xf32>, vector<64x512xf32> -> vector<64x512xf32>
    %c0_53 = arith.constant 0 : index
    %c0_54 = arith.constant 0 : index
    %230 = vector.load %arg7[%c0_53, %c0_54] : memref<1x512xf32, #tpu.memory_space<vmem>>, vector<1x512xf32>
    %231 = vector.broadcast %230 : vector<1x512xf32> to vector<64x512xf32>
    %232 = arith.addf %229, %231 : vector<64x512xf32>
    %233 = vector.extract_strided_slice %232 {offsets = [0, 0], sizes = [8, 512], strides = [1, 1]} : vector<64x512xf32> to vector<8x512xf32>
    %234 = vector.extract_strided_slice %232 {offsets = [56, 0], sizes = [8, 512], strides = [1, 1]} : vector<64x512xf32> to vector<8x512xf32>
    %235 = arith.select %20, %233, %234 : vector<8x512xi1>, vector<8x512xf32>
    %236 = vector.extract_strided_slice %232 {offsets = [8, 0], sizes = [8, 512], strides = [1, 1]} : vector<64x512xf32> to vector<8x512xf32>
    %237 = vector.extract_strided_slice %232 {offsets = [48, 0], sizes = [8, 512], strides = [1, 1]} : vector<64x512xf32> to vector<8x512xf32>
    %238 = arith.select %20, %236, %237 : vector<8x512xi1>, vector<8x512xf32>
    %239 = vector.extract_strided_slice %232 {offsets = [16, 0], sizes = [8, 512], strides = [1, 1]} : vector<64x512xf32> to vector<8x512xf32>
    %240 = vector.extract_strided_slice %232 {offsets = [40, 0], sizes = [8, 512], strides = [1, 1]} : vector<64x512xf32> to vector<8x512xf32>
    %241 = arith.select %20, %239, %240 : vector<8x512xi1>, vector<8x512xf32>
    %242 = vector.extract_strided_slice %232 {offsets = [24, 0], sizes = [8, 512], strides = [1, 1]} : vector<64x512xf32> to vector<8x512xf32>
    %243 = vector.extract_strided_slice %232 {offsets = [32, 0], sizes = [8, 512], strides = [1, 1]} : vector<64x512xf32> to vector<8x512xf32>
    %244 = arith.select %20, %242, %243 : vector<8x512xi1>, vector<8x512xf32>
    %245 = vector.extract_strided_slice %232 {offsets = [32, 0], sizes = [8, 512], strides = [1, 1]} : vector<64x512xf32> to vector<8x512xf32>
    %246 = vector.extract_strided_slice %232 {offsets = [24, 0], sizes = [8, 512], strides = [1, 1]} : vector<64x512xf32> to vector<8x512xf32>
    %247 = arith.select %20, %245, %246 : vector<8x512xi1>, vector<8x512xf32>
    %248 = vector.extract_strided_slice %232 {offsets = [40, 0], sizes = [8, 512], strides = [1, 1]} : vector<64x512xf32> to vector<8x512xf32>
    %249 = vector.extract_strided_slice %232 {offsets = [16, 0], sizes = [8, 512], strides = [1, 1]} : vector<64x512xf32> to vector<8x512xf32>
    %250 = arith.select %20, %248, %249 : vector<8x512xi1>, vector<8x512xf32>
    %251 = vector.extract_strided_slice %232 {offsets = [48, 0], sizes = [8, 512], strides = [1, 1]} : vector<64x512xf32> to vector<8x512xf32>
    %252 = vector.extract_strided_slice %232 {offsets = [8, 0], sizes = [8, 512], strides = [1, 1]} : vector<64x512xf32> to vector<8x512xf32>
    %253 = arith.select %20, %251, %252 : vector<8x512xi1>, vector<8x512xf32>
    %254 = vector.extract_strided_slice %232 {offsets = [56, 0], sizes = [8, 512], strides = [1, 1]} : vector<64x512xf32> to vector<8x512xf32>
    %255 = vector.extract_strided_slice %232 {offsets = [0, 0], sizes = [8, 512], strides = [1, 1]} : vector<64x512xf32> to vector<8x512xf32>
    %256 = arith.select %20, %254, %255 : vector<8x512xi1>, vector<8x512xf32>
    %c0_55 = arith.constant 0 : index
    %c0_56 = arith.constant 0 : index
    %257 = vector.load %arg6[%c0_55, %c0_56] : memref<128x512xf32, #tpu.memory_space<vmem>>, vector<128x512xf32>
    %cst_57 = arith.constant 0.000000e+00 : f32
    %258 = vector.broadcast %cst_57 : f32 to vector<8x128xf32>
    %cst_58 = arith.constant 0.000000e+00 : f32
    %259 = vector.broadcast %cst_58 : f32 to vector<8x128xf32>
    %cst_59 = arith.constant dense<0.000000e+00> : vector<8x512xf32>
    %260 = tpu.matmul %258, %257, %cst_59 {dimension_numbers = #tpu.dot_dimension_numbers<[1], [0], [0], [1], [0, 0, 1, 1], [], []>} : vector<8x128xf32>, vector<128x512xf32>, vector<8x512xf32> -> vector<8x512xf32>
    %261 = arith.addf %235, %260 : vector<8x512xf32>
    %262 = math.tanh %261 : vector<8x512xf32>
    %263 = vector.broadcast %29 : vector<1x512xf32> to vector<8x512xf32>
    %264 = arith.mulf %263, %262 : vector<8x512xf32>
    %265 = vector.broadcast %32 : vector<1x512xf32> to vector<8x512xf32>
    %266 = arith.addf %265, %264 : vector<8x512xf32>
    %267 = vector.extract_strided_slice %266 {offsets = [0, 0], sizes = [8, 128], strides = [1, 1]} : vector<8x512xf32> to vector<8x128xf32>
    %268 = vector.extract_strided_slice %266 {offsets = [0, 128], sizes = [8, 128], strides = [1, 1]} : vector<8x512xf32> to vector<8x128xf32>
    %269 = vector.extract_strided_slice %266 {offsets = [0, 256], sizes = [8, 128], strides = [1, 1]} : vector<8x512xf32> to vector<8x128xf32>
    %270 = vector.extract_strided_slice %266 {offsets = [0, 384], sizes = [8, 128], strides = [1, 1]} : vector<8x512xf32> to vector<8x128xf32>
    %271 = arith.mulf %268, %259 : vector<8x128xf32>
    %272 = arith.mulf %267, %269 : vector<8x128xf32>
    %273 = arith.addf %271, %272 : vector<8x128xf32>
    %274 = math.tanh %273 : vector<8x128xf32>
    %275 = arith.mulf %270, %274 : vector<8x128xf32>
    %cst_60 = arith.constant dense<0.000000e+00> : vector<8x512xf32>
    %276 = tpu.matmul %275, %257, %cst_60 {dimension_numbers = #tpu.dot_dimension_numbers<[1], [0], [0], [1], [0, 0, 1, 1], [], []>} : vector<8x128xf32>, vector<128x512xf32>, vector<8x512xf32> -> vector<8x512xf32>
    %277 = arith.addf %238, %276 : vector<8x512xf32>
    %278 = math.tanh %277 : vector<8x512xf32>
    %279 = vector.broadcast %29 : vector<1x512xf32> to vector<8x512xf32>
    %280 = arith.mulf %279, %278 : vector<8x512xf32>
    %281 = vector.broadcast %32 : vector<1x512xf32> to vector<8x512xf32>
    %282 = arith.addf %281, %280 : vector<8x512xf32>
    %283 = vector.extract_strided_slice %282 {offsets = [0, 0], sizes = [8, 128], strides = [1, 1]} : vector<8x512xf32> to vector<8x128xf32>
    %284 = vector.extract_strided_slice %282 {offsets = [0, 128], sizes = [8, 128], strides = [1, 1]} : vector<8x512xf32> to vector<8x128xf32>
    %285 = vector.extract_strided_slice %282 {offsets = [0, 256], sizes = [8, 128], strides = [1, 1]} : vector<8x512xf32> to vector<8x128xf32>
    %286 = vector.extract_strided_slice %282 {offsets = [0, 384], sizes = [8, 128], strides = [1, 1]} : vector<8x512xf32> to vector<8x128xf32>
    %287 = arith.mulf %284, %273 : vector<8x128xf32>
    %288 = arith.mulf %283, %285 : vector<8x128xf32>
    %289 = arith.addf %287, %288 : vector<8x128xf32>
    %290 = math.tanh %289 : vector<8x128xf32>
    %291 = arith.mulf %286, %290 : vector<8x128xf32>
    %cst_61 = arith.constant dense<0.000000e+00> : vector<8x512xf32>
    %292 = tpu.matmul %291, %257, %cst_61 {dimension_numbers = #tpu.dot_dimension_numbers<[1], [0], [0], [1], [0, 0, 1, 1], [], []>} : vector<8x128xf32>, vector<128x512xf32>, vector<8x512xf32> -> vector<8x512xf32>
    %293 = arith.addf %241, %292 : vector<8x512xf32>
    %294 = math.tanh %293 : vector<8x512xf32>
    %295 = vector.broadcast %29 : vector<1x512xf32> to vector<8x512xf32>
    %296 = arith.mulf %295, %294 : vector<8x512xf32>
    %297 = vector.broadcast %32 : vector<1x512xf32> to vector<8x512xf32>
    %298 = arith.addf %297, %296 : vector<8x512xf32>
    %299 = vector.extract_strided_slice %298 {offsets = [0, 0], sizes = [8, 128], strides = [1, 1]} : vector<8x512xf32> to vector<8x128xf32>
    %300 = vector.extract_strided_slice %298 {offsets = [0, 128], sizes = [8, 128], strides = [1, 1]} : vector<8x512xf32> to vector<8x128xf32>
    %301 = vector.extract_strided_slice %298 {offsets = [0, 256], sizes = [8, 128], strides = [1, 1]} : vector<8x512xf32> to vector<8x128xf32>
    %302 = vector.extract_strided_slice %298 {offsets = [0, 384], sizes = [8, 128], strides = [1, 1]} : vector<8x512xf32> to vector<8x128xf32>
    %303 = arith.mulf %300, %289 : vector<8x128xf32>
    %304 = arith.mulf %299, %301 : vector<8x128xf32>
    %305 = arith.addf %303, %304 : vector<8x128xf32>
    %306 = math.tanh %305 : vector<8x128xf32>
    %307 = arith.mulf %302, %306 : vector<8x128xf32>
    %cst_62 = arith.constant dense<0.000000e+00> : vector<8x512xf32>
    %308 = tpu.matmul %307, %257, %cst_62 {dimension_numbers = #tpu.dot_dimension_numbers<[1], [0], [0], [1], [0, 0, 1, 1], [], []>} : vector<8x128xf32>, vector<128x512xf32>, vector<8x512xf32> -> vector<8x512xf32>
    %309 = arith.addf %244, %308 : vector<8x512xf32>
    %310 = math.tanh %309 : vector<8x512xf32>
    %311 = vector.broadcast %29 : vector<1x512xf32> to vector<8x512xf32>
    %312 = arith.mulf %311, %310 : vector<8x512xf32>
    %313 = vector.broadcast %32 : vector<1x512xf32> to vector<8x512xf32>
    %314 = arith.addf %313, %312 : vector<8x512xf32>
    %315 = vector.extract_strided_slice %314 {offsets = [0, 0], sizes = [8, 128], strides = [1, 1]} : vector<8x512xf32> to vector<8x128xf32>
    %316 = vector.extract_strided_slice %314 {offsets = [0, 128], sizes = [8, 128], strides = [1, 1]} : vector<8x512xf32> to vector<8x128xf32>
    %317 = vector.extract_strided_slice %314 {offsets = [0, 256], sizes = [8, 128], strides = [1, 1]} : vector<8x512xf32> to vector<8x128xf32>
    %318 = vector.extract_strided_slice %314 {offsets = [0, 384], sizes = [8, 128], strides = [1, 1]} : vector<8x512xf32> to vector<8x128xf32>
    %319 = arith.mulf %316, %305 : vector<8x128xf32>
    %320 = arith.mulf %315, %317 : vector<8x128xf32>
    %321 = arith.addf %319, %320 : vector<8x128xf32>
    %322 = math.tanh %321 : vector<8x128xf32>
    %323 = arith.mulf %318, %322 : vector<8x128xf32>
    %cst_63 = arith.constant dense<0.000000e+00> : vector<8x512xf32>
    %324 = tpu.matmul %323, %257, %cst_63 {dimension_numbers = #tpu.dot_dimension_numbers<[1], [0], [0], [1], [0, 0, 1, 1], [], []>} : vector<8x128xf32>, vector<128x512xf32>, vector<8x512xf32> -> vector<8x512xf32>
    %325 = arith.addf %247, %324 : vector<8x512xf32>
    %326 = math.tanh %325 : vector<8x512xf32>
    %327 = vector.broadcast %29 : vector<1x512xf32> to vector<8x512xf32>
    %328 = arith.mulf %327, %326 : vector<8x512xf32>
    %329 = vector.broadcast %32 : vector<1x512xf32> to vector<8x512xf32>
    %330 = arith.addf %329, %328 : vector<8x512xf32>
    %331 = vector.extract_strided_slice %330 {offsets = [0, 0], sizes = [8, 128], strides = [1, 1]} : vector<8x512xf32> to vector<8x128xf32>
    %332 = vector.extract_strided_slice %330 {offsets = [0, 128], sizes = [8, 128], strides = [1, 1]} : vector<8x512xf32> to vector<8x128xf32>
    %333 = vector.extract_strided_slice %330 {offsets = [0, 256], sizes = [8, 128], strides = [1, 1]} : vector<8x512xf32> to vector<8x128xf32>
    %334 = vector.extract_strided_slice %330 {offsets = [0, 384], sizes = [8, 128], strides = [1, 1]} : vector<8x512xf32> to vector<8x128xf32>
    %335 = arith.mulf %332, %321 : vector<8x128xf32>
    %336 = arith.mulf %331, %333 : vector<8x128xf32>
    %337 = arith.addf %335, %336 : vector<8x128xf32>
    %338 = math.tanh %337 : vector<8x128xf32>
    %339 = arith.mulf %334, %338 : vector<8x128xf32>
    %cst_64 = arith.constant dense<0.000000e+00> : vector<8x512xf32>
    %340 = tpu.matmul %339, %257, %cst_64 {dimension_numbers = #tpu.dot_dimension_numbers<[1], [0], [0], [1], [0, 0, 1, 1], [], []>} : vector<8x128xf32>, vector<128x512xf32>, vector<8x512xf32> -> vector<8x512xf32>
    %341 = arith.addf %250, %340 : vector<8x512xf32>
    %342 = math.tanh %341 : vector<8x512xf32>
    %343 = vector.broadcast %29 : vector<1x512xf32> to vector<8x512xf32>
    %344 = arith.mulf %343, %342 : vector<8x512xf32>
    %345 = vector.broadcast %32 : vector<1x512xf32> to vector<8x512xf32>
    %346 = arith.addf %345, %344 : vector<8x512xf32>
    %347 = vector.extract_strided_slice %346 {offsets = [0, 0], sizes = [8, 128], strides = [1, 1]} : vector<8x512xf32> to vector<8x128xf32>
    %348 = vector.extract_strided_slice %346 {offsets = [0, 128], sizes = [8, 128], strides = [1, 1]} : vector<8x512xf32> to vector<8x128xf32>
    %349 = vector.extract_strided_slice %346 {offsets = [0, 256], sizes = [8, 128], strides = [1, 1]} : vector<8x512xf32> to vector<8x128xf32>
    %350 = vector.extract_strided_slice %346 {offsets = [0, 384], sizes = [8, 128], strides = [1, 1]} : vector<8x512xf32> to vector<8x128xf32>
    %351 = arith.mulf %348, %337 : vector<8x128xf32>
    %352 = arith.mulf %347, %349 : vector<8x128xf32>
    %353 = arith.addf %351, %352 : vector<8x128xf32>
    %354 = math.tanh %353 : vector<8x128xf32>
    %355 = arith.mulf %350, %354 : vector<8x128xf32>
    %cst_65 = arith.constant dense<0.000000e+00> : vector<8x512xf32>
    %356 = tpu.matmul %355, %257, %cst_65 {dimension_numbers = #tpu.dot_dimension_numbers<[1], [0], [0], [1], [0, 0, 1, 1], [], []>} : vector<8x128xf32>, vector<128x512xf32>, vector<8x512xf32> -> vector<8x512xf32>
    %357 = arith.addf %253, %356 : vector<8x512xf32>
    %358 = math.tanh %357 : vector<8x512xf32>
    %359 = vector.broadcast %29 : vector<1x512xf32> to vector<8x512xf32>
    %360 = arith.mulf %359, %358 : vector<8x512xf32>
    %361 = vector.broadcast %32 : vector<1x512xf32> to vector<8x512xf32>
    %362 = arith.addf %361, %360 : vector<8x512xf32>
    %363 = vector.extract_strided_slice %362 {offsets = [0, 0], sizes = [8, 128], strides = [1, 1]} : vector<8x512xf32> to vector<8x128xf32>
    %364 = vector.extract_strided_slice %362 {offsets = [0, 128], sizes = [8, 128], strides = [1, 1]} : vector<8x512xf32> to vector<8x128xf32>
    %365 = vector.extract_strided_slice %362 {offsets = [0, 256], sizes = [8, 128], strides = [1, 1]} : vector<8x512xf32> to vector<8x128xf32>
    %366 = vector.extract_strided_slice %362 {offsets = [0, 384], sizes = [8, 128], strides = [1, 1]} : vector<8x512xf32> to vector<8x128xf32>
    %367 = arith.mulf %364, %353 : vector<8x128xf32>
    %368 = arith.mulf %363, %365 : vector<8x128xf32>
    %369 = arith.addf %367, %368 : vector<8x128xf32>
    %370 = math.tanh %369 : vector<8x128xf32>
    %371 = arith.mulf %366, %370 : vector<8x128xf32>
    %cst_66 = arith.constant dense<0.000000e+00> : vector<8x512xf32>
    %372 = tpu.matmul %371, %257, %cst_66 {dimension_numbers = #tpu.dot_dimension_numbers<[1], [0], [0], [1], [0, 0, 1, 1], [], []>} : vector<8x128xf32>, vector<128x512xf32>, vector<8x512xf32> -> vector<8x512xf32>
    %373 = arith.addf %256, %372 : vector<8x512xf32>
    %374 = math.tanh %373 : vector<8x512xf32>
    %375 = vector.broadcast %29 : vector<1x512xf32> to vector<8x512xf32>
    %376 = arith.mulf %375, %374 : vector<8x512xf32>
    %377 = vector.broadcast %32 : vector<1x512xf32> to vector<8x512xf32>
    %378 = arith.addf %377, %376 : vector<8x512xf32>
    %379 = vector.extract_strided_slice %378 {offsets = [0, 0], sizes = [8, 128], strides = [1, 1]} : vector<8x512xf32> to vector<8x128xf32>
    %380 = vector.extract_strided_slice %378 {offsets = [0, 128], sizes = [8, 128], strides = [1, 1]} : vector<8x512xf32> to vector<8x128xf32>
    %381 = vector.extract_strided_slice %378 {offsets = [0, 256], sizes = [8, 128], strides = [1, 1]} : vector<8x512xf32> to vector<8x128xf32>
    %382 = vector.extract_strided_slice %378 {offsets = [0, 384], sizes = [8, 128], strides = [1, 1]} : vector<8x512xf32> to vector<8x128xf32>
    %383 = arith.mulf %380, %369 : vector<8x128xf32>
    %384 = arith.mulf %379, %381 : vector<8x128xf32>
    %385 = arith.addf %383, %384 : vector<8x128xf32>
    %386 = math.tanh %385 : vector<8x128xf32>
    %387 = arith.mulf %382, %386 : vector<8x128xf32>
    %c0_67 = arith.constant 0 : index
    %c0_68 = arith.constant 0 : index
    %388 = vector.load %arg8[%c0_67, %c0_68] : memref<128x128xf32, #tpu.memory_space<vmem>>, vector<128x128xf32>
    %cst_69 = arith.constant dense<0.000000e+00> : vector<8x128xf32>
    %389 = tpu.matmul %387, %388, %cst_69 {dimension_numbers = #tpu.dot_dimension_numbers<[1], [0], [0], [1], [0, 0, 1, 1], [], []>} : vector<8x128xf32>, vector<128x128xf32>, vector<8x128xf32> -> vector<8x128xf32>
    %c0_70 = arith.constant 0 : index
    %c0_71 = arith.constant 0 : index
    %390 = vector.load %arg9[%c0_70, %c0_71] : memref<1x128xf32, #tpu.memory_space<vmem>>, vector<1x128xf32>
    %391 = vector.broadcast %390 : vector<1x128xf32> to vector<8x128xf32>
    %392 = arith.addf %389, %391 : vector<8x128xf32>
    %c0_72 = arith.constant 0 : index
    %c0_73 = arith.constant 0 : index
    %393 = vector.load %arg10[%c0_72, %c0_73] : memref<8x128xf32, #tpu.memory_space<vmem>>, vector<8x128xf32>
    tpu.vector_store %arg10[%c0_72, %c0_73], %392 {strides = array<i32>} : memref<8x128xf32, #tpu.memory_space<vmem>>, vector<8x128xf32>,
    return
  }
  func.func @transform_0(%arg0: i32) -> (i32, i32, i32) {
    %c0_i32 = arith.constant 0 : i32
    %c0_i32_0 = arith.constant 0 : i32
    %c0_i32_1 = arith.constant 0 : i32
    return %arg0, %c0_i32, %c0_i32_0 : i32, i32, i32
  }
  func.func @transform_1(%arg0: i32) -> (i32, i32) {
    %c0_i32 = arith.constant 0 : i32
    %c0_i32_0 = arith.constant 0 : i32
    %c0_i32_1 = arith.constant 0 : i32
    return %c0_i32, %c0_i32_0 : i32, i32
  }
  func.func @transform_2(%arg0: i32) -> (i32, i32) {
    %c0_i32 = arith.constant 0 : i32
    %c0_i32_0 = arith.constant 0 : i32
    %c0_i32_1 = arith.constant 0 : i32
    return %c0_i32, %c0_i32_0 : i32, i32
  }
  func.func @transform_3(%arg0: i32) -> (i32, i32) {
    %c0_i32 = arith.constant 0 : i32
    %c0_i32_0 = arith.constant 0 : i32
    %c0_i32_1 = arith.constant 0 : i32
    return %c0_i32, %c0_i32_0 : i32, i32
  }
  func.func @transform_4(%arg0: i32) -> (i32, i32) {
    %c0_i32 = arith.constant 0 : i32
    %c0_i32_0 = arith.constant 0 : i32
    %c0_i32_1 = arith.constant 0 : i32
    return %c0_i32, %c0_i32_0 : i32, i32
  }
  func.func @transform_5(%arg0: i32) -> (i32, i32) {
    %c0_i32 = arith.constant 0 : i32
    %c0_i32_0 = arith.constant 0 : i32
    %c0_i32_1 = arith.constant 0 : i32
    return %c0_i32, %c0_i32_0 : i32, i32
  }
  func.func @transform_6(%arg0: i32) -> (i32, i32) {
    %c0_i32 = arith.constant 0 : i32
    %c0_i32_0 = arith.constant 0 : i32
    %c0_i32_1 = arith.constant 0 : i32
    return %c0_i32, %c0_i32_0 : i32, i32
  }
  func.func @transform_7(%arg0: i32) -> (i32, i32) {
    %c0_i32 = arith.constant 0 : i32
    %c0_i32_0 = arith.constant 0 : i32
    %c0_i32_1 = arith.constant 0 : i32
    return %c0_i32, %c0_i32_0 : i32, i32
  }
  func.func @transform_8(%arg0: i32) -> (i32, i32) {
    %c0_i32 = arith.constant 0 : i32
    %c0_i32_0 = arith.constant 0 : i32
    %c0_i32_1 = arith.constant 0 : i32
    return %c0_i32, %c0_i32_0 : i32, i32
  }
  func.func @transform_9(%arg0: i32) -> (i32, i32) {
    %c0_i32 = arith.constant 0 : i32
    %c0_i32_0 = arith.constant 0 : i32
    return %arg0, %c0_i32 : i32, i32
  }
}

</mosaic_0001>

<llo_original>
// kernel: tpu_custom_call.1
$region0: #{tpu_custom_call.1}
  #allocation0 [shape = 'u32[]', space=smem, size = 0x4, offset = 0x4, fixed_abs, tag = 'smem constant byte address 0x4 - core index']
  #allocation1 [shape = 'u32[144,128]{1,0:T(1,128)}', space=vmem, size = 0x12000, scoped, tag = 'internal scratch']
  #allocation2 [shape = 'f32[64,128]{1,0:T(8,128)}', space=vmem, size = 0x8000, scoped, tag = 'scratch operand']
  %s0 = inlined_call_operand.hbm [shape: f32[1,64,16], index: 0, kind: input, shape index: {}]
  %s1 = inlined_call_operand.hbm [shape: f32[16,512], index: 1, kind: input, shape index: {}]
  %s2 = inlined_call_operand.hbm [shape: f32[128,512], index: 2, kind: input, shape index: {}]
  %s3 = inlined_call_operand.hbm [shape: f32[1,512], index: 3, kind: input, shape index: {}]
  %s4 = inlined_call_operand.hbm [shape: f32[128,512], index: 4, kind: input, shape index: {}]
  %s5 = inlined_call_operand.hbm [shape: f32[128,512], index: 5, kind: input, shape index: {}]
  %s6 = inlined_call_operand.hbm [shape: f32[1,512], index: 6, kind: input, shape index: {}]
  %s7 = inlined_call_operand.hbm [shape: f32[128,128], index: 7, kind: input, shape index: {}]
  %s8 = inlined_call_operand.hbm [shape: f32[1,128], index: 8, kind: input, shape index: {}]
  %s9 = inlined_call_operand.hbm [shape: f32[8,128], index: 9, kind: output, shape index: {}]
  %s10 = sld [smem:[#allocation0]]
  $region82: #{tpu_custom_call.1} parent=0
    _
  %s12 = ssub.s32 1, %s10
  %s13 = scalar_select 0, %s12, %s10
  $region1: #{tpu_custom_call.1} parent=0
    #allocation3 [shape = 'u8[32768]{0}', space=vmem, size = 0x8000, scoped, tag = 'input window, operand 0, single buffered']
    #allocation4 [shape = 's32[1]{0}', space=sflag, size = 0x4, scoped, tag = 'scoped memory for tpu_custom_call.1']
    #allocation5 [shape = 's32[1]{0}', space=sflag, size = 0x4, scoped, tag = 'scoped memory for tpu_custom_call.1']
    #allocation6 [shape = 'u8[32768]{0}', space=vmem, size = 0x8000, scoped, tag = 'input window, operand 1, single buffered']
    #allocation7 [shape = 's32[1]{0}', space=sflag, size = 0x4, scoped, tag = 'scoped memory for tpu_custom_call.1']
    #allocation8 [shape = 'u8[262144]{0}', space=vmem, size = 0x40000, scoped, tag = 'input window, operand 2, single buffered']
    #allocation9 [shape = 'u8[2048]{0}', space=vmem, size = 0x800, scoped, tag = 'input window, operand 3, single buffered']
    #allocation10 [shape = 's32[1]{0}', space=sflag, size = 0x4, scoped, tag = 'scoped memory for tpu_custom_call.1']
    #allocation11 [shape = 'u8[262144]{0}', space=vmem, size = 0x40000, scoped, tag = 'input window, operand 4, single buffered']
    #allocation12 [shape = 'u8[262144]{0}', space=vmem, size = 0x40000, scoped, tag = 'input window, operand 5, single buffered']
    #allocation13 [shape = 's32[1]{0}', space=sflag, size = 0x4, scoped, tag = 'scoped memory for tpu_custom_call.1']
    #allocation14 [shape = 'u8[2048]{0}', space=vmem, size = 0x800, scoped, tag = 'input window, operand 6, single buffered']
    #allocation15 [shape = 'u8[65536]{0}', space=vmem, size = 0x10000, scoped, tag = 'input window, operand 7, single buffered']
    #allocation16 [shape = 's32[1]{0}', space=sflag, size = 0x4, scoped, tag = 'scoped memory for tpu_custom_call.1']
    #allocation17 [shape = 'u8[512]{0}', space=vmem, size = 0x400, scoped, tag = 'input window, operand 8, single buffered']
    #allocation18 [shape = 'u8[4096]{0}', space=vmem, size = 0x1000, scoped, tag = 'output window, operand 0, single buffered']
    %14 = vsyncpa [#allocation4], 0
    %15 = vsyncpa [#allocation7], 0
    %16 = vsyncpa [#allocation10], 0
    %17 = vsyncpa [#allocation13], 0
    %18 = vsyncpa [#allocation16], 0
    %19 = vsyncpa [#allocation5], 0
    // Predicated region
    $region2: #{tpu_custom_call.1} parent=1 // pred_check
      _
    $region3: #{tpu_custom_call.1} parent=1 // pred_check_branch
      %21 = sbr.rel (0) target = $region5
    $region4: #{tpu_custom_call.1} parent=1 // pred_region
      %s23 = ssub.s32 1024, 1024
      %24 = vsyncadd [#allocation4], %s23
      %s25 = sshll.u32 [#allocation3], 4
      %s26 = int_to_ptr.vmem [resolvable:$true] %s25
      %31 = dma.hbm_to_vmem [thread:$0]  %s0, 1024, %s26, [#allocation4], 128, 128, 8
    $region5: #{tpu_custom_call.1} parent=1 // pred_fallthru
      _
    // Predicated region
    $region6: #{tpu_custom_call.1} parent=1 // pred_check
      _
    $region7: #{tpu_custom_call.1} parent=1 // pred_check_branch
      %33 = sbr.rel (0) target = $region9
    $region8: #{tpu_custom_call.1} parent=1 // pred_region
      %s35 = ssub.s32 1024, 1024
      %36 = vsyncadd [#allocation7], %s35
      %s37 = sshll.u32 [#allocation6], 4
      %s38 = int_to_ptr.vmem [resolvable:$true] %s37
      %43 = dma.hbm_to_vmem [thread:$0]  %s1, 1024, %s38, [#allocation7], 512, 512, 32
    $region9: #{tpu_custom_call.1} parent=1 // pred_fallthru
      _
    // Predicated region
    $region10: #{tpu_custom_call.1} parent=1 // pred_check
      _
    $region11: #{tpu_custom_call.1} parent=1 // pred_check_branch
      %45 = sbr.rel (0) target = $region13
    $region12: #{tpu_custom_call.1} parent=1 // pred_region
      %s47 = ssub.s32 8192, 8192
      %48 = vsyncadd [#allocation7], %s47
      %s49 = sshll.u32 [#allocation8], 4
      %s50 = int_to_ptr.vmem [resolvable:$true] %s49
      %55 = dma.hbm_to_vmem [thread:$0]  %s2, 8192, %s50, [#allocation7], 512, 512, 32
    $region13: #{tpu_custom_call.1} parent=1 // pred_fallthru
      _
    // Predicated region
    $region14: #{tpu_custom_call.1} parent=1 // pred_check
      _
    $region15: #{tpu_custom_call.1} parent=1 // pred_check_branch
      %57 = sbr.rel (0) target = $region17
    $region16: #{tpu_custom_call.1} parent=1 // pred_region
      %s59 = ssub.s32 64, 64
      %60 = vsyncadd [#allocation10], %s59
      %s62 = sshll.u32 [#allocation9], 4
      %s63 = int_to_ptr.vmem [resolvable:$true] %s62
      %65 = dma.hbm_to_vmem [thread:$0]  %s3, 64, %s63, [#allocation10]
    $region17: #{tpu_custom_call.1} parent=1 // pred_fallthru
      _
    // Predicated region
    $region18: #{tpu_custom_call.1} parent=1 // pred_check
      _
    $region19: #{tpu_custom_call.1} parent=1 // pred_check_branch
      %67 = sbr.rel (0) target = $region21
    $region20: #{tpu_custom_call.1} parent=1 // pred_region
      %s69 = ssub.s32 8192, 8192
      %70 = vsyncadd [#allocation10], %s69
      %s71 = sshll.u32 [#allocation11], 4
      %s72 = int_to_ptr.vmem [resolvable:$true] %s71
      %77 = dma.hbm_to_vmem [thread:$0]  %s4, 8192, %s72, [#allocation10], 512, 512, 32
    $region21: #{tpu_custom_call.1} parent=1 // pred_fallthru
      _
    // Predicated region
    $region22: #{tpu_custom_call.1} parent=1 // pred_check
      _
    $region23: #{tpu_custom_call.1} parent=1 // pred_check_branch
      %79 = sbr.rel (0) target = $region25
    $region24: #{tpu_custom_call.1} parent=1 // pred_region
      %s81 = ssub.s32 8192, 8192
      %82 = vsyncadd [#allocation13], %s81
      %s83 = sshll.u32 [#allocation12], 4
      %s84 = int_to_ptr.vmem [resolvable:$true] %s83
      %89 = dma.hbm_to_vmem [thread:$0]  %s5, 8192, %s84, [#allocation13], 512, 512, 32
    $region25: #{tpu_custom_call.1} parent=1 // pred_fallthru
      _
    // Predicated region
    $region26: #{tpu_custom_call.1} parent=1 // pred_check
      _
    $region27: #{tpu_custom_call.1} parent=1 // pred_check_branch
      %91 = sbr.rel (0) target = $region29
    $region28: #{tpu_custom_call.1} parent=1 // pred_region
      %s93 = ssub.s32 64, 64
      %94 = vsyncadd [#allocation13], %s93
      %s96 = sshll.u32 [#allocation14], 4
      %s97 = int_to_ptr.vmem [resolvable:$true] %s96
      %99 = dma.hbm_to_vmem [thread:$0]  %s6, 64, %s97, [#allocation13]
    $region29: #{tpu_custom_call.1} parent=1 // pred_fallthru
      _
    // Predicated region
    $region30: #{tpu_custom_call.1} parent=1 // pred_check
      _
    $region31: #{tpu_custom_call.1} parent=1 // pred_check_branch
      %101 = sbr.rel (0) target = $region33
    $region32: #{tpu_custom_call.1} parent=1 // pred_region
      %s103 = ssub.s32 2048, 2048
      %104 = vsyncadd [#allocation16], %s103
      %s105 = sshll.u32 [#allocation15], 4
      %s106 = int_to_ptr.vmem [resolvable:$true] %s105
      %111 = dma.hbm_to_vmem [thread:$0]  %s7, 2048, %s106, [#allocation16], 128, 128, 8
    $region33: #{tpu_custom_call.1} parent=1 // pred_fallthru
      _
    // Predicated region
    $region34: #{tpu_custom_call.1} parent=1 // pred_check
      _
    $region35: #{tpu_custom_call.1} parent=1 // pred_check_branch
      %113 = sbr.rel (0) target = $region37
    $region36: #{tpu_custom_call.1} parent=1 // pred_region
      %s115 = ssub.s32 16, 16
      %116 = vsyncadd [#allocation16], %s115
      %s118 = sshll.u32 [#allocation17], 4
      %s119 = int_to_ptr.vmem [resolvable:$true] %s118
      %121 = dma.hbm_to_vmem [thread:$0]  %s8, 16, %s119, [#allocation16]
    $region37: #{tpu_custom_call.1} parent=1 // pred_fallthru
      _
    // Predicated region
    $region38: #{tpu_custom_call.1} parent=1 // pred_check
      _
    $region39: #{tpu_custom_call.1} parent=1 // pred_check_branch
      %123 = sbr.rel (0) target = $region41
    $region40: #{tpu_custom_call.1} parent=1 // pred_region
      %124 = dma.done [#allocation4], 1024
    $region41: #{tpu_custom_call.1} parent=1 // pred_fallthru
      _
    // Predicated region
    $region42: #{tpu_custom_call.1} parent=1 // pred_check
      _
    $region43: #{tpu_custom_call.1} parent=1 // pred_check_branch
      %126 = sbr.rel (0) target = $region45
    $region44: #{tpu_custom_call.1} parent=1 // pred_region
      %127 = dma.done [#allocation7], 1024
    $region45: #{tpu_custom_call.1} parent=1 // pred_fallthru
      _
    // Predicated region
    $region46: #{tpu_custom_call.1} parent=1 // pred_check
      _
    $region47: #{tpu_custom_call.1} parent=1 // pred_check_branch
      %129 = sbr.rel (0) target = $region49
    $region48: #{tpu_custom_call.1} parent=1 // pred_region
      %130 = dma.done [#allocation7], 8192
    $region49: #{tpu_custom_call.1} parent=1 // pred_fallthru
      _
    // Predicated region
    $region50: #{tpu_custom_call.1} parent=1 // pred_check
      _
    $region51: #{tpu_custom_call.1} parent=1 // pred_check_branch
      %132 = sbr.rel (0) target = $region53
    $region52: #{tpu_custom_call.1} parent=1 // pred_region
      %133 = dma.done [#allocation10], 64
    $region53: #{tpu_custom_call.1} parent=1 // pred_fallthru
      _
    // Predicated region
    $region54: #{tpu_custom_call.1} parent=1 // pred_check
      _
    $region55: #{tpu_custom_call.1} parent=1 // pred_check_branch
      %135 = sbr.rel (0) target = $region57
    $region56: #{tpu_custom_call.1} parent=1 // pred_region
      %136 = dma.done [#allocation10], 8192
    $region57: #{tpu_custom_call.1} parent=1 // pred_fallthru
      _
    // Predicated region
    $region58: #{tpu_custom_call.1} parent=1 // pred_check
      _
    $region59: #{tpu_custom_call.1} parent=1 // pred_check_branch
      %138 = sbr.rel (0) target = $region61
    $region60: #{tpu_custom_call.1} parent=1 // pred_region
      %139 = dma.done [#allocation13], 8192
    $region61: #{tpu_custom_call.1} parent=1 // pred_fallthru
      _
    // Predicated region
    $region62: #{tpu_custom_call.1} parent=1 // pred_check
      _
    $region63: #{tpu_custom_call.1} parent=1 // pred_check_branch
      %141 = sbr.rel (0) target = $region65
    $region64: #{tpu_custom_call.1} parent=1 // pred_region
      %142 = dma.done [#allocation13], 64
    $region65: #{tpu_custom_call.1} parent=1 // pred_fallthru
      _
    // Predicated region
    $region66: #{tpu_custom_call.1} parent=1 // pred_check
      _
    $region67: #{tpu_custom_call.1} parent=1 // pred_check_branch
      %144 = sbr.rel (0) target = $region69
    $region68: #{tpu_custom_call.1} parent=1 // pred_region
      %145 = dma.done [#allocation16], 2048
    $region69: #{tpu_custom_call.1} parent=1 // pred_fallthru
      _
    // Predicated region
    $region70: #{tpu_custom_call.1} parent=1 // pred_check
      _
    $region71: #{tpu_custom_call.1} parent=1 // pred_check_branch
      %147 = sbr.rel (0) target = $region73
    $region72: #{tpu_custom_call.1} parent=1 // pred_region
      %148 = dma.done [#allocation16], 16
    $region73: #{tpu_custom_call.1} parent=1 // pred_fallthru
      _
    %v149 = vlaneseq
    %v150 = vand.u32 %v149, 127
    %v151 = vadd.s32 %v150, 128
    %v152 = vadd.s32 %v150, 256
    %v153 = vadd.s32 %v150, 384
    %vm154 = vcmp.lt.s32.totalorder %v150, 64
    %vm155 = vcmp.lt.s32.totalorder %v151, 64
    %vm156 = vcmp.lt.s32.totalorder %v152, 64
    %vm157 = vcmp.lt.s32.totalorder %v153, 64
    %vm158 = vcmp.ge.s32.totalorder %v150, 128
    %vm159 = vcmp.ge.s32.totalorder %v151, 128
    %vm160 = vcmp.ge.s32.totalorder %v152, 128
    %vm161 = vcmp.ge.s32.totalorder %v153, 128
    %vm162 = vcmp.lt.s32.totalorder %v150, 192
    %vm163 = vcmp.lt.s32.totalorder %v151, 192
    %vm164 = vcmp.lt.s32.totalorder %v152, 192
    %vm165 = vcmp.lt.s32.totalorder %v153, 192
    %vm166 = vmand %vm158, %vm162
    %vm167 = vmand %vm159, %vm163
    %vm168 = vmand %vm160, %vm164
    %vm169 = vmand %vm161, %vm165
    %vm170 = vmor %vm154, %vm166
    %vm171 = vmor %vm155, %vm167
    %vm172 = vmor %vm156, %vm168
    %vm173 = vmor %vm157, %vm169
    %vm174 = vcmp.ge.s32.totalorder %v150, 256
    %vm175 = vcmp.ge.s32.totalorder %v151, 256
    %vm176 = vcmp.ge.s32.totalorder %v152, 256
    %vm177 = vcmp.ge.s32.totalorder %v153, 256
    %vm178 = vcmp.lt.s32.totalorder %v150, 320
    %vm179 = vcmp.lt.s32.totalorder %v151, 320
    %vm180 = vcmp.lt.s32.totalorder %v152, 320
    %vm181 = vcmp.lt.s32.totalorder %v153, 320
    %vm182 = vmand %vm174, %vm178
    %vm183 = vmand %vm175, %vm179
    %vm184 = vmand %vm176, %vm180
    %vm185 = vmand %vm177, %vm181
    %vm186 = vmor %vm170, %vm182
    %vm187 = vmor %vm171, %vm183
    %vm188 = vmor %vm172, %vm184
    %vm189 = vmor %vm173, %vm185
    %vm190 = vcmp.ge.s32.totalorder %v150, 384
    %vm191 = vcmp.ge.s32.totalorder %v151, 384
    %vm192 = vcmp.ge.s32.totalorder %v152, 384
    %vm193 = vcmp.ge.s32.totalorder %v153, 384
    %vm194 = vcmp.lt.s32.totalorder %v150, 448
    %vm195 = vcmp.lt.s32.totalorder %v151, 448
    %vm196 = vcmp.lt.s32.totalorder %v152, 448
    %vm197 = vcmp.lt.s32.totalorder %v153, 448
    %vm198 = vmand %vm190, %vm194
    %vm199 = vmand %vm191, %vm195
    %vm200 = vmand %vm192, %vm196
    %vm201 = vmand %vm193, %vm197
    %vm202 = vmor %vm186, %vm198
    %vm203 = vmor %vm187, %vm199
    %vm204 = vmor %vm188, %vm200
    %vm205 = vmor %vm189, %vm201
    %vm206 = vcmp.lt.s32.totalorder %v150, 384
    %vm207 = vcmp.lt.s32.totalorder %v151, 384
    %vm208 = vcmp.lt.s32.totalorder %v152, 384
    %vm209 = vcmp.lt.s32.totalorder %v153, 384
    %vm210 = vmand %vm174, %vm206
    %vm211 = vmand %vm175, %vm207
    %vm212 = vmand %vm176, %vm208
    %vm213 = vmand %vm177, %vm209
    %v214 = vsel %vm210, 1.0, 0.5
    %v215 = vsel %vm211, 1.0, 0.5
    %v216 = vsel %vm212, 1.0, 0.5
    %v217 = vsel %vm213, 1.0, 0.5
    %v218 = vsel %vm210, 0.0, 0.5
    %v219 = vsel %vm211, 0.0, 0.5
    %v220 = vsel %vm212, 0.0, 0.5
    %v221 = vsel %vm213, 0.0, 0.5
    %v222 = vld [vmem:[#allocation3] sm:$0xff]
    %v223 = vld [vmem:[#allocation3 + $0x8] sm:$0xff]
    %v224 = vld [vmem:[#allocation3 + $0x10] sm:$0xff]
    %v225 = vld [vmem:[#allocation3 + $0x18] sm:$0xff]
    %v226 = vld [vmem:[#allocation3 + $0x20] sm:$0xff]
    %v227 = vld [vmem:[#allocation3 + $0x28] sm:$0xff]
    %v228 = vld [vmem:[#allocation3 + $0x30] sm:$0xff]
    %v229 = vld [vmem:[#allocation3 + $0x38] sm:$0xff]
    %v230 = vld [vmem:[#allocation6] sm:$0xff]
    %v231 = vld [vmem:[#allocation6 + $0x8] sm:$0xff]
    %v232 = vld [vmem:[#allocation6 + $0x10] sm:$0xff]
    %v233 = vld [vmem:[#allocation6 + $0x18] sm:$0xff]
    %v234 = vld [vmem:[#allocation6 + $0x20] sm:$0xff]
    %v235 = vld [vmem:[#allocation6 + $0x28] sm:$0xff]
    %v236 = vld [vmem:[#allocation6 + $0x30] sm:$0xff]
    %v237 = vld [vmem:[#allocation6 + $0x38] sm:$0xff]
    %v238 = vld [vmem:[#allocation9] sm:$0xf]
    %v240 = vlaneseq
    %v241 = vshrl.u32 %v240, 7
    %v242 = vsub.s32 0, %v241
    %v243 = vrot.slane %v238, %v242
    %v244 = vlaneseq
    %v245 = vshrl.u32 %v244, 7
    %v246 = vsub.s32 1, %v245
    %v247 = vrot.slane %v238, %v246
    %v248 = vlaneseq
    %v249 = vshrl.u32 %v248, 7
    %v250 = vsub.s32 2, %v249
    %v251 = vrot.slane %v238, %v250
    %v252 = vlaneseq
    %v253 = vshrl.u32 %v252, 7
    %v254 = vsub.s32 3, %v253
    %v255 = vrot.slane %v238, %v254
    %vm260 = vcmask 130048
    %v262 = vsel %vm260, %v222, 0
    %v265 = vsel %vm260, %v223, 0
    %v268 = vsel %vm260, %v224, 0
    %v271 = vsel %vm260, %v225, 0
    %v274 = vsel %vm260, %v226, 0
    %v277 = vsel %vm260, %v227, 0
    %v280 = vsel %vm260, %v228, 0
    %v283 = vsel %vm260, %v229, 0
    %285 = vmatprep.subr.mxu0 %v231
    %286 = vmatpush1.msra.mxu0 %v230
    %287 = vmatprep.subr.mxu0 %v235
    %288 = vmatpush1.msra.mxu0 %v234
    %289 = vmatprep.subr.mxu0 0.0
    %290 = vmatpush1.msra.mxu0 0.0
    %291 = vmatprep.subr.mxu0 0.0
    %292 = vmatpush1.msra.mxu0 0.0
    %293 = vmatprep.subr.mxu0 0.0
    %294 = vmatpush1.msra.mxu0 0.0
    %295 = vmatprep.subr.mxu0 0.0
    %296 = vmatpush1.msra.mxu0 0.0
    %297 = vmatprep.subr.mxu0 0.0
    %298 = vmatpush1.msra.mxu0 0.0
    %299 = vmatprep.subr.mxu0 0.0
    %300 = vmatpush1.msra.mxu0 0.0
    %301 = vmatprep.subr.mxu0 0.0
    %302 = vmatpush1.msra.mxu0 0.0
    %303 = vmatprep.subr.mxu0 0.0
    %304 = vmatpush1.msra.mxu0 0.0
    %305 = vmatprep.subr.mxu0 0.0
    %306 = vmatpush1.msra.mxu0 0.0
    %307 = vmatprep.subr.mxu0 0.0
    %308 = vmatpush1.msra.mxu0 0.0
    %309 = vmatprep.subr.mxu0 0.0
    %310 = vmatpush1.msra.mxu0 0.0
    %311 = vmatprep.subr.mxu0 0.0
    %312 = vmatpush1.msra.mxu0 0.0
    %313 = vmatprep.subr.mxu0 0.0
    %314 = vmatpush1.msra.mxu0 0.0
    %315 = vmatprep.subr.mxu0 0.0
    %316 = vmatpush1.msra.mxu0 0.0
    %317 = vmatprep.subr.mxu0 0.0
    %318 = vmatpush1.msra.mxu0 0.0
    %319 = vmatprep.subr.mxu0 0.0
    %320 = vmatpush1.msra.mxu0 0.0
    %321 = vmatprep.subr.mxu0 0.0
    %322 = vmatpush1.msra.mxu0 0.0
    %323 = vmatprep.subr.mxu0 0.0
    %324 = vmatpush1.msra.mxu0 0.0
    %325 = vmatprep.subr.mxu0 0.0
    %326 = vmatpush1.msra.mxu0 0.0
    %327 = vmatprep.subr.mxu0 0.0
    %328 = vmatpush1.msra.mxu0 0.0
    %329 = vmatprep.subr.mxu0 0.0
    %330 = vmatpush1.msra.mxu0 0.0
    %331 = vmatprep.subr.mxu0 0.0
    %332 = vmatpush1.msra.mxu0 0.0
    %333 = vmatprep.subr.mxu0 0.0
    %334 = vmatpush1.msra.mxu0 0.0
    %335 = vmatprep.subr.mxu0 0.0
    %336 = vmatpush1.msra.mxu0 0.0
    %337 = vmatprep.subr.mxu0 0.0
    %338 = vmatpush1.msra.mxu0 0.0
    %339 = vmatprep.subr.mxu0 0.0
    %340 = vmatpush1.msra.mxu0 0.0
    %341 = vmatprep.subr.mxu0 0.0
    %342 = vmatpush1.msra.mxu0 0.0
    %343 = vmatprep.subr.mxu0 0.0
    %344 = vmatpush1.msra.mxu0 0.0
    %345 = vmatprep.subr.mxu0 0.0
    %346 = vmatpush1.msra.mxu0 0.0
    %347 = vmatprep.subr.mxu0 0.0
    %348 = vmatpush1.msra.mxu0 0.0
    %349 = vmatprep.mubr.f32.mxu0 0.0
    %350 = vmatmul.mubr.f32.gmra.mrb[0].mxu0 %v262
    %v351 = vpop.f32.mrb[0].mxu0
    %v352 = vadd.f32 %v243, %v351
    %v353 = vpop.f32.mrb[0].mxu0
    %v354 = vadd.f32 %v247, %v353
    %355 = vmatprep.mubr.f32.mxu0 0.0
    %356 = vmatmul.mubr.f32.gmra.mrb[0].mxu0 %v265
    %v357 = vpop.f32.mrb[0].mxu0
    %v358 = vadd.f32 %v243, %v357
    %v359 = vpop.f32.mrb[0].mxu0
    %v360 = vadd.f32 %v247, %v359
    %361 = vmatprep.mubr.f32.mxu0 0.0
    %362 = vmatmul.mubr.f32.gmra.mrb[0].mxu0 %v268
    %v363 = vpop.f32.mrb[0].mxu0
    %v364 = vadd.f32 %v243, %v363
    %v365 = vpop.f32.mrb[0].mxu0
    %v366 = vadd.f32 %v247, %v365
    %367 = vmatprep.mubr.f32.mxu0 0.0
    %368 = vmatmul.mubr.f32.gmra.mrb[0].mxu0 %v271
    %v369 = vpop.f32.mrb[0].mxu0
    %v370 = vadd.f32 %v243, %v369
    %v371 = vpop.f32.mrb[0].mxu0
    %v372 = vadd.f32 %v247, %v371
    %373 = vmatprep.mubr.f32.mxu0 0.0
    %374 = vmatmul.mubr.f32.gmra.mrb[0].mxu0 %v274
    %v375 = vpop.f32.mrb[0].mxu0
    %v376 = vadd.f32 %v243, %v375
    %v377 = vpop.f32.mrb[0].mxu0
    %v378 = vadd.f32 %v247, %v377
    %379 = vmatprep.mubr.f32.mxu0 0.0
    %380 = vmatmul.mubr.f32.gmra.mrb[0].mxu0 %v277
    %v381 = vpop.f32.mrb[0].mxu0
    %v382 = vadd.f32 %v243, %v381
    %v383 = vpop.f32.mrb[0].mxu0
    %v384 = vadd.f32 %v247, %v383
    %385 = vmatprep.mubr.f32.mxu0 0.0
    %386 = vmatmul.mubr.f32.gmra.mrb[0].mxu0 %v280
    %v387 = vpop.f32.mrb[0].mxu0
    %v388 = vadd.f32 %v243, %v387
    %v389 = vpop.f32.mrb[0].mxu0
    %v390 = vadd.f32 %v247, %v389
    %391 = vmatprep.mubr.f32.mxu0 0.0
    %392 = vmatmul.mubr.f32.gmra.mrb[0].mxu0 %v283
    %v393 = vpop.f32.mrb[0].mxu0
    %v394 = vadd.f32 %v243, %v393
    %v395 = vpop.f32.mrb[0].mxu0
    %v396 = vadd.f32 %v247, %v395
    %397 = vdwg.mxu0
    %398 = vmatprep.subr.mxu0 %v233
    %399 = vmatpush1.msra.mxu0 %v232
    %400 = vmatprep.subr.mxu0 %v237
    %401 = vmatpush1.msra.mxu0 %v236
    %402 = vmatprep.subr.mxu0 0.0
    %403 = vmatpush1.msra.mxu0 0.0
    %404 = vmatprep.subr.mxu0 0.0
    %405 = vmatpush1.msra.mxu0 0.0
    %406 = vmatprep.subr.mxu0 0.0
    %407 = vmatpush1.msra.mxu0 0.0
    %408 = vmatprep.subr.mxu0 0.0
    %409 = vmatpush1.msra.mxu0 0.0
    %410 = vmatprep.subr.mxu0 0.0
    %411 = vmatpush1.msra.mxu0 0.0
    %412 = vmatprep.subr.mxu0 0.0
    %413 = vmatpush1.msra.mxu0 0.0
    %414 = vmatprep.subr.mxu0 0.0
    %415 = vmatpush1.msra.mxu0 0.0
    %416 = vmatprep.subr.mxu0 0.0
    %417 = vmatpush1.msra.mxu0 0.0
    %418 = vmatprep.subr.mxu0 0.0
    %419 = vmatpush1.msra.mxu0 0.0
    %420 = vmatprep.subr.mxu0 0.0
    %421 = vmatpush1.msra.mxu0 0.0
    %422 = vmatprep.subr.mxu0 0.0
    %423 = vmatpush1.msra.mxu0 0.0
    %424 = vmatprep.subr.mxu0 0.0
    %425 = vmatpush1.msra.mxu0 0.0
    %426 = vmatprep.subr.mxu0 0.0
    %427 = vmatpush1.msra.mxu0 0.0
    %428 = vmatprep.subr.mxu0 0.0
    %429 = vmatpush1.msra.mxu0 0.0
    %430 = vmatprep.subr.mxu0 0.0
    %431 = vmatpush1.msra.mxu0 0.0
    %432 = vmatprep.subr.mxu0 0.0
    %433 = vmatpush1.msra.mxu0 0.0
    %434 = vmatprep.subr.mxu0 0.0
    %435 = vmatpush1.msra.mxu0 0.0
    %436 = vmatprep.subr.mxu0 0.0
    %437 = vmatpush1.msra.mxu0 0.0
    %438 = vmatprep.subr.mxu0 0.0
    %439 = vmatpush1.msra.mxu0 0.0
    %440 = vmatprep.subr.mxu0 0.0
    %441 = vmatpush1.msra.mxu0 0.0
    %442 = vmatprep.subr.mxu0 0.0
    %443 = vmatpush1.msra.mxu0 0.0
    %444 = vmatprep.subr.mxu0 0.0
    %445 = vmatpush1.msra.mxu0 0.0
    %446 = vmatprep.subr.mxu0 0.0
    %447 = vmatpush1.msra.mxu0 0.0
    %448 = vmatprep.subr.mxu0 0.0
    %449 = vmatpush1.msra.mxu0 0.0
    %450 = vmatprep.subr.mxu0 0.0
    %451 = vmatpush1.msra.mxu0 0.0
    %452 = vmatprep.subr.mxu0 0.0
    %453 = vmatpush1.msra.mxu0 0.0
    %454 = vmatprep.subr.mxu0 0.0
    %455 = vmatpush1.msra.mxu0 0.0
    %456 = vmatprep.subr.mxu0 0.0
    %457 = vmatpush1.msra.mxu0 0.0
    %458 = vmatprep.subr.mxu0 0.0
    %459 = vmatpush1.msra.mxu0 0.0
    %460 = vmatprep.subr.mxu0 0.0
    %461 = vmatpush1.msra.mxu0 0.0
    %462 = vmatprep.mubr.f32.mxu0 0.0
    %463 = vmatmul.mubr.f32.gmra.mrb[0].mxu0 %v262
    %v464 = vpop.f32.mrb[0].mxu0
    %v465 = vadd.f32 %v251, %v464
    %v466 = vpop.f32.mrb[0].mxu0
    %v467 = vadd.f32 %v255, %v466
    %468 = vmatprep.mubr.f32.mxu0 0.0
    %469 = vmatmul.mubr.f32.gmra.mrb[0].mxu0 %v265
    %v470 = vpop.f32.mrb[0].mxu0
    %v471 = vadd.f32 %v251, %v470
    %v472 = vpop.f32.mrb[0].mxu0
    %v473 = vadd.f32 %v255, %v472
    %474 = vmatprep.mubr.f32.mxu0 0.0
    %475 = vmatmul.mubr.f32.gmra.mrb[0].mxu0 %v268
    %v476 = vpop.f32.mrb[0].mxu0
    %v477 = vadd.f32 %v251, %v476
    %v478 = vpop.f32.mrb[0].mxu0
    %v479 = vadd.f32 %v255, %v478
    %480 = vmatprep.mubr.f32.mxu0 0.0
    %481 = vmatmul.mubr.f32.gmra.mrb[0].mxu0 %v271
    %v482 = vpop.f32.mrb[0].mxu0
    %v483 = vadd.f32 %v251, %v482
    %v484 = vpop.f32.mrb[0].mxu0
    %v485 = vadd.f32 %v255, %v484
    %486 = vmatprep.mubr.f32.mxu0 0.0
    %487 = vmatmul.mubr.f32.gmra.mrb[0].mxu0 %v274
    %v488 = vpop.f32.mrb[0].mxu0
    %v489 = vadd.f32 %v251, %v488
    %v490 = vpop.f32.mrb[0].mxu0
    %v491 = vadd.f32 %v255, %v490
    %492 = vmatprep.mubr.f32.mxu0 0.0
    %493 = vmatmul.mubr.f32.gmra.mrb[0].mxu0 %v277
    %v494 = vpop.f32.mrb[0].mxu0
    %v495 = vadd.f32 %v251, %v494
    %v496 = vpop.f32.mrb[0].mxu0
    %v497 = vadd.f32 %v255, %v496
    %498 = vmatprep.mubr.f32.mxu0 0.0
    %499 = vmatmul.mubr.f32.gmra.mrb[0].mxu0 %v280
    %v500 = vpop.f32.mrb[0].mxu0
    %v501 = vadd.f32 %v251, %v500
    %v502 = vpop.f32.mrb[0].mxu0
    %v503 = vadd.f32 %v255, %v502
    %504 = vmatprep.mubr.f32.mxu0 0.0
    %505 = vmatmul.mubr.f32.gmra.mrb[0].mxu0 %v283
    %v506 = vpop.f32.mrb[0].mxu0
    %v507 = vadd.f32 %v251, %v506
    %v508 = vpop.f32.mrb[0].mxu0
    %v509 = vadd.f32 %v255, %v508
    %510 = vdwg.mxu0
    %v511 = vsel %vm202, %v352, %v394
    %v512 = vsel %vm203, %v354, %v396
    %v513 = vsel %vm204, %v465, %v507
    %v514 = vsel %vm205, %v467, %v509
    %v515 = vsel %vm202, %v358, %v388
    %v516 = vsel %vm203, %v360, %v390
    %v517 = vsel %vm204, %v471, %v501
    %v518 = vsel %vm205, %v473, %v503
    %v519 = vsel %vm202, %v364, %v382
    %v520 = vsel %vm203, %v366, %v384
    %v521 = vsel %vm204, %v477, %v495
    %v522 = vsel %vm205, %v479, %v497
    %v523 = vsel %vm202, %v370, %v376
    %v524 = vsel %vm203, %v372, %v378
    %v525 = vsel %vm204, %v483, %v489
    %v526 = vsel %vm205, %v485, %v491
    %v527 = vsel %vm202, %v376, %v370
    %v528 = vsel %vm203, %v378, %v372
    %v529 = vsel %vm204, %v489, %v483
    %v530 = vsel %vm205, %v491, %v485
    %v531 = vsel %vm202, %v382, %v364
    %v532 = vsel %vm203, %v384, %v366
    %v533 = vsel %vm204, %v495, %v477
    %v534 = vsel %vm205, %v497, %v479
    %v535 = vsel %vm202, %v388, %v358
    %v536 = vsel %vm203, %v390, %v360
    %v537 = vsel %vm204, %v501, %v471
    %v538 = vsel %vm205, %v503, %v473
    %v539 = vsel %vm202, %v394, %v352
    %v540 = vsel %vm203, %v396, %v354
    %v541 = vsel %vm204, %v507, %v465
    %v542 = vsel %vm205, %v509, %v467
    %v543 = vld [vmem:[#allocation8] sm:$0xff]
    %v544 = vld [vmem:[#allocation8 + $0x8] sm:$0xff]
    %v545 = vld [vmem:[#allocation8 + $0x10] sm:$0xff]
    %v546 = vld [vmem:[#allocation8 + $0x18] sm:$0xff]
    %v547 = vld [vmem:[#allocation8 + $0x20] sm:$0xff]
    %v548 = vld [vmem:[#allocation8 + $0x28] sm:$0xff]
    %v549 = vld [vmem:[#allocation8 + $0x30] sm:$0xff]
    %v550 = vld [vmem:[#allocation8 + $0x38] sm:$0xff]
    %v551 = vld [vmem:[#allocation8 + $0x40] sm:$0xff]
    %v552 = vld [vmem:[#allocation8 + $0x48] sm:$0xff]
    %v553 = vld [vmem:[#allocation8 + $0x50] sm:$0xff]
    %v554 = vld [vmem:[#allocation8 + $0x58] sm:$0xff]
    %v555 = vld [vmem:[#allocation8 + $0x60] sm:$0xff]
    %v556 = vld [vmem:[#allocation8 + $0x68] sm:$0xff]
    %v557 = vld [vmem:[#allocation8 + $0x70] sm:$0xff]
    %v558 = vld [vmem:[#allocation8 + $0x78] sm:$0xff]
    %v559 = vld [vmem:[#allocation8 + $0x80] sm:$0xff]
    %v560 = vld [vmem:[#allocation8 + $0x88] sm:$0xff]
    %v561 = vld [vmem:[#allocation8 + $0x90] sm:$0xff]
    %v562 = vld [vmem:[#allocation8 + $0x98] sm:$0xff]
    %v563 = vld [vmem:[#allocation8 + $0xa0] sm:$0xff]
    %v564 = vld [vmem:[#allocation8 + $0xa8] sm:$0xff]
    %v565 = vld [vmem:[#allocation8 + $0xb0] sm:$0xff]
    %v566 = vld [vmem:[#allocation8 + $0xb8] sm:$0xff]
    %v567 = vld [vmem:[#allocation8 + $0xc0] sm:$0xff]
    %v568 = vld [vmem:[#allocation8 + $0xc8] sm:$0xff]
    %v569 = vld [vmem:[#allocation8 + $0xd0] sm:$0xff]
    %v570 = vld [vmem:[#allocation8 + $0xd8] sm:$0xff]
    %v571 = vld [vmem:[#allocation8 + $0xe0] sm:$0xff]
    %v572 = vld [vmem:[#allocation8 + $0xe8] sm:$0xff]
    %v573 = vld [vmem:[#allocation8 + $0xf0] sm:$0xff]
    %v574 = vld [vmem:[#allocation8 + $0xf8] sm:$0xff]
    %v575 = vld [vmem:[#allocation8 + $0x100] sm:$0xff]
    %v576 = vld [vmem:[#allocation8 + $0x108] sm:$0xff]
    %v577 = vld [vmem:[#allocation8 + $0x110] sm:$0xff]
    %v578 = vld [vmem:[#allocation8 + $0x118] sm:$0xff]
    %v579 = vld [vmem:[#allocation8 + $0x120] sm:$0xff]
    %v580 = vld [vmem:[#allocation8 + $0x128] sm:$0xff]
    %v581 = vld [vmem:[#allocation8 + $0x130] sm:$0xff]
    %v582 = vld [vmem:[#allocation8 + $0x138] sm:$0xff]
    %v583 = vld [vmem:[#allocation8 + $0x140] sm:$0xff]
    %v584 = vld [vmem:[#allocation8 + $0x148] sm:$0xff]
    %v585 = vld [vmem:[#allocation8 + $0x150] sm:$0xff]
    %v586 = vld [vmem:[#allocation8 + $0x158] sm:$0xff]
    %v587 = vld [vmem:[#allocation8 + $0x160] sm:$0xff]
    %v588 = vld [vmem:[#allocation8 + $0x168] sm:$0xff]
    %v589 = vld [vmem:[#allocation8 + $0x170] sm:$0xff]
    %v590 = vld [vmem:[#allocation8 + $0x178] sm:$0xff]
    %v591 = vld [vmem:[#allocation8 + $0x180] sm:$0xff]
    %v592 = vld [vmem:[#allocation8 + $0x188] sm:$0xff]
    %v593 = vld [vmem:[#allocation8 + $0x190] sm:$0xff]
    %v594 = vld [vmem:[#allocation8 + $0x198] sm:$0xff]
    %v595 = vld [vmem:[#allocation8 + $0x1a0] sm:$0xff]
    %v596 = vld [vmem:[#allocation8 + $0x1a8] sm:$0xff]
    %v597 = vld [vmem:[#allocation8 + $0x1b0] sm:$0xff]
    %v598 = vld [vmem:[#allocation8 + $0x1b8] sm:$0xff]
    %v599 = vld [vmem:[#allocation8 + $0x1c0] sm:$0xff]
    %v600 = vld [vmem:[#allocation8 + $0x1c8] sm:$0xff]
    %v601 = vld [vmem:[#allocation8 + $0x1d0] sm:$0xff]
    %v602 = vld [vmem:[#allocation8 + $0x1d8] sm:$0xff]
    %v603 = vld [vmem:[#allocation8 + $0x1e0] sm:$0xff]
    %v604 = vld [vmem:[#allocation8 + $0x1e8] sm:$0xff]
    %v605 = vld [vmem:[#allocation8 + $0x1f0] sm:$0xff]
    %v606 = vld [vmem:[#allocation8 + $0x1f8] sm:$0xff]
    %607 = vmatprep.subr.mxu0 %v544
    %608 = vmatpush1.msra.mxu0 %v543
    %609 = vmatprep.subr.mxu0 %v548
    %610 = vmatpush1.msra.mxu0 %v547
    %611 = vmatprep.subr.mxu0 %v552
    %612 = vmatpush1.msra.mxu0 %v551
    %613 = vmatprep.subr.mxu0 %v556
    %614 = vmatpush1.msra.mxu0 %v555
    %615 = vmatprep.subr.mxu0 %v560
    %616 = vmatpush1.msra.mxu0 %v559
    %617 = vmatprep.subr.mxu0 %v564
    %618 = vmatpush1.msra.mxu0 %v563
    %619 = vmatprep.subr.mxu0 %v568
    %620 = vmatpush1.msra.mxu0 %v567
    %621 = vmatprep.subr.mxu0 %v572
    %622 = vmatpush1.msra.mxu0 %v571
    %623 = vmatprep.subr.mxu0 %v576
    %624 = vmatpush1.msra.mxu0 %v575
    %625 = vmatprep.subr.mxu0 %v580
    %626 = vmatpush1.msra.mxu0 %v579
    %627 = vmatprep.subr.mxu0 %v584
    %628 = vmatpush1.msra.mxu0 %v583
    %629 = vmatprep.subr.mxu0 %v588
    %630 = vmatpush1.msra.mxu0 %v587
    %631 = vmatprep.subr.mxu0 %v592
    %632 = vmatpush1.msra.mxu0 %v591
    %633 = vmatprep.subr.mxu0 %v596
    %634 = vmatpush1.msra.mxu0 %v595
    %635 = vmatprep.subr.mxu0 %v600
    %636 = vmatpush1.msra.mxu0 %v599
    %637 = vmatprep.subr.mxu0 %v604
    %638 = vmatpush1.msra.mxu0 %v603
    %639 = vmatprep.subr.mxu0 0.0
    %640 = vmatpush1.msra.mxu0 0.0
    %641 = vmatprep.subr.mxu0 0.0
    %642 = vmatpush1.msra.mxu0 0.0
    %643 = vmatprep.subr.mxu0 0.0
    %644 = vmatpush1.msra.mxu0 0.0
    %645 = vmatprep.subr.mxu0 0.0
    %646 = vmatpush1.msra.mxu0 0.0
    %647 = vmatprep.subr.mxu0 0.0
    %648 = vmatpush1.msra.mxu0 0.0
    %649 = vmatprep.subr.mxu0 0.0
    %650 = vmatpush1.msra.mxu0 0.0
    %651 = vmatprep.subr.mxu0 0.0
    %652 = vmatpush1.msra.mxu0 0.0
    %653 = vmatprep.subr.mxu0 0.0
    %654 = vmatpush1.msra.mxu0 0.0
    %655 = vmatprep.subr.mxu0 0.0
    %656 = vmatpush1.msra.mxu0 0.0
    %657 = vmatprep.subr.mxu0 0.0
    %658 = vmatpush1.msra.mxu0 0.0
    %659 = vmatprep.subr.mxu0 0.0
    %660 = vmatpush1.msra.mxu0 0.0
    %661 = vmatprep.subr.mxu0 0.0
    %662 = vmatpush1.msra.mxu0 0.0
    %663 = vmatprep.subr.mxu0 0.0
    %664 = vmatpush1.msra.mxu0 0.0
    %665 = vmatprep.subr.mxu0 0.0
    %666 = vmatpush1.msra.mxu0 0.0
    %667 = vmatprep.subr.mxu0 0.0
    %668 = vmatpush1.msra.mxu0 0.0
    %669 = vmatprep.subr.mxu0 0.0
    %670 = vmatpush1.msra.mxu0 0.0
    %671 = vmatprep.mubr.f32.mxu0 0.0
    %672 = vmatmul.mubr.f32.gmra.mrb[0].mxu0 0.0
    %v673 = vpop.f32.mrb[0].mxu0
    %v674 = vadd.f32 0.0, %v673
    %v675 = vpop.f32.mrb[0].mxu0
    %v676 = vadd.f32 0.0, %v675
    %677 = vdwg.mxu0
    %678 = vmatprep.subr.mxu0 %v546
    %679 = vmatpush1.msra.mxu0 %v545
    %680 = vmatprep.subr.mxu0 %v550
    %681 = vmatpush1.msra.mxu0 %v549
    %682 = vmatprep.subr.mxu0 %v554
    %683 = vmatpush1.msra.mxu0 %v553
    %684 = vmatprep.subr.mxu0 %v558
    %685 = vmatpush1.msra.mxu0 %v557
    %686 = vmatprep.subr.mxu0 %v562
    %687 = vmatpush1.msra.mxu0 %v561
    %688 = vmatprep.subr.mxu0 %v566
    %689 = vmatpush1.msra.mxu0 %v565
    %690 = vmatprep.subr.mxu0 %v570
    %691 = vmatpush1.msra.mxu0 %v569
    %692 = vmatprep.subr.mxu0 %v574
    %693 = vmatpush1.msra.mxu0 %v573
    %694 = vmatprep.subr.mxu0 %v578
    %695 = vmatpush1.msra.mxu0 %v577
    %696 = vmatprep.subr.mxu0 %v582
    %697 = vmatpush1.msra.mxu0 %v581
    %698 = vmatprep.subr.mxu0 %v586
    %699 = vmatpush1.msra.mxu0 %v585
    %700 = vmatprep.subr.mxu0 %v590
    %701 = vmatpush1.msra.mxu0 %v589
    %702 = vmatprep.subr.mxu0 %v594
    %703 = vmatpush1.msra.mxu0 %v593
    %704 = vmatprep.subr.mxu0 %v598
    %705 = vmatpush1.msra.mxu0 %v597
    %706 = vmatprep.subr.mxu0 %v602
    %707 = vmatpush1.msra.mxu0 %v601
    %708 = vmatprep.subr.mxu0 %v606
    %709 = vmatpush1.msra.mxu0 %v605
    %710 = vmatprep.subr.mxu0 0.0
    %711 = vmatpush1.msra.mxu0 0.0
    %712 = vmatprep.subr.mxu0 0.0
    %713 = vmatpush1.msra.mxu0 0.0
    %714 = vmatprep.subr.mxu0 0.0
    %715 = vmatpush1.msra.mxu0 0.0
    %716 = vmatprep.subr.mxu0 0.0
    %717 = vmatpush1.msra.mxu0 0.0
    %718 = vmatprep.subr.mxu0 0.0
    %719 = vmatpush1.msra.mxu0 0.0
    %720 = vmatprep.subr.mxu0 0.0
    %721 = vmatpush1.msra.mxu0 0.0
    %722 = vmatprep.subr.mxu0 0.0
    %723 = vmatpush1.msra.mxu0 0.0
    %724 = vmatprep.subr.mxu0 0.0
    %725 = vmatpush1.msra.mxu0 0.0
    %726 = vmatprep.subr.mxu0 0.0
    %727 = vmatpush1.msra.mxu0 0.0
    %728 = vmatprep.subr.mxu0 0.0
    %729 = vmatpush1.msra.mxu0 0.0
    %730 = vmatprep.subr.mxu0 0.0
    %731 = vmatpush1.msra.mxu0 0.0
    %732 = vmatprep.subr.mxu0 0.0
    %733 = vmatpush1.msra.mxu0 0.0
    %734 = vmatprep.subr.mxu0 0.0
    %735 = vmatpush1.msra.mxu0 0.0
    %736 = vmatprep.subr.mxu0 0.0
    %737 = vmatpush1.msra.mxu0 0.0
    %738 = vmatprep.subr.mxu0 0.0
    %739 = vmatpush1.msra.mxu0 0.0
    %740 = vmatprep.subr.mxu0 0.0
    %741 = vmatpush1.msra.mxu0 0.0
    %742 = vmatprep.mubr.f32.mxu0 0.0
    %743 = vmatmul.mubr.f32.gmra.mrb[0].mxu0 0.0
    %v744 = vpop.f32.mrb[0].mxu0
    %v745 = vadd.f32 0.0, %v744
    %v746 = vpop.f32.mrb[0].mxu0
    %v747 = vadd.f32 0.0, %v746
    %748 = vdwg.mxu0
    %v749 = vadd.f32 %v511, %v674
    %v750 = vadd.f32 %v512, %v676
    %v751 = vadd.f32 %v513, %v745
    %v752 = vadd.f32 %v514, %v747
    %v753 = vtanh.pop %v749
    %v754 = vtanh.pop %v750
    %v755 = vtanh.pop %v751
    %v756 = vtanh.pop %v752
    %v757 = vmul.f32 %v214, %v753
    %v758 = vmul.f32 %v215, %v754
    %v759 = vmul.f32 %v216, %v755
    %v760 = vmul.f32 %v217, %v756
    %v761 = vadd.f32 %v218, %v757
    %v762 = vadd.f32 %v219, %v758
    %v763 = vadd.f32 %v220, %v759
    %v764 = vadd.f32 %v221, %v760
    %v765 = vmul.f32 %v762, 0.0
    %v766 = vmul.f32 %v761, %v763
    %v767 = vadd.f32 %v765, %v766
    %v768 = vtanh.pop %v767
    %v769 = vmul.f32 %v764, %v768
    %vm770 = vcmask 523264
    %771 = vst.msk [vmem:[#allocation2] sm:$0xff] %vm770, %v769
    %vm772 = vcmask 1048064
    %773 = vst.msk [vmem:[#allocation2 + $0x38] sm:$0xff] %vm772, %v769
    %774 = vmatprep.subr.mxu0 %v544
    %775 = vmatpush1.msra.mxu0 %v543
    %776 = vmatprep.subr.mxu0 %v548
    %777 = vmatpush1.msra.mxu0 %v547
    %778 = vmatprep.subr.mxu0 %v552
    %779 = vmatpush1.msra.mxu0 %v551
    %780 = vmatprep.subr.mxu0 %v556
    %781 = vmatpush1.msra.mxu0 %v555
    %782 = vmatprep.subr.mxu0 %v560
    %783 = vmatpush1.msra.mxu0 %v559
    %784 = vmatprep.subr.mxu0 %v564
    %785 = vmatpush1.msra.mxu0 %v563
    %786 = vmatprep.subr.mxu0 %v568
    %787 = vmatpush1.msra.mxu0 %v567
    %788 = vmatprep.subr.mxu0 %v572
    %789 = vmatpush1.msra.mxu0 %v571
    %790 = vmatprep.subr.mxu0 %v576
    %791 = vmatpush1.msra.mxu0 %v575
    %792 = vmatprep.subr.mxu0 %v580
    %793 = vmatpush1.msra.mxu0 %v579
    %794 = vmatprep.subr.mxu0 %v584
    %795 = vmatpush1.msra.mxu0 %v583
    %796 = vmatprep.subr.mxu0 %v588
    %797 = vmatpush1.msra.mxu0 %v587
    %798 = vmatprep.subr.mxu0 %v592
    %799 = vmatpush1.msra.mxu0 %v591
    %800 = vmatprep.subr.mxu0 %v596
    %801 = vmatpush1.msra.mxu0 %v595
    %802 = vmatprep.subr.mxu0 %v600
    %803 = vmatpush1.msra.mxu0 %v599
    %804 = vmatprep.subr.mxu0 %v604
    %805 = vmatpush1.msra.mxu0 %v603
    %806 = vmatprep.subr.mxu0 0.0
    %807 = vmatpush1.msra.mxu0 0.0
    %808 = vmatprep.subr.mxu0 0.0
    %809 = vmatpush1.msra.mxu0 0.0
    %810 = vmatprep.subr.mxu0 0.0
    %811 = vmatpush1.msra.mxu0 0.0
    %812 = vmatprep.subr.mxu0 0.0
    %813 = vmatpush1.msra.mxu0 0.0
    %814 = vmatprep.subr.mxu0 0.0
    %815 = vmatpush1.msra.mxu0 0.0
    %816 = vmatprep.subr.mxu0 0.0
    %817 = vmatpush1.msra.mxu0 0.0
    %818 = vmatprep.subr.mxu0 0.0
    %819 = vmatpush1.msra.mxu0 0.0
    %820 = vmatprep.subr.mxu0 0.0
    %821 = vmatpush1.msra.mxu0 0.0
    %822 = vmatprep.subr.mxu0 0.0
    %823 = vmatpush1.msra.mxu0 0.0
    %824 = vmatprep.subr.mxu0 0.0
    %825 = vmatpush1.msra.mxu0 0.0
    %826 = vmatprep.subr.mxu0 0.0
    %827 = vmatpush1.msra.mxu0 0.0
    %828 = vmatprep.subr.mxu0 0.0
    %829 = vmatpush1.msra.mxu0 0.0
    %830 = vmatprep.subr.mxu0 0.0
    %831 = vmatpush1.msra.mxu0 0.0
    %832 = vmatprep.subr.mxu0 0.0
    %833 = vmatpush1.msra.mxu0 0.0
    %834 = vmatprep.subr.mxu0 0.0
    %835 = vmatpush1.msra.mxu0 0.0
    %836 = vmatprep.subr.mxu0 0.0
    %837 = vmatpush1.msra.mxu0 0.0
    %838 = vmatprep.mubr.f32.mxu0 0.0
    %839 = vmatmul.mubr.f32.gmra.mrb[0].mxu0 %v769
    %v840 = vpop.f32.mrb[0].mxu0
    %v841 = vadd.f32 0.0, %v840
    %v842 = vpop.f32.mrb[0].mxu0
    %v843 = vadd.f32 0.0, %v842
    %844 = vdwg.mxu0
    %845 = vmatprep.subr.mxu0 %v546
    %846 = vmatpush1.msra.mxu0 %v545
    %847 = vmatprep.subr.mxu0 %v550
    %848 = vmatpush1.msra.mxu0 %v549
    %849 = vmatprep.subr.mxu0 %v554
    %850 = vmatpush1.msra.mxu0 %v553
    %851 = vmatprep.subr.mxu0 %v558
    %852 = vmatpush1.msra.mxu0 %v557
    %853 = vmatprep.subr.mxu0 %v562
    %854 = vmatpush1.msra.mxu0 %v561
    %855 = vmatprep.subr.mxu0 %v566
    %856 = vmatpush1.msra.mxu0 %v565
    %857 = vmatprep.subr.mxu0 %v570
    %858 = vmatpush1.msra.mxu0 %v569
    %859 = vmatprep.subr.mxu0 %v574
    %860 = vmatpush1.msra.mxu0 %v573
    %861 = vmatprep.subr.mxu0 %v578
    %862 = vmatpush1.msra.mxu0 %v577
    %863 = vmatprep.subr.mxu0 %v582
    %864 = vmatpush1.msra.mxu0 %v581
    %865 = vmatprep.subr.mxu0 %v586
    %866 = vmatpush1.msra.mxu0 %v585
    %867 = vmatprep.subr.mxu0 %v590
    %868 = vmatpush1.msra.mxu0 %v589
    %869 = vmatprep.subr.mxu0 %v594
    %870 = vmatpush1.msra.mxu0 %v593
    %871 = vmatprep.subr.mxu0 %v598
    %872 = vmatpush1.msra.mxu0 %v597
    %873 = vmatprep.subr.mxu0 %v602
    %874 = vmatpush1.msra.mxu0 %v601
    %875 = vmatprep.subr.mxu0 %v606
    %876 = vmatpush1.msra.mxu0 %v605
    %877 = vmatprep.subr.mxu0 0.0
    %878 = vmatpush1.msra.mxu0 0.0
    %879 = vmatprep.subr.mxu0 0.0
    %880 = vmatpush1.msra.mxu0 0.0
    %881 = vmatprep.subr.mxu0 0.0
    %882 = vmatpush1.msra.mxu0 0.0
    %883 = vmatprep.subr.mxu0 0.0
    %884 = vmatpush1.msra.mxu0 0.0
    %885 = vmatprep.subr.mxu0 0.0
    %886 = vmatpush1.msra.mxu0 0.0
    %887 = vmatprep.subr.mxu0 0.0
    %888 = vmatpush1.msra.mxu0 0.0
    %889 = vmatprep.subr.mxu0 0.0
    %890 = vmatpush1.msra.mxu0 0.0
    %891 = vmatprep.subr.mxu0 0.0
    %892 = vmatpush1.msra.mxu0 0.0
    %893 = vmatprep.subr.mxu0 0.0
    %894 = vmatpush1.msra.mxu0 0.0
    %895 = vmatprep.subr.mxu0 0.0
    %896 = vmatpush1.msra.mxu0 0.0
    %897 = vmatprep.subr.mxu0 0.0
    %898 = vmatpush1.msra.mxu0 0.0
    %899 = vmatprep.subr.mxu0 0.0
    %900 = vmatpush1.msra.mxu0 0.0
    %901 = vmatprep.subr.mxu0 0.0
    %902 = vmatpush1.msra.mxu0 0.0
    %903 = vmatprep.subr.mxu0 0.0
    %904 = vmatpush1.msra.mxu0 0.0
    %905 = vmatprep.subr.mxu0 0.0
    %906 = vmatpush1.msra.mxu0 0.0
    %907 = vmatprep.subr.mxu0 0.0
    %908 = vmatpush1.msra.mxu0 0.0
    %909 = vmatprep.mubr.f32.mxu0 0.0
    %910 = vmatmul.mubr.f32.gmra.mrb[0].mxu0 %v769
    %v911 = vpop.f32.mrb[0].mxu0
    %v912 = vadd.f32 0.0, %v911
    %v913 = vpop.f32.mrb[0].mxu0
    %v914 = vadd.f32 0.0, %v913
    %915 = vdwg.mxu0
    %v916 = vadd.f32 %v515, %v841
    %v917 = vadd.f32 %v516, %v843
    %v918 = vadd.f32 %v517, %v912
    %v919 = vadd.f32 %v518, %v914
    %v920 = vtanh.pop %v916
    %v921 = vtanh.pop %v917
    %v922 = vtanh.pop %v918
    %v923 = vtanh.pop %v919
    %v924 = vmul.f32 %v214, %v920
    %v925 = vmul.f32 %v215, %v921
    %v926 = vmul.f32 %v216, %v922
    %v927 = vmul.f32 %v217, %v923
    %v928 = vadd.f32 %v218, %v924
    %v929 = vadd.f32 %v219, %v925
    %v930 = vadd.f32 %v220, %v926
    %v931 = vadd.f32 %v221, %v927
    %v932 = vmul.f32 %v929, %v767
    %v933 = vmul.f32 %v928, %v930
    %v934 = vadd.f32 %v932, %v933
    %v935 = vtanh.pop %v934
    %v936 = vmul.f32 %v931, %v935
    %937 = vst.msk [vmem:[#allocation2 + $0x8] sm:$0xff] %vm770, %v936
    %938 = vst.msk [vmem:[#allocation2 + $0x30] sm:$0xff] %vm772, %v936
    %939 = vmatprep.subr.mxu0 %v544
    %940 = vmatpush1.msra.mxu0 %v543
    %941 = vmatprep.subr.mxu0 %v548
    %942 = vmatpush1.msra.mxu0 %v547
    %943 = vmatprep.subr.mxu0 %v552
    %944 = vmatpush1.msra.mxu0 %v551
    %945 = vmatprep.subr.mxu0 %v556
    %946 = vmatpush1.msra.mxu0 %v555
    %947 = vmatprep.subr.mxu0 %v560
    %948 = vmatpush1.msra.mxu0 %v559
    %949 = vmatprep.subr.mxu0 %v564
    %950 = vmatpush1.msra.mxu0 %v563
    %951 = vmatprep.subr.mxu0 %v568
    %952 = vmatpush1.msra.mxu0 %v567
    %953 = vmatprep.subr.mxu0 %v572
    %954 = vmatpush1.msra.mxu0 %v571
    %955 = vmatprep.subr.mxu0 %v576
    %956 = vmatpush1.msra.mxu0 %v575
    %957 = vmatprep.subr.mxu0 %v580
    %958 = vmatpush1.msra.mxu0 %v579
    %959 = vmatprep.subr.mxu0 %v584
    %960 = vmatpush1.msra.mxu0 %v583
    %961 = vmatprep.subr.mxu0 %v588
    %962 = vmatpush1.msra.mxu0 %v587
    %963 = vmatprep.subr.mxu0 %v592
    %964 = vmatpush1.msra.mxu0 %v591
    %965 = vmatprep.subr.mxu0 %v596
    %966 = vmatpush1.msra.mxu0 %v595
    %967 = vmatprep.subr.mxu0 %v600
    %968 = vmatpush1.msra.mxu0 %v599
    %969 = vmatprep.subr.mxu0 %v604
    %970 = vmatpush1.msra.mxu0 %v603
    %971 = vmatprep.subr.mxu0 0.0
    %972 = vmatpush1.msra.mxu0 0.0
    %973 = vmatprep.subr.mxu0 0.0
    %974 = vmatpush1.msra.mxu0 0.0
    %975 = vmatprep.subr.mxu0 0.0
    %976 = vmatpush1.msra.mxu0 0.0
    %977 = vmatprep.subr.mxu0 0.0
    %978 = vmatpush1.msra.mxu0 0.0
    %979 = vmatprep.subr.mxu0 0.0
    %980 = vmatpush1.msra.mxu0 0.0
    %981 = vmatprep.subr.mxu0 0.0
    %982 = vmatpush1.msra.mxu0 0.0
    %983 = vmatprep.subr.mxu0 0.0
    %984 = vmatpush1.msra.mxu0 0.0
    %985 = vmatprep.subr.mxu0 0.0
    %986 = vmatpush1.msra.mxu0 0.0
    %987 = vmatprep.subr.mxu0 0.0
    %988 = vmatpush1.msra.mxu0 0.0
    %989 = vmatprep.subr.mxu0 0.0
    %990 = vmatpush1.msra.mxu0 0.0
    %991 = vmatprep.subr.mxu0 0.0
    %992 = vmatpush1.msra.mxu0 0.0
    %993 = vmatprep.subr.mxu0 0.0
    %994 = vmatpush1.msra.mxu0 0.0
    %995 = vmatprep.subr.mxu0 0.0
    %996 = vmatpush1.msra.mxu0 0.0
    %997 = vmatprep.subr.mxu0 0.0
    %998 = vmatpush1.msra.mxu0 0.0
    %999 = vmatprep.subr.mxu0 0.0
    %1000 = vmatpush1.msra.mxu0 0.0
    %1001 = vmatprep.subr.mxu0 0.0
    %1002 = vmatpush1.msra.mxu0 0.0
    %1003 = vmatprep.mubr.f32.mxu0 0.0
    %1004 = vmatmul.mubr.f32.gmra.mrb[0].mxu0 %v936
    %v1005 = vpop.f32.mrb[0].mxu0
    %v1006 = vadd.f32 0.0, %v1005
    %v1007 = vpop.f32.mrb[0].mxu0
    %v1008 = vadd.f32 0.0, %v1007
    %1009 = vdwg.mxu0
    %1010 = vmatprep.subr.mxu0 %v546
    %1011 = vmatpush1.msra.mxu0 %v545
    %1012 = vmatprep.subr.mxu0 %v550
    %1013 = vmatpush1.msra.mxu0 %v549
    %1014 = vmatprep.subr.mxu0 %v554
    %1015 = vmatpush1.msra.mxu0 %v553
    %1016 = vmatprep.subr.mxu0 %v558
    %1017 = vmatpush1.msra.mxu0 %v557
    %1018 = vmatprep.subr.mxu0 %v562
    %1019 = vmatpush1.msra.mxu0 %v561
    %1020 = vmatprep.subr.mxu0 %v566
    %1021 = vmatpush1.msra.mxu0 %v565
    %1022 = vmatprep.subr.mxu0 %v570
    %1023 = vmatpush1.msra.mxu0 %v569
    %1024 = vmatprep.subr.mxu0 %v574
    %1025 = vmatpush1.msra.mxu0 %v573
    %1026 = vmatprep.subr.mxu0 %v578
    %1027 = vmatpush1.msra.mxu0 %v577
    %1028 = vmatprep.subr.mxu0 %v582
    %1029 = vmatpush1.msra.mxu0 %v581
    %1030 = vmatprep.subr.mxu0 %v586
    %1031 = vmatpush1.msra.mxu0 %v585
    %1032 = vmatprep.subr.mxu0 %v590
    %1033 = vmatpush1.msra.mxu0 %v589
    %1034 = vmatprep.subr.mxu0 %v594
    %1035 = vmatpush1.msra.mxu0 %v593
    %1036 = vmatprep.subr.mxu0 %v598
    %1037 = vmatpush1.msra.mxu0 %v597
    %1038 = vmatprep.subr.mxu0 %v602
    %1039 = vmatpush1.msra.mxu0 %v601
    %1040 = vmatprep.subr.mxu0 %v606
    %1041 = vmatpush1.msra.mxu0 %v605
    %1042 = vmatprep.subr.mxu0 0.0
    %1043 = vmatpush1.msra.mxu0 0.0
    %1044 = vmatprep.subr.mxu0 0.0
    %1045 = vmatpush1.msra.mxu0 0.0
    %1046 = vmatprep.subr.mxu0 0.0
    %1047 = vmatpush1.msra.mxu0 0.0
    %1048 = vmatprep.subr.mxu0 0.0
    %1049 = vmatpush1.msra.mxu0 0.0
    %1050 = vmatprep.subr.mxu0 0.0
    %1051 = vmatpush1.msra.mxu0 0.0
    %1052 = vmatprep.subr.mxu0 0.0
    %1053 = vmatpush1.msra.mxu0 0.0
    %1054 = vmatprep.subr.mxu0 0.0
    %1055 = vmatpush1.msra.mxu0 0.0
    %1056 = vmatprep.subr.mxu0 0.0
    %1057 = vmatpush1.msra.mxu0 0.0
    %1058 = vmatprep.subr.mxu0 0.0
    %1059 = vmatpush1.msra.mxu0 0.0
    %1060 = vmatprep.subr.mxu0 0.0
    %1061 = vmatpush1.msra.mxu0 0.0
    %1062 = vmatprep.subr.mxu0 0.0
    %1063 = vmatpush1.msra.mxu0 0.0
    %1064 = vmatprep.subr.mxu0 0.0
    %1065 = vmatpush1.msra.mxu0 0.0
    %1066 = vmatprep.subr.mxu0 0.0
    %1067 = vmatpush1.msra.mxu0 0.0
    %1068 = vmatprep.subr.mxu0 0.0
    %1069 = vmatpush1.msra.mxu0 0.0
    %1070 = vmatprep.subr.mxu0 0.0
    %1071 = vmatpush1.msra.mxu0 0.0
    %1072 = vmatprep.subr.mxu0 0.0
    %1073 = vmatpush1.msra.mxu0 0.0
    %1074 = vmatprep.mubr.f32.mxu0 0.0
    %1075 = vmatmul.mubr.f32.gmra.mrb[0].mxu0 %v936
    %v1076 = vpop.f32.mrb[0].mxu0
    %v1077 = vadd.f32 0.0, %v1076
    %v1078 = vpop.f32.mrb[0].mxu0
    %v1079 = vadd.f32 0.0, %v1078
    %1080 = vdwg.mxu0
    %v1081 = vadd.f32 %v519, %v1006
    %v1082 = vadd.f32 %v520, %v1008
    %v1083 = vadd.f32 %v521, %v1077
    %v1084 = vadd.f32 %v522, %v1079
    %v1085 = vtanh.pop %v1081
    %v1086 = vtanh.pop %v1082
    %v1087 = vtanh.pop %v1083
    %v1088 = vtanh.pop %v1084
    %v1089 = vmul.f32 %v214, %v1085
    %v1090 = vmul.f32 %v215, %v1086
    %v1091 = vmul.f32 %v216, %v1087
    %v1092 = vmul.f32 %v217, %v1088
    %v1093 = vadd.f32 %v218, %v1089
    %v1094 = vadd.f32 %v219, %v1090
    %v1095 = vadd.f32 %v220, %v1091
    %v1096 = vadd.f32 %v221, %v1092
    %v1097 = vmul.f32 %v1094, %v934
    %v1098 = vmul.f32 %v1093, %v1095
    %v1099 = vadd.f32 %v1097, %v1098
    %v1100 = vtanh.pop %v1099
    %v1101 = vmul.f32 %v1096, %v1100
    %1102 = vst.msk [vmem:[#allocation2 + $0x10] sm:$0xff] %vm770, %v1101
    %1103 = vst.msk [vmem:[#allocation2 + $0x28] sm:$0xff] %vm772, %v1101
    %1104 = vmatprep.subr.mxu0 %v544
    %1105 = vmatpush1.msra.mxu0 %v543
    %1106 = vmatprep.subr.mxu0 %v548
    %1107 = vmatpush1.msra.mxu0 %v547
    %1108 = vmatprep.subr.mxu0 %v552
    %1109 = vmatpush1.msra.mxu0 %v551
    %1110 = vmatprep.subr.mxu0 %v556
    %1111 = vmatpush1.msra.mxu0 %v555
    %1112 = vmatprep.subr.mxu0 %v560
    %1113 = vmatpush1.msra.mxu0 %v559
    %1114 = vmatprep.subr.mxu0 %v564
    %1115 = vmatpush1.msra.mxu0 %v563
    %1116 = vmatprep.subr.mxu0 %v568
    %1117 = vmatpush1.msra.mxu0 %v567
    %1118 = vmatprep.subr.mxu0 %v572
    %1119 = vmatpush1.msra.mxu0 %v571
    %1120 = vmatprep.subr.mxu0 %v576
    %1121 = vmatpush1.msra.mxu0 %v575
    %1122 = vmatprep.subr.mxu0 %v580
    %1123 = vmatpush1.msra.mxu0 %v579
    %1124 = vmatprep.subr.mxu0 %v584
    %1125 = vmatpush1.msra.mxu0 %v583
    %1126 = vmatprep.subr.mxu0 %v588
    %1127 = vmatpush1.msra.mxu0 %v587
    %1128 = vmatprep.subr.mxu0 %v592
    %1129 = vmatpush1.msra.mxu0 %v591
    %1130 = vmatprep.subr.mxu0 %v596
    %1131 = vmatpush1.msra.mxu0 %v595
    %1132 = vmatprep.subr.mxu0 %v600
    %1133 = vmatpush1.msra.mxu0 %v599
    %1134 = vmatprep.subr.mxu0 %v604
    %1135 = vmatpush1.msra.mxu0 %v603
    %1136 = vmatprep.subr.mxu0 0.0
    %1137 = vmatpush1.msra.mxu0 0.0
    %1138 = vmatprep.subr.mxu0 0.0
    %1139 = vmatpush1.msra.mxu0 0.0
    %1140 = vmatprep.subr.mxu0 0.0
    %1141 = vmatpush1.msra.mxu0 0.0
    %1142 = vmatprep.subr.mxu0 0.0
    %1143 = vmatpush1.msra.mxu0 0.0
    %1144 = vmatprep.subr.mxu0 0.0
    %1145 = vmatpush1.msra.mxu0 0.0
    %1146 = vmatprep.subr.mxu0 0.0
    %1147 = vmatpush1.msra.mxu0 0.0
    %1148 = vmatprep.subr.mxu0 0.0
    %1149 = vmatpush1.msra.mxu0 0.0
    %1150 = vmatprep.subr.mxu0 0.0
    %1151 = vmatpush1.msra.mxu0 0.0
    %1152 = vmatprep.subr.mxu0 0.0
    %1153 = vmatpush1.msra.mxu0 0.0
    %1154 = vmatprep.subr.mxu0 0.0
    %1155 = vmatpush1.msra.mxu0 0.0
    %1156 = vmatprep.subr.mxu0 0.0
    %1157 = vmatpush1.msra.mxu0 0.0
    %1158 = vmatprep.subr.mxu0 0.0
    %1159 = vmatpush1.msra.mxu0 0.0
    %1160 = vmatprep.subr.mxu0 0.0
    %1161 = vmatpush1.msra.mxu0 0.0
    %1162 = vmatprep.subr.mxu0 0.0
    %1163 = vmatpush1.msra.mxu0 0.0
    %1164 = vmatprep.subr.mxu0 0.0
    %1165 = vmatpush1.msra.mxu0 0.0
    %1166 = vmatprep.subr.mxu0 0.0
    %1167 = vmatpush1.msra.mxu0 0.0
    %1168 = vmatprep.mubr.f32.mxu0 0.0
    %1169 = vmatmul.mubr.f32.gmra.mrb[0].mxu0 %v1101
    %v1170 = vpop.f32.mrb[0].mxu0
    %v1171 = vadd.f32 0.0, %v1170
    %v1172 = vpop.f32.mrb[0].mxu0
    %v1173 = vadd.f32 0.0, %v1172
    %1174 = vdwg.mxu0
    %1175 = vmatprep.subr.mxu0 %v546
    %1176 = vmatpush1.msra.mxu0 %v545
    %1177 = vmatprep.subr.mxu0 %v550
    %1178 = vmatpush1.msra.mxu0 %v549
    %1179 = vmatprep.subr.mxu0 %v554
    %1180 = vmatpush1.msra.mxu0 %v553
    %1181 = vmatprep.subr.mxu0 %v558
    %1182 = vmatpush1.msra.mxu0 %v557
    %1183 = vmatprep.subr.mxu0 %v562
    %1184 = vmatpush1.msra.mxu0 %v561
    %1185 = vmatprep.subr.mxu0 %v566
    %1186 = vmatpush1.msra.mxu0 %v565
    %1187 = vmatprep.subr.mxu0 %v570
    %1188 = vmatpush1.msra.mxu0 %v569
    %1189 = vmatprep.subr.mxu0 %v574
    %1190 = vmatpush1.msra.mxu0 %v573
    %1191 = vmatprep.subr.mxu0 %v578
    %1192 = vmatpush1.msra.mxu0 %v577
    %1193 = vmatprep.subr.mxu0 %v582
    %1194 = vmatpush1.msra.mxu0 %v581
    %1195 = vmatprep.subr.mxu0 %v586
    %1196 = vmatpush1.msra.mxu0 %v585
    %1197 = vmatprep.subr.mxu0 %v590
    %1198 = vmatpush1.msra.mxu0 %v589
    %1199 = vmatprep.subr.mxu0 %v594
    %1200 = vmatpush1.msra.mxu0 %v593
    %1201 = vmatprep.subr.mxu0 %v598
    %1202 = vmatpush1.msra.mxu0 %v597
    %1203 = vmatprep.subr.mxu0 %v602
    %1204 = vmatpush1.msra.mxu0 %v601
    %1205 = vmatprep.subr.mxu0 %v606
    %1206 = vmatpush1.msra.mxu0 %v605
    %1207 = vmatprep.subr.mxu0 0.0
    %1208 = vmatpush1.msra.mxu0 0.0
    %1209 = vmatprep.subr.mxu0 0.0
    %1210 = vmatpush1.msra.mxu0 0.0
    %1211 = vmatprep.subr.mxu0 0.0
    %1212 = vmatpush1.msra.mxu0 0.0
    %1213 = vmatprep.subr.mxu0 0.0
    %1214 = vmatpush1.msra.mxu0 0.0
    %1215 = vmatprep.subr.mxu0 0.0
    %1216 = vmatpush1.msra.mxu0 0.0
    %1217 = vmatprep.subr.mxu0 0.0
    %1218 = vmatpush1.msra.mxu0 0.0
    %1219 = vmatprep.subr.mxu0 0.0
    %1220 = vmatpush1.msra.mxu0 0.0
    %1221 = vmatprep.subr.mxu0 0.0
    %1222 = vmatpush1.msra.mxu0 0.0
    %1223 = vmatprep.subr.mxu0 0.0
    %1224 = vmatpush1.msra.mxu0 0.0
    %1225 = vmatprep.subr.mxu0 0.0
    %1226 = vmatpush1.msra.mxu0 0.0
    %1227 = vmatprep.subr.mxu0 0.0
    %1228 = vmatpush1.msra.mxu0 0.0
    %1229 = vmatprep.subr.mxu0 0.0
    %1230 = vmatpush1.msra.mxu0 0.0
    %1231 = vmatprep.subr.mxu0 0.0
    %1232 = vmatpush1.msra.mxu0 0.0
    %1233 = vmatprep.subr.mxu0 0.0
    %1234 = vmatpush1.msra.mxu0 0.0
    %1235 = vmatprep.subr.mxu0 0.0
    %1236 = vmatpush1.msra.mxu0 0.0
    %1237 = vmatprep.subr.mxu0 0.0
    %1238 = vmatpush1.msra.mxu0 0.0
    %1239 = vmatprep.mubr.f32.mxu0 0.0
    %1240 = vmatmul.mubr.f32.gmra.mrb[0].mxu0 %v1101
    %v1241 = vpop.f32.mrb[0].mxu0
    %v1242 = vadd.f32 0.0, %v1241
    %v1243 = vpop.f32.mrb[0].mxu0
    %v1244 = vadd.f32 0.0, %v1243
    %1245 = vdwg.mxu0
    %v1246 = vadd.f32 %v523, %v1171
    %v1247 = vadd.f32 %v524, %v1173
    %v1248 = vadd.f32 %v525, %v1242
    %v1249 = vadd.f32 %v526, %v1244
    %v1250 = vtanh.pop %v1246
    %v1251 = vtanh.pop %v1247
    %v1252 = vtanh.pop %v1248
    %v1253 = vtanh.pop %v1249
    %v1254 = vmul.f32 %v214, %v1250
    %v1255 = vmul.f32 %v215, %v1251
    %v1256 = vmul.f32 %v216, %v1252
    %v1257 = vmul.f32 %v217, %v1253
    %v1258 = vadd.f32 %v218, %v1254
    %v1259 = vadd.f32 %v219, %v1255
    %v1260 = vadd.f32 %v220, %v1256
    %v1261 = vadd.f32 %v221, %v1257
    %v1262 = vmul.f32 %v1259, %v1099
    %v1263 = vmul.f32 %v1258, %v1260
    %v1264 = vadd.f32 %v1262, %v1263
    %v1265 = vtanh.pop %v1264
    %v1266 = vmul.f32 %v1261, %v1265
    %1267 = vst.msk [vmem:[#allocation2 + $0x18] sm:$0xff] %vm770, %v1266
    %1268 = vst.msk [vmem:[#allocation2 + $0x20] sm:$0xff] %vm772, %v1266
    %1269 = vmatprep.subr.mxu0 %v544
    %1270 = vmatpush1.msra.mxu0 %v543
    %1271 = vmatprep.subr.mxu0 %v548
    %1272 = vmatpush1.msra.mxu0 %v547
    %1273 = vmatprep.subr.mxu0 %v552
    %1274 = vmatpush1.msra.mxu0 %v551
    %1275 = vmatprep.subr.mxu0 %v556
    %1276 = vmatpush1.msra.mxu0 %v555
    %1277 = vmatprep.subr.mxu0 %v560
    %1278 = vmatpush1.msra.mxu0 %v559
    %1279 = vmatprep.subr.mxu0 %v564
    %1280 = vmatpush1.msra.mxu0 %v563
    %1281 = vmatprep.subr.mxu0 %v568
    %1282 = vmatpush1.msra.mxu0 %v567
    %1283 = vmatprep.subr.mxu0 %v572
    %1284 = vmatpush1.msra.mxu0 %v571
    %1285 = vmatprep.subr.mxu0 %v576
    %1286 = vmatpush1.msra.mxu0 %v575
    %1287 = vmatprep.subr.mxu0 %v580
    %1288 = vmatpush1.msra.mxu0 %v579
    %1289 = vmatprep.subr.mxu0 %v584
    %1290 = vmatpush1.msra.mxu0 %v583
    %1291 = vmatprep.subr.mxu0 %v588
    %1292 = vmatpush1.msra.mxu0 %v587
    %1293 = vmatprep.subr.mxu0 %v592
    %1294 = vmatpush1.msra.mxu0 %v591
    %1295 = vmatprep.subr.mxu0 %v596
    %1296 = vmatpush1.msra.mxu0 %v595
    %1297 = vmatprep.subr.mxu0 %v600
    %1298 = vmatpush1.msra.mxu0 %v599
    %1299 = vmatprep.subr.mxu0 %v604
    %1300 = vmatpush1.msra.mxu0 %v603
    %1301 = vmatprep.subr.mxu0 0.0
    %1302 = vmatpush1.msra.mxu0 0.0
    %1303 = vmatprep.subr.mxu0 0.0
    %1304 = vmatpush1.msra.mxu0 0.0
    %1305 = vmatprep.subr.mxu0 0.0
    %1306 = vmatpush1.msra.mxu0 0.0
    %1307 = vmatprep.subr.mxu0 0.0
    %1308 = vmatpush1.msra.mxu0 0.0
    %1309 = vmatprep.subr.mxu0 0.0
    %1310 = vmatpush1.msra.mxu0 0.0
    %1311 = vmatprep.subr.mxu0 0.0
    %1312 = vmatpush1.msra.mxu0 0.0
    %1313 = vmatprep.subr.mxu0 0.0
    %1314 = vmatpush1.msra.mxu0 0.0
    %1315 = vmatprep.subr.mxu0 0.0
    %1316 = vmatpush1.msra.mxu0 0.0
    %1317 = vmatprep.subr.mxu0 0.0
    %1318 = vmatpush1.msra.mxu0 0.0
    %1319 = vmatprep.subr.mxu0 0.0
    %1320 = vmatpush1.msra.mxu0 0.0
    %1321 = vmatprep.subr.mxu0 0.0
    %1322 = vmatpush1.msra.mxu0 0.0
    %1323 = vmatprep.subr.mxu0 0.0
    %1324 = vmatpush1.msra.mxu0 0.0
    %1325 = vmatprep.subr.mxu0 0.0
    %1326 = vmatpush1.msra.mxu0 0.0
    %1327 = vmatprep.subr.mxu0 0.0
    %1328 = vmatpush1.msra.mxu0 0.0
    %1329 = vmatprep.subr.mxu0 0.0
    %1330 = vmatpush1.msra.mxu0 0.0
    %1331 = vmatprep.subr.mxu0 0.0
    %1332 = vmatpush1.msra.mxu0 0.0
    %1333 = vmatprep.mubr.f32.mxu0 0.0
    %1334 = vmatmul.mubr.f32.gmra.mrb[0].mxu0 %v1266
    %v1335 = vpop.f32.mrb[0].mxu0
    %v1336 = vadd.f32 0.0, %v1335
    %v1337 = vpop.f32.mrb[0].mxu0
    %v1338 = vadd.f32 0.0, %v1337
    %1339 = vdwg.mxu0
    %1340 = vmatprep.subr.mxu0 %v546
    %1341 = vmatpush1.msra.mxu0 %v545
    %1342 = vmatprep.subr.mxu0 %v550
    %1343 = vmatpush1.msra.mxu0 %v549
    %1344 = vmatprep.subr.mxu0 %v554
    %1345 = vmatpush1.msra.mxu0 %v553
    %1346 = vmatprep.subr.mxu0 %v558
    %1347 = vmatpush1.msra.mxu0 %v557
    %1348 = vmatprep.subr.mxu0 %v562
    %1349 = vmatpush1.msra.mxu0 %v561
    %1350 = vmatprep.subr.mxu0 %v566
    %1351 = vmatpush1.msra.mxu0 %v565
    %1352 = vmatprep.subr.mxu0 %v570
    %1353 = vmatpush1.msra.mxu0 %v569
    %1354 = vmatprep.subr.mxu0 %v574
    %1355 = vmatpush1.msra.mxu0 %v573
    %1356 = vmatprep.subr.mxu0 %v578
    %1357 = vmatpush1.msra.mxu0 %v577
    %1358 = vmatprep.subr.mxu0 %v582
    %1359 = vmatpush1.msra.mxu0 %v581
    %1360 = vmatprep.subr.mxu0 %v586
    %1361 = vmatpush1.msra.mxu0 %v585
    %1362 = vmatprep.subr.mxu0 %v590
    %1363 = vmatpush1.msra.mxu0 %v589
    %1364 = vmatprep.subr.mxu0 %v594
    %1365 = vmatpush1.msra.mxu0 %v593
    %1366 = vmatprep.subr.mxu0 %v598
    %1367 = vmatpush1.msra.mxu0 %v597
    %1368 = vmatprep.subr.mxu0 %v602
    %1369 = vmatpush1.msra.mxu0 %v601
    %1370 = vmatprep.subr.mxu0 %v606
    %1371 = vmatpush1.msra.mxu0 %v605
    %1372 = vmatprep.subr.mxu0 0.0
    %1373 = vmatpush1.msra.mxu0 0.0
    %1374 = vmatprep.subr.mxu0 0.0
    %1375 = vmatpush1.msra.mxu0 0.0
    %1376 = vmatprep.subr.mxu0 0.0
    %1377 = vmatpush1.msra.mxu0 0.0
    %1378 = vmatprep.subr.mxu0 0.0
    %1379 = vmatpush1.msra.mxu0 0.0
    %1380 = vmatprep.subr.mxu0 0.0
    %1381 = vmatpush1.msra.mxu0 0.0
    %1382 = vmatprep.subr.mxu0 0.0
    %1383 = vmatpush1.msra.mxu0 0.0
    %1384 = vmatprep.subr.mxu0 0.0
    %1385 = vmatpush1.msra.mxu0 0.0
    %1386 = vmatprep.subr.mxu0 0.0
    %1387 = vmatpush1.msra.mxu0 0.0
    %1388 = vmatprep.subr.mxu0 0.0
    %1389 = vmatpush1.msra.mxu0 0.0
    %1390 = vmatprep.subr.mxu0 0.0
    %1391 = vmatpush1.msra.mxu0 0.0
    %1392 = vmatprep.subr.mxu0 0.0
    %1393 = vmatpush1.msra.mxu0 0.0
    %1394 = vmatprep.subr.mxu0 0.0
    %1395 = vmatpush1.msra.mxu0 0.0
    %1396 = vmatprep.subr.mxu0 0.0
    %1397 = vmatpush1.msra.mxu0 0.0
    %1398 = vmatprep.subr.mxu0 0.0
    %1399 = vmatpush1.msra.mxu0 0.0
    %1400 = vmatprep.subr.mxu0 0.0
    %1401 = vmatpush1.msra.mxu0 0.0
    %1402 = vmatprep.subr.mxu0 0.0
    %1403 = vmatpush1.msra.mxu0 0.0
    %1404 = vmatprep.mubr.f32.mxu0 0.0
    %1405 = vmatmul.mubr.f32.gmra.mrb[0].mxu0 %v1266
    %v1406 = vpop.f32.mrb[0].mxu0
    %v1407 = vadd.f32 0.0, %v1406
    %v1408 = vpop.f32.mrb[0].mxu0
    %v1409 = vadd.f32 0.0, %v1408
    %1410 = vdwg.mxu0
    %v1411 = vadd.f32 %v527, %v1336
    %v1412 = vadd.f32 %v528, %v1338
    %v1413 = vadd.f32 %v529, %v1407
    %v1414 = vadd.f32 %v530, %v1409
    %v1415 = vtanh.pop %v1411
    %v1416 = vtanh.pop %v1412
    %v1417 = vtanh.pop %v1413
    %v1418 = vtanh.pop %v1414
    %v1419 = vmul.f32 %v214, %v1415
    %v1420 = vmul.f32 %v215, %v1416
    %v1421 = vmul.f32 %v216, %v1417
    %v1422 = vmul.f32 %v217, %v1418
    %v1423 = vadd.f32 %v218, %v1419
    %v1424 = vadd.f32 %v219, %v1420
    %v1425 = vadd.f32 %v220, %v1421
    %v1426 = vadd.f32 %v221, %v1422
    %v1427 = vmul.f32 %v1424, %v1264
    %v1428 = vmul.f32 %v1423, %v1425
    %v1429 = vadd.f32 %v1427, %v1428
    %v1430 = vtanh.pop %v1429
    %v1431 = vmul.f32 %v1426, %v1430
    %1432 = vst.msk [vmem:[#allocation2 + $0x20] sm:$0xff] %vm770, %v1431
    %1433 = vst.msk [vmem:[#allocation2 + $0x18] sm:$0xff] %vm772, %v1431
    %1434 = vmatprep.subr.mxu0 %v544
    %1435 = vmatpush1.msra.mxu0 %v543
    %1436 = vmatprep.subr.mxu0 %v548
    %1437 = vmatpush1.msra.mxu0 %v547
    %1438 = vmatprep.subr.mxu0 %v552
    %1439 = vmatpush1.msra.mxu0 %v551
    %1440 = vmatprep.subr.mxu0 %v556
    %1441 = vmatpush1.msra.mxu0 %v555
    %1442 = vmatprep.subr.mxu0 %v560
    %1443 = vmatpush1.msra.mxu0 %v559
    %1444 = vmatprep.subr.mxu0 %v564
    %1445 = vmatpush1.msra.mxu0 %v563
    %1446 = vmatprep.subr.mxu0 %v568
    %1447 = vmatpush1.msra.mxu0 %v567
    %1448 = vmatprep.subr.mxu0 %v572
    %1449 = vmatpush1.msra.mxu0 %v571
    %1450 = vmatprep.subr.mxu0 %v576
    %1451 = vmatpush1.msra.mxu0 %v575
    %1452 = vmatprep.subr.mxu0 %v580
    %1453 = vmatpush1.msra.mxu0 %v579
    %1454 = vmatprep.subr.mxu0 %v584
    %1455 = vmatpush1.msra.mxu0 %v583
    %1456 = vmatprep.subr.mxu0 %v588
    %1457 = vmatpush1.msra.mxu0 %v587
    %1458 = vmatprep.subr.mxu0 %v592
    %1459 = vmatpush1.msra.mxu0 %v591
    %1460 = vmatprep.subr.mxu0 %v596
    %1461 = vmatpush1.msra.mxu0 %v595
    %1462 = vmatprep.subr.mxu0 %v600
    %1463 = vmatpush1.msra.mxu0 %v599
    %1464 = vmatprep.subr.mxu0 %v604
    %1465 = vmatpush1.msra.mxu0 %v603
    %1466 = vmatprep.subr.mxu0 0.0
    %1467 = vmatpush1.msra.mxu0 0.0
    %1468 = vmatprep.subr.mxu0 0.0
    %1469 = vmatpush1.msra.mxu0 0.0
    %1470 = vmatprep.subr.mxu0 0.0
    %1471 = vmatpush1.msra.mxu0 0.0
    %1472 = vmatprep.subr.mxu0 0.0
    %1473 = vmatpush1.msra.mxu0 0.0
    %1474 = vmatprep.subr.mxu0 0.0
    %1475 = vmatpush1.msra.mxu0 0.0
    %1476 = vmatprep.subr.mxu0 0.0
    %1477 = vmatpush1.msra.mxu0 0.0
    %1478 = vmatprep.subr.mxu0 0.0
    %1479 = vmatpush1.msra.mxu0 0.0
    %1480 = vmatprep.subr.mxu0 0.0
    %1481 = vmatpush1.msra.mxu0 0.0
    %1482 = vmatprep.subr.mxu0 0.0
    %1483 = vmatpush1.msra.mxu0 0.0
    %1484 = vmatprep.subr.mxu0 0.0
    %1485 = vmatpush1.msra.mxu0 0.0
    %1486 = vmatprep.subr.mxu0 0.0
    %1487 = vmatpush1.msra.mxu0 0.0
    %1488 = vmatprep.subr.mxu0 0.0
    %1489 = vmatpush1.msra.mxu0 0.0
    %1490 = vmatprep.subr.mxu0 0.0
    %1491 = vmatpush1.msra.mxu0 0.0
    %1492 = vmatprep.subr.mxu0 0.0
    %1493 = vmatpush1.msra.mxu0 0.0
    %1494 = vmatprep.subr.mxu0 0.0
    %1495 = vmatpush1.msra.mxu0 0.0
    %1496 = vmatprep.subr.mxu0 0.0
    %1497 = vmatpush1.msra.mxu0 0.0
    %1498 = vmatprep.mubr.f32.mxu0 0.0
    %1499 = vmatmul.mubr.f32.gmra.mrb[0].mxu0 %v1431
    %v1500 = vpop.f32.mrb[0].mxu0
    %v1501 = vadd.f32 0.0, %v1500
    %v1502 = vpop.f32.mrb[0].mxu0
    %v1503 = vadd.f32 0.0, %v1502
    %1504 = vdwg.mxu0
    %1505 = vmatprep.subr.mxu0 %v546
    %1506 = vmatpush1.msra.mxu0 %v545
    %1507 = vmatprep.subr.mxu0 %v550
    %1508 = vmatpush1.msra.mxu0 %v549
    %1509 = vmatprep.subr.mxu0 %v554
    %1510 = vmatpush1.msra.mxu0 %v553
    %1511 = vmatprep.subr.mxu0 %v558
    %1512 = vmatpush1.msra.mxu0 %v557
    %1513 = vmatprep.subr.mxu0 %v562
    %1514 = vmatpush1.msra.mxu0 %v561
    %1515 = vmatprep.subr.mxu0 %v566
    %1516 = vmatpush1.msra.mxu0 %v565
    %1517 = vmatprep.subr.mxu0 %v570
    %1518 = vmatpush1.msra.mxu0 %v569
    %1519 = vmatprep.subr.mxu0 %v574
    %1520 = vmatpush1.msra.mxu0 %v573
    %1521 = vmatprep.subr.mxu0 %v578
    %1522 = vmatpush1.msra.mxu0 %v577
    %1523 = vmatprep.subr.mxu0 %v582
    %1524 = vmatpush1.msra.mxu0 %v581
    %1525 = vmatprep.subr.mxu0 %v586
    %1526 = vmatpush1.msra.mxu0 %v585
    %1527 = vmatprep.subr.mxu0 %v590
    %1528 = vmatpush1.msra.mxu0 %v589
    %1529 = vmatprep.subr.mxu0 %v594
    %1530 = vmatpush1.msra.mxu0 %v593
    %1531 = vmatprep.subr.mxu0 %v598
    %1532 = vmatpush1.msra.mxu0 %v597
    %1533 = vmatprep.subr.mxu0 %v602
    %1534 = vmatpush1.msra.mxu0 %v601
    %1535 = vmatprep.subr.mxu0 %v606
    %1536 = vmatpush1.msra.mxu0 %v605
    %1537 = vmatprep.subr.mxu0 0.0
    %1538 = vmatpush1.msra.mxu0 0.0
    %1539 = vmatprep.subr.mxu0 0.0
    %1540 = vmatpush1.msra.mxu0 0.0
    %1541 = vmatprep.subr.mxu0 0.0
    %1542 = vmatpush1.msra.mxu0 0.0
    %1543 = vmatprep.subr.mxu0 0.0
    %1544 = vmatpush1.msra.mxu0 0.0
    %1545 = vmatprep.subr.mxu0 0.0
    %1546 = vmatpush1.msra.mxu0 0.0
    %1547 = vmatprep.subr.mxu0 0.0
    %1548 = vmatpush1.msra.mxu0 0.0
    %1549 = vmatprep.subr.mxu0 0.0
    %1550 = vmatpush1.msra.mxu0 0.0
    %1551 = vmatprep.subr.mxu0 0.0
    %1552 = vmatpush1.msra.mxu0 0.0
    %1553 = vmatprep.subr.mxu0 0.0
    %1554 = vmatpush1.msra.mxu0 0.0
    %1555 = vmatprep.subr.mxu0 0.0
    %1556 = vmatpush1.msra.mxu0 0.0
    %1557 = vmatprep.subr.mxu0 0.0
    %1558 = vmatpush1.msra.mxu0 0.0
    %1559 = vmatprep.subr.mxu0 0.0
    %1560 = vmatpush1.msra.mxu0 0.0
    %1561 = vmatprep.subr.mxu0 0.0
    %1562 = vmatpush1.msra.mxu0 0.0
    %1563 = vmatprep.subr.mxu0 0.0
    %1564 = vmatpush1.msra.mxu0 0.0
    %1565 = vmatprep.subr.mxu0 0.0
    %1566 = vmatpush1.msra.mxu0 0.0
    %1567 = vmatprep.subr.mxu0 0.0
    %1568 = vmatpush1.msra.mxu0 0.0
    %1569 = vmatprep.mubr.f32.mxu0 0.0
    %1570 = vmatmul.mubr.f32.gmra.mrb[0].mxu0 %v1431
    %v1571 = vpop.f32.mrb[0].mxu0
    %v1572 = vadd.f32 0.0, %v1571
    %v1573 = vpop.f32.mrb[0].mxu0
    %v1574 = vadd.f32 0.0, %v1573
    %1575 = vdwg.mxu0
    %v1576 = vadd.f32 %v531, %v1501
    %v1577 = vadd.f32 %v532, %v1503
    %v1578 = vadd.f32 %v533, %v1572
    %v1579 = vadd.f32 %v534, %v1574
    %v1580 = vtanh.pop %v1576
    %v1581 = vtanh.pop %v1577
    %v1582 = vtanh.pop %v1578
    %v1583 = vtanh.pop %v1579
    %v1584 = vmul.f32 %v214, %v1580
    %v1585 = vmul.f32 %v215, %v1581
    %v1586 = vmul.f32 %v216, %v1582
    %v1587 = vmul.f32 %v217, %v1583
    %v1588 = vadd.f32 %v218, %v1584
    %v1589 = vadd.f32 %v219, %v1585
    %v1590 = vadd.f32 %v220, %v1586
    %v1591 = vadd.f32 %v221, %v1587
    %v1592 = vmul.f32 %v1589, %v1429
    %v1593 = vmul.f32 %v1588, %v1590
    %v1594 = vadd.f32 %v1592, %v1593
    %v1595 = vtanh.pop %v1594
    %v1596 = vmul.f32 %v1591, %v1595
    %1597 = vst.msk [vmem:[#allocation2 + $0x28] sm:$0xff] %vm770, %v1596
    %1598 = vst.msk [vmem:[#allocation2 + $0x10] sm:$0xff] %vm772, %v1596
    %1599 = vmatprep.subr.mxu0 %v544
    %1600 = vmatpush1.msra.mxu0 %v543
    %1601 = vmatprep.subr.mxu0 %v548
    %1602 = vmatpush1.msra.mxu0 %v547
    %1603 = vmatprep.subr.mxu0 %v552
    %1604 = vmatpush1.msra.mxu0 %v551
    %1605 = vmatprep.subr.mxu0 %v556
    %1606 = vmatpush1.msra.mxu0 %v555
    %1607 = vmatprep.subr.mxu0 %v560
    %1608 = vmatpush1.msra.mxu0 %v559
    %1609 = vmatprep.subr.mxu0 %v564
    %1610 = vmatpush1.msra.mxu0 %v563
    %1611 = vmatprep.subr.mxu0 %v568
    %1612 = vmatpush1.msra.mxu0 %v567
    %1613 = vmatprep.subr.mxu0 %v572
    %1614 = vmatpush1.msra.mxu0 %v571
    %1615 = vmatprep.subr.mxu0 %v576
    %1616 = vmatpush1.msra.mxu0 %v575
    %1617 = vmatprep.subr.mxu0 %v580
    %1618 = vmatpush1.msra.mxu0 %v579
    %1619 = vmatprep.subr.mxu0 %v584
    %1620 = vmatpush1.msra.mxu0 %v583
    %1621 = vmatprep.subr.mxu0 %v588
    %1622 = vmatpush1.msra.mxu0 %v587
    %1623 = vmatprep.subr.mxu0 %v592
    %1624 = vmatpush1.msra.mxu0 %v591
    %1625 = vmatprep.subr.mxu0 %v596
    %1626 = vmatpush1.msra.mxu0 %v595
    %1627 = vmatprep.subr.mxu0 %v600
    %1628 = vmatpush1.msra.mxu0 %v599
    %1629 = vmatprep.subr.mxu0 %v604
    %1630 = vmatpush1.msra.mxu0 %v603
    %1631 = vmatprep.subr.mxu0 0.0
    %1632 = vmatpush1.msra.mxu0 0.0
    %1633 = vmatprep.subr.mxu0 0.0
    %1634 = vmatpush1.msra.mxu0 0.0
    %1635 = vmatprep.subr.mxu0 0.0
    %1636 = vmatpush1.msra.mxu0 0.0
    %1637 = vmatprep.subr.mxu0 0.0
    %1638 = vmatpush1.msra.mxu0 0.0
    %1639 = vmatprep.subr.mxu0 0.0
    %1640 = vmatpush1.msra.mxu0 0.0
    %1641 = vmatprep.subr.mxu0 0.0
    %1642 = vmatpush1.msra.mxu0 0.0
    %1643 = vmatprep.subr.mxu0 0.0
    %1644 = vmatpush1.msra.mxu0 0.0
    %1645 = vmatprep.subr.mxu0 0.0
    %1646 = vmatpush1.msra.mxu0 0.0
    %1647 = vmatprep.subr.mxu0 0.0
    %1648 = vmatpush1.msra.mxu0 0.0
    %1649 = vmatprep.subr.mxu0 0.0
    %1650 = vmatpush1.msra.mxu0 0.0
    %1651 = vmatprep.subr.mxu0 0.0
    %1652 = vmatpush1.msra.mxu0 0.0
    %1653 = vmatprep.subr.mxu0 0.0
    %1654 = vmatpush1.msra.mxu0 0.0
    %1655 = vmatprep.subr.mxu0 0.0
    %1656 = vmatpush1.msra.mxu0 0.0
    %1657 = vmatprep.subr.mxu0 0.0
    %1658 = vmatpush1.msra.mxu0 0.0
    %1659 = vmatprep.subr.mxu0 0.0
    %1660 = vmatpush1.msra.mxu0 0.0
    %1661 = vmatprep.subr.mxu0 0.0
    %1662 = vmatpush1.msra.mxu0 0.0
    %1663 = vmatprep.mubr.f32.mxu0 0.0
    %1664 = vmatmul.mubr.f32.gmra.mrb[0].mxu0 %v1596
    %v1665 = vpop.f32.mrb[0].mxu0
    %v1666 = vadd.f32 0.0, %v1665
    %v1667 = vpop.f32.mrb[0].mxu0
    %v1668 = vadd.f32 0.0, %v1667
    %1669 = vdwg.mxu0
    %1670 = vmatprep.subr.mxu0 %v546
    %1671 = vmatpush1.msra.mxu0 %v545
    %1672 = vmatprep.subr.mxu0 %v550
    %1673 = vmatpush1.msra.mxu0 %v549
    %1674 = vmatprep.subr.mxu0 %v554
    %1675 = vmatpush1.msra.mxu0 %v553
    %1676 = vmatprep.subr.mxu0 %v558
    %1677 = vmatpush1.msra.mxu0 %v557
    %1678 = vmatprep.subr.mxu0 %v562
    %1679 = vmatpush1.msra.mxu0 %v561
    %1680 = vmatprep.subr.mxu0 %v566
    %1681 = vmatpush1.msra.mxu0 %v565
    %1682 = vmatprep.subr.mxu0 %v570
    %1683 = vmatpush1.msra.mxu0 %v569
    %1684 = vmatprep.subr.mxu0 %v574
    %1685 = vmatpush1.msra.mxu0 %v573
    %1686 = vmatprep.subr.mxu0 %v578
    %1687 = vmatpush1.msra.mxu0 %v577
    %1688 = vmatprep.subr.mxu0 %v582
    %1689 = vmatpush1.msra.mxu0 %v581
    %1690 = vmatprep.subr.mxu0 %v586
    %1691 = vmatpush1.msra.mxu0 %v585
    %1692 = vmatprep.subr.mxu0 %v590
    %1693 = vmatpush1.msra.mxu0 %v589
    %1694 = vmatprep.subr.mxu0 %v594
    %1695 = vmatpush1.msra.mxu0 %v593
    %1696 = vmatprep.subr.mxu0 %v598
    %1697 = vmatpush1.msra.mxu0 %v597
    %1698 = vmatprep.subr.mxu0 %v602
    %1699 = vmatpush1.msra.mxu0 %v601
    %1700 = vmatprep.subr.mxu0 %v606
    %1701 = vmatpush1.msra.mxu0 %v605
    %1702 = vmatprep.subr.mxu0 0.0
    %1703 = vmatpush1.msra.mxu0 0.0
    %1704 = vmatprep.subr.mxu0 0.0
    %1705 = vmatpush1.msra.mxu0 0.0
    %1706 = vmatprep.subr.mxu0 0.0
    %1707 = vmatpush1.msra.mxu0 0.0
    %1708 = vmatprep.subr.mxu0 0.0
    %1709 = vmatpush1.msra.mxu0 0.0
    %1710 = vmatprep.subr.mxu0 0.0
    %1711 = vmatpush1.msra.mxu0 0.0
    %1712 = vmatprep.subr.mxu0 0.0
    %1713 = vmatpush1.msra.mxu0 0.0
    %1714 = vmatprep.subr.mxu0 0.0
    %1715 = vmatpush1.msra.mxu0 0.0
    %1716 = vmatprep.subr.mxu0 0.0
    %1717 = vmatpush1.msra.mxu0 0.0
    %1718 = vmatprep.subr.mxu0 0.0
    %1719 = vmatpush1.msra.mxu0 0.0
    %1720 = vmatprep.subr.mxu0 0.0
    %1721 = vmatpush1.msra.mxu0 0.0
    %1722 = vmatprep.subr.mxu0 0.0
    %1723 = vmatpush1.msra.mxu0 0.0
    %1724 = vmatprep.subr.mxu0 0.0
    %1725 = vmatpush1.msra.mxu0 0.0
    %1726 = vmatprep.subr.mxu0 0.0
    %1727 = vmatpush1.msra.mxu0 0.0
    %1728 = vmatprep.subr.mxu0 0.0
    %1729 = vmatpush1.msra.mxu0 0.0
    %1730 = vmatprep.subr.mxu0 0.0
    %1731 = vmatpush1.msra.mxu0 0.0
    %1732 = vmatprep.subr.mxu0 0.0
    %1733 = vmatpush1.msra.mxu0 0.0
    %1734 = vmatprep.mubr.f32.mxu0 0.0
    %1735 = vmatmul.mubr.f32.gmra.mrb[0].mxu0 %v1596
    %v1736 = vpop.f32.mrb[0].mxu0
    %v1737 = vadd.f32 0.0, %v1736
    %v1738 = vpop.f32.mrb[0].mxu0
    %v1739 = vadd.f32 0.0, %v1738
    %1740 = vdwg.mxu0
    %v1741 = vadd.f32 %v535, %v1666
    %v1742 = vadd.f32 %v536, %v1668
    %v1743 = vadd.f32 %v537, %v1737
    %v1744 = vadd.f32 %v538, %v1739
    %v1745 = vtanh.pop %v1741
    %v1746 = vtanh.pop %v1742
    %v1747 = vtanh.pop %v1743
    %v1748 = vtanh.pop %v1744
    %v1749 = vmul.f32 %v214, %v1745
    %v1750 = vmul.f32 %v215, %v1746
    %v1751 = vmul.f32 %v216, %v1747
    %v1752 = vmul.f32 %v217, %v1748
    %v1753 = vadd.f32 %v218, %v1749
    %v1754 = vadd.f32 %v219, %v1750
    %v1755 = vadd.f32 %v220, %v1751
    %v1756 = vadd.f32 %v221, %v1752
    %v1757 = vmul.f32 %v1754, %v1594
    %v1758 = vmul.f32 %v1753, %v1755
    %v1759 = vadd.f32 %v1757, %v1758
    %v1760 = vtanh.pop %v1759
    %v1761 = vmul.f32 %v1756, %v1760
    %1762 = vst.msk [vmem:[#allocation2 + $0x30] sm:$0xff] %vm770, %v1761
    %1763 = vst.msk [vmem:[#allocation2 + $0x8] sm:$0xff] %vm772, %v1761
    %1764 = vmatprep.subr.mxu0 %v544
    %1765 = vmatpush1.msra.mxu0 %v543
    %1766 = vmatprep.subr.mxu0 %v548
    %1767 = vmatpush1.msra.mxu0 %v547
    %1768 = vmatprep.subr.mxu0 %v552
    %1769 = vmatpush1.msra.mxu0 %v551
    %1770 = vmatprep.subr.mxu0 %v556
    %1771 = vmatpush1.msra.mxu0 %v555
    %1772 = vmatprep.subr.mxu0 %v560
    %1773 = vmatpush1.msra.mxu0 %v559
    %1774 = vmatprep.subr.mxu0 %v564
    %1775 = vmatpush1.msra.mxu0 %v563
    %1776 = vmatprep.subr.mxu0 %v568
    %1777 = vmatpush1.msra.mxu0 %v567
    %1778 = vmatprep.subr.mxu0 %v572
    %1779 = vmatpush1.msra.mxu0 %v571
    %1780 = vmatprep.subr.mxu0 %v576
    %1781 = vmatpush1.msra.mxu0 %v575
    %1782 = vmatprep.subr.mxu0 %v580
    %1783 = vmatpush1.msra.mxu0 %v579
    %1784 = vmatprep.subr.mxu0 %v584
    %1785 = vmatpush1.msra.mxu0 %v583
    %1786 = vmatprep.subr.mxu0 %v588
    %1787 = vmatpush1.msra.mxu0 %v587
    %1788 = vmatprep.subr.mxu0 %v592
    %1789 = vmatpush1.msra.mxu0 %v591
    %1790 = vmatprep.subr.mxu0 %v596
    %1791 = vmatpush1.msra.mxu0 %v595
    %1792 = vmatprep.subr.mxu0 %v600
    %1793 = vmatpush1.msra.mxu0 %v599
    %1794 = vmatprep.subr.mxu0 %v604
    %1795 = vmatpush1.msra.mxu0 %v603
    %1796 = vmatprep.subr.mxu0 0.0
    %1797 = vmatpush1.msra.mxu0 0.0
    %1798 = vmatprep.subr.mxu0 0.0
    %1799 = vmatpush1.msra.mxu0 0.0
    %1800 = vmatprep.subr.mxu0 0.0
    %1801 = vmatpush1.msra.mxu0 0.0
    %1802 = vmatprep.subr.mxu0 0.0
    %1803 = vmatpush1.msra.mxu0 0.0
    %1804 = vmatprep.subr.mxu0 0.0
    %1805 = vmatpush1.msra.mxu0 0.0
    %1806 = vmatprep.subr.mxu0 0.0
    %1807 = vmatpush1.msra.mxu0 0.0
    %1808 = vmatprep.subr.mxu0 0.0
    %1809 = vmatpush1.msra.mxu0 0.0
    %1810 = vmatprep.subr.mxu0 0.0
    %1811 = vmatpush1.msra.mxu0 0.0
    %1812 = vmatprep.subr.mxu0 0.0
    %1813 = vmatpush1.msra.mxu0 0.0
    %1814 = vmatprep.subr.mxu0 0.0
    %1815 = vmatpush1.msra.mxu0 0.0
    %1816 = vmatprep.subr.mxu0 0.0
    %1817 = vmatpush1.msra.mxu0 0.0
    %1818 = vmatprep.subr.mxu0 0.0
    %1819 = vmatpush1.msra.mxu0 0.0
    %1820 = vmatprep.subr.mxu0 0.0
    %1821 = vmatpush1.msra.mxu0 0.0
    %1822 = vmatprep.subr.mxu0 0.0
    %1823 = vmatpush1.msra.mxu0 0.0
    %1824 = vmatprep.subr.mxu0 0.0
    %1825 = vmatpush1.msra.mxu0 0.0
    %1826 = vmatprep.subr.mxu0 0.0
    %1827 = vmatpush1.msra.mxu0 0.0
    %1828 = vmatprep.mubr.f32.mxu0 0.0
    %1829 = vmatmul.mubr.f32.gmra.mrb[0].mxu0 %v1761
    %v1830 = vpop.f32.mrb[0].mxu0
    %v1831 = vadd.f32 0.0, %v1830
    %v1832 = vpop.f32.mrb[0].mxu0
    %v1833 = vadd.f32 0.0, %v1832
    %1834 = vdwg.mxu0
    %1835 = vmatprep.subr.mxu0 %v546
    %1836 = vmatpush1.msra.mxu0 %v545
    %1837 = vmatprep.subr.mxu0 %v550
    %1838 = vmatpush1.msra.mxu0 %v549
    %1839 = vmatprep.subr.mxu0 %v554
    %1840 = vmatpush1.msra.mxu0 %v553
    %1841 = vmatprep.subr.mxu0 %v558
    %1842 = vmatpush1.msra.mxu0 %v557
    %1843 = vmatprep.subr.mxu0 %v562
    %1844 = vmatpush1.msra.mxu0 %v561
    %1845 = vmatprep.subr.mxu0 %v566
    %1846 = vmatpush1.msra.mxu0 %v565
    %1847 = vmatprep.subr.mxu0 %v570
    %1848 = vmatpush1.msra.mxu0 %v569
    %1849 = vmatprep.subr.mxu0 %v574
    %1850 = vmatpush1.msra.mxu0 %v573
    %1851 = vmatprep.subr.mxu0 %v578
    %1852 = vmatpush1.msra.mxu0 %v577
    %1853 = vmatprep.subr.mxu0 %v582
    %1854 = vmatpush1.msra.mxu0 %v581
    %1855 = vmatprep.subr.mxu0 %v586
    %1856 = vmatpush1.msra.mxu0 %v585
    %1857 = vmatprep.subr.mxu0 %v590
    %1858 = vmatpush1.msra.mxu0 %v589
    %1859 = vmatprep.subr.mxu0 %v594
    %1860 = vmatpush1.msra.mxu0 %v593
    %1861 = vmatprep.subr.mxu0 %v598
    %1862 = vmatpush1.msra.mxu0 %v597
    %1863 = vmatprep.subr.mxu0 %v602
    %1864 = vmatpush1.msra.mxu0 %v601
    %1865 = vmatprep.subr.mxu0 %v606
    %1866 = vmatpush1.msra.mxu0 %v605
    %1867 = vmatprep.subr.mxu0 0.0
    %1868 = vmatpush1.msra.mxu0 0.0
    %1869 = vmatprep.subr.mxu0 0.0
    %1870 = vmatpush1.msra.mxu0 0.0
    %1871 = vmatprep.subr.mxu0 0.0
    %1872 = vmatpush1.msra.mxu0 0.0
    %1873 = vmatprep.subr.mxu0 0.0
    %1874 = vmatpush1.msra.mxu0 0.0
    %1875 = vmatprep.subr.mxu0 0.0
    %1876 = vmatpush1.msra.mxu0 0.0
    %1877 = vmatprep.subr.mxu0 0.0
    %1878 = vmatpush1.msra.mxu0 0.0
    %1879 = vmatprep.subr.mxu0 0.0
    %1880 = vmatpush1.msra.mxu0 0.0
    %1881 = vmatprep.subr.mxu0 0.0
    %1882 = vmatpush1.msra.mxu0 0.0
    %1883 = vmatprep.subr.mxu0 0.0
    %1884 = vmatpush1.msra.mxu0 0.0
    %1885 = vmatprep.subr.mxu0 0.0
    %1886 = vmatpush1.msra.mxu0 0.0
    %1887 = vmatprep.subr.mxu0 0.0
    %1888 = vmatpush1.msra.mxu0 0.0
    %1889 = vmatprep.subr.mxu0 0.0
    %1890 = vmatpush1.msra.mxu0 0.0
    %1891 = vmatprep.subr.mxu0 0.0
    %1892 = vmatpush1.msra.mxu0 0.0
    %1893 = vmatprep.subr.mxu0 0.0
    %1894 = vmatpush1.msra.mxu0 0.0
    %1895 = vmatprep.subr.mxu0 0.0
    %1896 = vmatpush1.msra.mxu0 0.0
    %1897 = vmatprep.subr.mxu0 0.0
    %1898 = vmatpush1.msra.mxu0 0.0
    %1899 = vmatprep.mubr.f32.mxu0 0.0
    %1900 = vmatmul.mubr.f32.gmra.mrb[0].mxu0 %v1761
    %v1901 = vpop.f32.mrb[0].mxu0
    %v1902 = vadd.f32 0.0, %v1901
    %v1903 = vpop.f32.mrb[0].mxu0
    %v1904 = vadd.f32 0.0, %v1903
    %1905 = vdwg.mxu0
    %v1906 = vadd.f32 %v539, %v1831
    %v1907 = vadd.f32 %v540, %v1833
    %v1908 = vadd.f32 %v541, %v1902
    %v1909 = vadd.f32 %v542, %v1904
    %v1910 = vtanh.pop %v1906
    %v1911 = vtanh.pop %v1907
    %v1912 = vtanh.pop %v1908
    %v1913 = vtanh.pop %v1909
    %v1914 = vmul.f32 %v214, %v1910
    %v1915 = vmul.f32 %v215, %v1911
    %v1916 = vmul.f32 %v216, %v1912
    %v1917 = vmul.f32 %v217, %v1913
    %v1918 = vadd.f32 %v218, %v1914
    %v1919 = vadd.f32 %v219, %v1915
    %v1920 = vadd.f32 %v220, %v1916
    %v1921 = vadd.f32 %v221, %v1917
    %v1922 = vmul.f32 %v1919, %v1759
    %v1923 = vmul.f32 %v1918, %v1920
    %v1924 = vadd.f32 %v1922, %v1923
    %v1925 = vtanh.pop %v1924
    %v1926 = vmul.f32 %v1921, %v1925
    %1927 = vst.msk [vmem:[#allocation2 + $0x38] sm:$0xff] %vm770, %v1926
    %1928 = vst.msk [vmem:[#allocation2] sm:$0xff] %vm772, %v1926
    %v1929 = vld [vmem:[#allocation2] sm:$0xff]
    %v1930 = vld [vmem:[#allocation2 + $0x8] sm:$0xff]
    %v1931 = vld [vmem:[#allocation2 + $0x10] sm:$0xff]
    %v1932 = vld [vmem:[#allocation2 + $0x18] sm:$0xff]
    %v1933 = vld [vmem:[#allocation2 + $0x20] sm:$0xff]
    %v1934 = vld [vmem:[#allocation2 + $0x28] sm:$0xff]
    %v1935 = vld [vmem:[#allocation2 + $0x30] sm:$0xff]
    %v1936 = vld [vmem:[#allocation2 + $0x38] sm:$0xff]
    %v1937 = vld [vmem:[#allocation11] sm:$0xff]
    %v1938 = vld [vmem:[#allocation11 + $0x8] sm:$0xff]
    %v1939 = vld [vmem:[#allocation11 + $0x10] sm:$0xff]
    %v1940 = vld [vmem:[#allocation11 + $0x18] sm:$0xff]
    %v1941 = vld [vmem:[#allocation11 + $0x20] sm:$0xff]
    %v1942 = vld [vmem:[#allocation11 + $0x28] sm:$0xff]
    %v1943 = vld [vmem:[#allocation11 + $0x30] sm:$0xff]
    %v1944 = vld [vmem:[#allocation11 + $0x38] sm:$0xff]
    %v1945 = vld [vmem:[#allocation11 + $0x40] sm:$0xff]
    %v1946 = vld [vmem:[#allocation11 + $0x48] sm:$0xff]
    %v1947 = vld [vmem:[#allocation11 + $0x50] sm:$0xff]
    %v1948 = vld [vmem:[#allocation11 + $0x58] sm:$0xff]
    %v1949 = vld [vmem:[#allocation11 + $0x60] sm:$0xff]
    %v1950 = vld [vmem:[#allocation11 + $0x68] sm:$0xff]
    %v1951 = vld [vmem:[#allocation11 + $0x70] sm:$0xff]
    %v1952 = vld [vmem:[#allocation11 + $0x78] sm:$0xff]
    %v1953 = vld [vmem:[#allocation11 + $0x80] sm:$0xff]
    %v1954 = vld [vmem:[#allocation11 + $0x88] sm:$0xff]
    %v1955 = vld [vmem:[#allocation11 + $0x90] sm:$0xff]
    %v1956 = vld [vmem:[#allocation11 + $0x98] sm:$0xff]
    %v1957 = vld [vmem:[#allocation11 + $0xa0] sm:$0xff]
    %v1958 = vld [vmem:[#allocation11 + $0xa8] sm:$0xff]
    %v1959 = vld [vmem:[#allocation11 + $0xb0] sm:$0xff]
    %v1960 = vld [vmem:[#allocation11 + $0xb8] sm:$0xff]
    %v1961 = vld [vmem:[#allocation11 + $0xc0] sm:$0xff]
    %v1962 = vld [vmem:[#allocation11 + $0xc8] sm:$0xff]
    %v1963 = vld [vmem:[#allocation11 + $0xd0] sm:$0xff]
    %v1964 = vld [vmem:[#allocation11 + $0xd8] sm:$0xff]
    %v1965 = vld [vmem:[#allocation11 + $0xe0] sm:$0xff]
    %v1966 = vld [vmem:[#allocation11 + $0xe8] sm:$0xff]
    %v1967 = vld [vmem:[#allocation11 + $0xf0] sm:$0xff]
    %v1968 = vld [vmem:[#allocation11 + $0xf8] sm:$0xff]
    %v1969 = vld [vmem:[#allocation11 + $0x100] sm:$0xff]
    %v1970 = vld [vmem:[#allocation11 + $0x108] sm:$0xff]
    %v1971 = vld [vmem:[#allocation11 + $0x110] sm:$0xff]
    %v1972 = vld [vmem:[#allocation11 + $0x118] sm:$0xff]
    %v1973 = vld [vmem:[#allocation11 + $0x120] sm:$0xff]
    %v1974 = vld [vmem:[#allocation11 + $0x128] sm:$0xff]
    %v1975 = vld [vmem:[#allocation11 + $0x130] sm:$0xff]
    %v1976 = vld [vmem:[#allocation11 + $0x138] sm:$0xff]
    %v1977 = vld [vmem:[#allocation11 + $0x140] sm:$0xff]
    %v1978 = vld [vmem:[#allocation11 + $0x148] sm:$0xff]
    %v1979 = vld [vmem:[#allocation11 + $0x150] sm:$0xff]
    %v1980 = vld [vmem:[#allocation11 + $0x158] sm:$0xff]
    %v1981 = vld [vmem:[#allocation11 + $0x160] sm:$0xff]
    %v1982 = vld [vmem:[#allocation11 + $0x168] sm:$0xff]
    %v1983 = vld [vmem:[#allocation11 + $0x170] sm:$0xff]
    %v1984 = vld [vmem:[#allocation11 + $0x178] sm:$0xff]
    %v1985 = vld [vmem:[#allocation11 + $0x180] sm:$0xff]
    %v1986 = vld [vmem:[#allocation11 + $0x188] sm:$0xff]
    %v1987 = vld [vmem:[#allocation11 + $0x190] sm:$0xff]
    %v1988 = vld [vmem:[#allocation11 + $0x198] sm:$0xff]
    %v1989 = vld [vmem:[#allocation11 + $0x1a0] sm:$0xff]
    %v1990 = vld [vmem:[#allocation11 + $0x1a8] sm:$0xff]
    %v1991 = vld [vmem:[#allocation11 + $0x1b0] sm:$0xff]
    %v1992 = vld [vmem:[#allocation11 + $0x1b8] sm:$0xff]
    %v1993 = vld [vmem:[#allocation11 + $0x1c0] sm:$0xff]
    %v1994 = vld [vmem:[#allocation11 + $0x1c8] sm:$0xff]
    %v1995 = vld [vmem:[#allocation11 + $0x1d0] sm:$0xff]
    %v1996 = vld [vmem:[#allocation11 + $0x1d8] sm:$0xff]
    %v1997 = vld [vmem:[#allocation11 + $0x1e0] sm:$0xff]
    %v1998 = vld [vmem:[#allocation11 + $0x1e8] sm:$0xff]
    %v1999 = vld [vmem:[#allocation11 + $0x1f0] sm:$0xff]
    %v2000 = vld [vmem:[#allocation11 + $0x1f8] sm:$0xff]
    %v2001 = vld [vmem:[#allocation14] sm:$0xf]
    %v2003 = vlaneseq
    %v2004 = vshrl.u32 %v2003, 7
    %v2005 = vsub.s32 0, %v2004
    %v2006 = vrot.slane %v2001, %v2005
    %v2007 = vlaneseq
    %v2008 = vshrl.u32 %v2007, 7
    %v2009 = vsub.s32 1, %v2008
    %v2010 = vrot.slane %v2001, %v2009
    %v2011 = vlaneseq
    %v2012 = vshrl.u32 %v2011, 7
    %v2013 = vsub.s32 2, %v2012
    %v2014 = vrot.slane %v2001, %v2013
    %v2015 = vlaneseq
    %v2016 = vshrl.u32 %v2015, 7
    %v2017 = vsub.s32 3, %v2016
    %v2018 = vrot.slane %v2001, %v2017
    %2023 = vmatprep.subr.mxu0 %v1938
    %2024 = vmatpush1.msra.mxu0 %v1937
    %2025 = vmatprep.subr.mxu0 %v1942
    %2026 = vmatpush1.msra.mxu0 %v1941
    %2027 = vmatprep.subr.mxu0 %v1946
    %2028 = vmatpush1.msra.mxu0 %v1945
    %2029 = vmatprep.subr.mxu0 %v1950
    %2030 = vmatpush1.msra.mxu0 %v1949
    %2031 = vmatprep.subr.mxu0 %v1954
    %2032 = vmatpush1.msra.mxu0 %v1953
    %2033 = vmatprep.subr.mxu0 %v1958
    %2034 = vmatpush1.msra.mxu0 %v1957
    %2035 = vmatprep.subr.mxu0 %v1962
    %2036 = vmatpush1.msra.mxu0 %v1961
    %2037 = vmatprep.subr.mxu0 %v1966
    %2038 = vmatpush1.msra.mxu0 %v1965
    %2039 = vmatprep.subr.mxu0 %v1970
    %2040 = vmatpush1.msra.mxu0 %v1969
    %2041 = vmatprep.subr.mxu0 %v1974
    %2042 = vmatpush1.msra.mxu0 %v1973
    %2043 = vmatprep.subr.mxu0 %v1978
    %2044 = vmatpush1.msra.mxu0 %v1977
    %2045 = vmatprep.subr.mxu0 %v1982
    %2046 = vmatpush1.msra.mxu0 %v1981
    %2047 = vmatprep.subr.mxu0 %v1986
    %2048 = vmatpush1.msra.mxu0 %v1985
    %2049 = vmatprep.subr.mxu0 %v1990
    %2050 = vmatpush1.msra.mxu0 %v1989
    %2051 = vmatprep.subr.mxu0 %v1994
    %2052 = vmatpush1.msra.mxu0 %v1993
    %2053 = vmatprep.subr.mxu0 %v1998
    %2054 = vmatpush1.msra.mxu0 %v1997
    %2055 = vmatprep.subr.mxu0 0.0
    %2056 = vmatpush1.msra.mxu0 0.0
    %2057 = vmatprep.subr.mxu0 0.0
    %2058 = vmatpush1.msra.mxu0 0.0
    %2059 = vmatprep.subr.mxu0 0.0
    %2060 = vmatpush1.msra.mxu0 0.0
    %2061 = vmatprep.subr.mxu0 0.0
    %2062 = vmatpush1.msra.mxu0 0.0
    %2063 = vmatprep.subr.mxu0 0.0
    %2064 = vmatpush1.msra.mxu0 0.0
    %2065 = vmatprep.subr.mxu0 0.0
    %2066 = vmatpush1.msra.mxu0 0.0
    %2067 = vmatprep.subr.mxu0 0.0
    %2068 = vmatpush1.msra.mxu0 0.0
    %2069 = vmatprep.subr.mxu0 0.0
    %2070 = vmatpush1.msra.mxu0 0.0
    %2071 = vmatprep.subr.mxu0 0.0
    %2072 = vmatpush1.msra.mxu0 0.0
    %2073 = vmatprep.subr.mxu0 0.0
    %2074 = vmatpush1.msra.mxu0 0.0
    %2075 = vmatprep.subr.mxu0 0.0
    %2076 = vmatpush1.msra.mxu0 0.0
    %2077 = vmatprep.subr.mxu0 0.0
    %2078 = vmatpush1.msra.mxu0 0.0
    %2079 = vmatprep.subr.mxu0 0.0
    %2080 = vmatpush1.msra.mxu0 0.0
    %2081 = vmatprep.subr.mxu0 0.0
    %2082 = vmatpush1.msra.mxu0 0.0
    %2083 = vmatprep.subr.mxu0 0.0
    %2084 = vmatpush1.msra.mxu0 0.0
    %2085 = vmatprep.subr.mxu0 0.0
    %2086 = vmatpush1.msra.mxu0 0.0
    %2087 = vmatprep.mubr.f32.mxu0 0.0
    %2088 = vmatmul.mubr.f32.gmra.mrb[0].mxu0 %v1929
    %v2089 = vpop.f32.mrb[0].mxu0
    %v2090 = vadd.f32 %v2006, %v2089
    %v2091 = vpop.f32.mrb[0].mxu0
    %v2092 = vadd.f32 %v2010, %v2091
    %2093 = vmatprep.mubr.f32.mxu0 0.0
    %2094 = vmatmul.mubr.f32.gmra.mrb[0].mxu0 %v1930
    %v2095 = vpop.f32.mrb[0].mxu0
    %v2096 = vadd.f32 %v2006, %v2095
    %v2097 = vpop.f32.mrb[0].mxu0
    %v2098 = vadd.f32 %v2010, %v2097
    %2099 = vmatprep.mubr.f32.mxu0 0.0
    %2100 = vmatmul.mubr.f32.gmra.mrb[0].mxu0 %v1931
    %v2101 = vpop.f32.mrb[0].mxu0
    %v2102 = vadd.f32 %v2006, %v2101
    %v2103 = vpop.f32.mrb[0].mxu0
    %v2104 = vadd.f32 %v2010, %v2103
    %2105 = vmatprep.mubr.f32.mxu0 0.0
    %2106 = vmatmul.mubr.f32.gmra.mrb[0].mxu0 %v1932
    %v2107 = vpop.f32.mrb[0].mxu0
    %v2108 = vadd.f32 %v2006, %v2107
    %v2109 = vpop.f32.mrb[0].mxu0
    %v2110 = vadd.f32 %v2010, %v2109
    %2111 = vmatprep.mubr.f32.mxu0 0.0
    %2112 = vmatmul.mubr.f32.gmra.mrb[0].mxu0 %v1933
    %v2113 = vpop.f32.mrb[0].mxu0
    %v2114 = vadd.f32 %v2006, %v2113
    %v2115 = vpop.f32.mrb[0].mxu0
    %v2116 = vadd.f32 %v2010, %v2115
    %2117 = vmatprep.mubr.f32.mxu0 0.0
    %2118 = vmatmul.mubr.f32.gmra.mrb[0].mxu0 %v1934
    %v2119 = vpop.f32.mrb[0].mxu0
    %v2120 = vadd.f32 %v2006, %v2119
    %v2121 = vpop.f32.mrb[0].mxu0
    %v2122 = vadd.f32 %v2010, %v2121
    %2123 = vmatprep.mubr.f32.mxu0 0.0
    %2124 = vmatmul.mubr.f32.gmra.mrb[0].mxu0 %v1935
    %v2125 = vpop.f32.mrb[0].mxu0
    %v2126 = vadd.f32 %v2006, %v2125
    %v2127 = vpop.f32.mrb[0].mxu0
    %v2128 = vadd.f32 %v2010, %v2127
    %2129 = vmatprep.mubr.f32.mxu0 0.0
    %2130 = vmatmul.mubr.f32.gmra.mrb[0].mxu0 %v1936
    %v2131 = vpop.f32.mrb[0].mxu0
    %v2132 = vadd.f32 %v2006, %v2131
    %v2133 = vpop.f32.mrb[0].mxu0
    %v2134 = vadd.f32 %v2010, %v2133
    %2135 = vdwg.mxu0
    %2136 = vmatprep.subr.mxu0 %v1940
    %2137 = vmatpush1.msra.mxu0 %v1939
    %2138 = vmatprep.subr.mxu0 %v1944
    %2139 = vmatpush1.msra.mxu0 %v1943
    %2140 = vmatprep.subr.mxu0 %v1948
    %2141 = vmatpush1.msra.mxu0 %v1947
    %2142 = vmatprep.subr.mxu0 %v1952
    %2143 = vmatpush1.msra.mxu0 %v1951
    %2144 = vmatprep.subr.mxu0 %v1956
    %2145 = vmatpush1.msra.mxu0 %v1955
    %2146 = vmatprep.subr.mxu0 %v1960
    %2147 = vmatpush1.msra.mxu0 %v1959
    %2148 = vmatprep.subr.mxu0 %v1964
    %2149 = vmatpush1.msra.mxu0 %v1963
    %2150 = vmatprep.subr.mxu0 %v1968
    %2151 = vmatpush1.msra.mxu0 %v1967
    %2152 = vmatprep.subr.mxu0 %v1972
    %2153 = vmatpush1.msra.mxu0 %v1971
    %2154 = vmatprep.subr.mxu0 %v1976
    %2155 = vmatpush1.msra.mxu0 %v1975
    %2156 = vmatprep.subr.mxu0 %v1980
    %2157 = vmatpush1.msra.mxu0 %v1979
    %2158 = vmatprep.subr.mxu0 %v1984
    %2159 = vmatpush1.msra.mxu0 %v1983
    %2160 = vmatprep.subr.mxu0 %v1988
    %2161 = vmatpush1.msra.mxu0 %v1987
    %2162 = vmatprep.subr.mxu0 %v1992
    %2163 = vmatpush1.msra.mxu0 %v1991
    %2164 = vmatprep.subr.mxu0 %v1996
    %2165 = vmatpush1.msra.mxu0 %v1995
    %2166 = vmatprep.subr.mxu0 %v2000
    %2167 = vmatpush1.msra.mxu0 %v1999
    %2168 = vmatprep.subr.mxu0 0.0
    %2169 = vmatpush1.msra.mxu0 0.0
    %2170 = vmatprep.subr.mxu0 0.0
    %2171 = vmatpush1.msra.mxu0 0.0
    %2172 = vmatprep.subr.mxu0 0.0
    %2173 = vmatpush1.msra.mxu0 0.0
    %2174 = vmatprep.subr.mxu0 0.0
    %2175 = vmatpush1.msra.mxu0 0.0
    %2176 = vmatprep.subr.mxu0 0.0
    %2177 = vmatpush1.msra.mxu0 0.0
    %2178 = vmatprep.subr.mxu0 0.0
    %2179 = vmatpush1.msra.mxu0 0.0
    %2180 = vmatprep.subr.mxu0 0.0
    %2181 = vmatpush1.msra.mxu0 0.0
    %2182 = vmatprep.subr.mxu0 0.0
    %2183 = vmatpush1.msra.mxu0 0.0
    %2184 = vmatprep.subr.mxu0 0.0
    %2185 = vmatpush1.msra.mxu0 0.0
    %2186 = vmatprep.subr.mxu0 0.0
    %2187 = vmatpush1.msra.mxu0 0.0
    %2188 = vmatprep.subr.mxu0 0.0
    %2189 = vmatpush1.msra.mxu0 0.0
    %2190 = vmatprep.subr.mxu0 0.0
    %2191 = vmatpush1.msra.mxu0 0.0
    %2192 = vmatprep.subr.mxu0 0.0
    %2193 = vmatpush1.msra.mxu0 0.0
    %2194 = vmatprep.subr.mxu0 0.0
    %2195 = vmatpush1.msra.mxu0 0.0
    %2196 = vmatprep.subr.mxu0 0.0
    %2197 = vmatpush1.msra.mxu0 0.0
    %2198 = vmatprep.subr.mxu0 0.0
    %2199 = vmatpush1.msra.mxu0 0.0
    %2200 = vmatprep.mubr.f32.mxu0 0.0
    %2201 = vmatmul.mubr.f32.gmra.mrb[0].mxu0 %v1929
    %v2202 = vpop.f32.mrb[0].mxu0
    %v2203 = vadd.f32 %v2014, %v2202
    %v2204 = vpop.f32.mrb[0].mxu0
    %v2205 = vadd.f32 %v2018, %v2204
    %2206 = vmatprep.mubr.f32.mxu0 0.0
    %2207 = vmatmul.mubr.f32.gmra.mrb[0].mxu0 %v1930
    %v2208 = vpop.f32.mrb[0].mxu0
    %v2209 = vadd.f32 %v2014, %v2208
    %v2210 = vpop.f32.mrb[0].mxu0
    %v2211 = vadd.f32 %v2018, %v2210
    %2212 = vmatprep.mubr.f32.mxu0 0.0
    %2213 = vmatmul.mubr.f32.gmra.mrb[0].mxu0 %v1931
    %v2214 = vpop.f32.mrb[0].mxu0
    %v2215 = vadd.f32 %v2014, %v2214
    %v2216 = vpop.f32.mrb[0].mxu0
    %v2217 = vadd.f32 %v2018, %v2216
    %2218 = vmatprep.mubr.f32.mxu0 0.0
    %2219 = vmatmul.mubr.f32.gmra.mrb[0].mxu0 %v1932
    %v2220 = vpop.f32.mrb[0].mxu0
    %v2221 = vadd.f32 %v2014, %v2220
    %v2222 = vpop.f32.mrb[0].mxu0
    %v2223 = vadd.f32 %v2018, %v2222
    %2224 = vmatprep.mubr.f32.mxu0 0.0
    %2225 = vmatmul.mubr.f32.gmra.mrb[0].mxu0 %v1933
    %v2226 = vpop.f32.mrb[0].mxu0
    %v2227 = vadd.f32 %v2014, %v2226
    %v2228 = vpop.f32.mrb[0].mxu0
    %v2229 = vadd.f32 %v2018, %v2228
    %2230 = vmatprep.mubr.f32.mxu0 0.0
    %2231 = vmatmul.mubr.f32.gmra.mrb[0].mxu0 %v1934
    %v2232 = vpop.f32.mrb[0].mxu0
    %v2233 = vadd.f32 %v2014, %v2232
    %v2234 = vpop.f32.mrb[0].mxu0
    %v2235 = vadd.f32 %v2018, %v2234
    %2236 = vmatprep.mubr.f32.mxu0 0.0
    %2237 = vmatmul.mubr.f32.gmra.mrb[0].mxu0 %v1935
    %v2238 = vpop.f32.mrb[0].mxu0
    %v2239 = vadd.f32 %v2014, %v2238
    %v2240 = vpop.f32.mrb[0].mxu0
    %v2241 = vadd.f32 %v2018, %v2240
    %2242 = vmatprep.mubr.f32.mxu0 0.0
    %2243 = vmatmul.mubr.f32.gmra.mrb[0].mxu0 %v1936
    %v2244 = vpop.f32.mrb[0].mxu0
    %v2245 = vadd.f32 %v2014, %v2244
    %v2246 = vpop.f32.mrb[0].mxu0
    %v2247 = vadd.f32 %v2018, %v2246
    %2248 = vdwg.mxu0
    %v2249 = vsel %vm202, %v2090, %v2132
    %v2250 = vsel %vm203, %v2092, %v2134
    %v2251 = vsel %vm204, %v2203, %v2245
    %v2252 = vsel %vm205, %v2205, %v2247
    %v2253 = vsel %vm202, %v2096, %v2126
    %v2254 = vsel %vm203, %v2098, %v2128
    %v2255 = vsel %vm204, %v2209, %v2239
    %v2256 = vsel %vm205, %v2211, %v2241
    %v2257 = vsel %vm202, %v2102, %v2120
    %v2258 = vsel %vm203, %v2104, %v2122
    %v2259 = vsel %vm204, %v2215, %v2233
    %v2260 = vsel %vm205, %v2217, %v2235
    %v2261 = vsel %vm202, %v2108, %v2114
    %v2262 = vsel %vm203, %v2110, %v2116
    %v2263 = vsel %vm204, %v2221, %v2227
    %v2264 = vsel %vm205, %v2223, %v2229
    %v2265 = vsel %vm202, %v2114, %v2108
    %v2266 = vsel %vm203, %v2116, %v2110
    %v2267 = vsel %vm204, %v2227, %v2221
    %v2268 = vsel %vm205, %v2229, %v2223
    %v2269 = vsel %vm202, %v2120, %v2102
    %v2270 = vsel %vm203, %v2122, %v2104
    %v2271 = vsel %vm204, %v2233, %v2215
    %v2272 = vsel %vm205, %v2235, %v2217
    %v2273 = vsel %vm202, %v2126, %v2096
    %v2274 = vsel %vm203, %v2128, %v2098
    %v2275 = vsel %vm204, %v2239, %v2209
    %v2276 = vsel %vm205, %v2241, %v2211
    %v2277 = vsel %vm202, %v2132, %v2090
    %v2278 = vsel %vm203, %v2134, %v2092
    %v2279 = vsel %vm204, %v2245, %v2203
    %v2280 = vsel %vm205, %v2247, %v2205
    %v2281 = vld [vmem:[#allocation12] sm:$0xff]
    %v2282 = vld [vmem:[#allocation12 + $0x8] sm:$0xff]
    %v2283 = vld [vmem:[#allocation12 + $0x10] sm:$0xff]
    %v2284 = vld [vmem:[#allocation12 + $0x18] sm:$0xff]
    %v2285 = vld [vmem:[#allocation12 + $0x20] sm:$0xff]
    %v2286 = vld [vmem:[#allocation12 + $0x28] sm:$0xff]
    %v2287 = vld [vmem:[#allocation12 + $0x30] sm:$0xff]
    %v2288 = vld [vmem:[#allocation12 + $0x38] sm:$0xff]
    %v2289 = vld [vmem:[#allocation12 + $0x40] sm:$0xff]
    %v2290 = vld [vmem:[#allocation12 + $0x48] sm:$0xff]
    %v2291 = vld [vmem:[#allocation12 + $0x50] sm:$0xff]
    %v2292 = vld [vmem:[#allocation12 + $0x58] sm:$0xff]
    %v2293 = vld [vmem:[#allocation12 + $0x60] sm:$0xff]
    %v2294 = vld [vmem:[#allocation12 + $0x68] sm:$0xff]
    %v2295 = vld [vmem:[#allocation12 + $0x70] sm:$0xff]
    %v2296 = vld [vmem:[#allocation12 + $0x78] sm:$0xff]
    %v2297 = vld [vmem:[#allocation12 + $0x80] sm:$0xff]
    %v2298 = vld [vmem:[#allocation12 + $0x88] sm:$0xff]
    %v2299 = vld [vmem:[#allocation12 + $0x90] sm:$0xff]
    %v2300 = vld [vmem:[#allocation12 + $0x98] sm:$0xff]
    %v2301 = vld [vmem:[#allocation12 + $0xa0] sm:$0xff]
    %v2302 = vld [vmem:[#allocation12 + $0xa8] sm:$0xff]
    %v2303 = vld [vmem:[#allocation12 + $0xb0] sm:$0xff]
    %v2304 = vld [vmem:[#allocation12 + $0xb8] sm:$0xff]
    %v2305 = vld [vmem:[#allocation12 + $0xc0] sm:$0xff]
    %v2306 = vld [vmem:[#allocation12 + $0xc8] sm:$0xff]
    %v2307 = vld [vmem:[#allocation12 + $0xd0] sm:$0xff]
    %v2308 = vld [vmem:[#allocation12 + $0xd8] sm:$0xff]
    %v2309 = vld [vmem:[#allocation12 + $0xe0] sm:$0xff]
    %v2310 = vld [vmem:[#allocation12 + $0xe8] sm:$0xff]
    %v2311 = vld [vmem:[#allocation12 + $0xf0] sm:$0xff]
    %v2312 = vld [vmem:[#allocation12 + $0xf8] sm:$0xff]
    %v2313 = vld [vmem:[#allocation12 + $0x100] sm:$0xff]
    %v2314 = vld [vmem:[#allocation12 + $0x108] sm:$0xff]
    %v2315 = vld [vmem:[#allocation12 + $0x110] sm:$0xff]
    %v2316 = vld [vmem:[#allocation12 + $0x118] sm:$0xff]
    %v2317 = vld [vmem:[#allocation12 + $0x120] sm:$0xff]
    %v2318 = vld [vmem:[#allocation12 + $0x128] sm:$0xff]
    %v2319 = vld [vmem:[#allocation12 + $0x130] sm:$0xff]
    %v2320 = vld [vmem:[#allocation12 + $0x138] sm:$0xff]
    %v2321 = vld [vmem:[#allocation12 + $0x140] sm:$0xff]
    %v2322 = vld [vmem:[#allocation12 + $0x148] sm:$0xff]
    %v2323 = vld [vmem:[#allocation12 + $0x150] sm:$0xff]
    %v2324 = vld [vmem:[#allocation12 + $0x158] sm:$0xff]
    %v2325 = vld [vmem:[#allocation12 + $0x160] sm:$0xff]
    %v2326 = vld [vmem:[#allocation12 + $0x168] sm:$0xff]
    %v2327 = vld [vmem:[#allocation12 + $0x170] sm:$0xff]
    %v2328 = vld [vmem:[#allocation12 + $0x178] sm:$0xff]
    %v2329 = vld [vmem:[#allocation12 + $0x180] sm:$0xff]
    %v2330 = vld [vmem:[#allocation12 + $0x188] sm:$0xff]
    %v2331 = vld [vmem:[#allocation12 + $0x190] sm:$0xff]
    %v2332 = vld [vmem:[#allocation12 + $0x198] sm:$0xff]
    %v2333 = vld [vmem:[#allocation12 + $0x1a0] sm:$0xff]
    %v2334 = vld [vmem:[#allocation12 + $0x1a8] sm:$0xff]
    %v2335 = vld [vmem:[#allocation12 + $0x1b0] sm:$0xff]
    %v2336 = vld [vmem:[#allocation12 + $0x1b8] sm:$0xff]
    %v2337 = vld [vmem:[#allocation12 + $0x1c0] sm:$0xff]
    %v2338 = vld [vmem:[#allocation12 + $0x1c8] sm:$0xff]
    %v2339 = vld [vmem:[#allocation12 + $0x1d0] sm:$0xff]
    %v2340 = vld [vmem:[#allocation12 + $0x1d8] sm:$0xff]
    %v2341 = vld [vmem:[#allocation12 + $0x1e0] sm:$0xff]
    %v2342 = vld [vmem:[#allocation12 + $0x1e8] sm:$0xff]
    %v2343 = vld [vmem:[#allocation12 + $0x1f0] sm:$0xff]
    %v2344 = vld [vmem:[#allocation12 + $0x1f8] sm:$0xff]
    %2345 = vmatprep.subr.mxu0 %v2282
    %2346 = vmatpush1.msra.mxu0 %v2281
    %2347 = vmatprep.subr.mxu0 %v2286
    %2348 = vmatpush1.msra.mxu0 %v2285
    %2349 = vmatprep.subr.mxu0 %v2290
    %2350 = vmatpush1.msra.mxu0 %v2289
    %2351 = vmatprep.subr.mxu0 %v2294
    %2352 = vmatpush1.msra.mxu0 %v2293
    %2353 = vmatprep.subr.mxu0 %v2298
    %2354 = vmatpush1.msra.mxu0 %v2297
    %2355 = vmatprep.subr.mxu0 %v2302
    %2356 = vmatpush1.msra.mxu0 %v2301
    %2357 = vmatprep.subr.mxu0 %v2306
    %2358 = vmatpush1.msra.mxu0 %v2305
    %2359 = vmatprep.subr.mxu0 %v2310
    %2360 = vmatpush1.msra.mxu0 %v2309
    %2361 = vmatprep.subr.mxu0 %v2314
    %2362 = vmatpush1.msra.mxu0 %v2313
    %2363 = vmatprep.subr.mxu0 %v2318
    %2364 = vmatpush1.msra.mxu0 %v2317
    %2365 = vmatprep.subr.mxu0 %v2322
    %2366 = vmatpush1.msra.mxu0 %v2321
    %2367 = vmatprep.subr.mxu0 %v2326
    %2368 = vmatpush1.msra.mxu0 %v2325
    %2369 = vmatprep.subr.mxu0 %v2330
    %2370 = vmatpush1.msra.mxu0 %v2329
    %2371 = vmatprep.subr.mxu0 %v2334
    %2372 = vmatpush1.msra.mxu0 %v2333
    %2373 = vmatprep.subr.mxu0 %v2338
    %2374 = vmatpush1.msra.mxu0 %v2337
    %2375 = vmatprep.subr.mxu0 %v2342
    %2376 = vmatpush1.msra.mxu0 %v2341
    %2377 = vmatprep.subr.mxu0 0.0
    %2378 = vmatpush1.msra.mxu0 0.0
    %2379 = vmatprep.subr.mxu0 0.0
    %2380 = vmatpush1.msra.mxu0 0.0
    %2381 = vmatprep.subr.mxu0 0.0
    %2382 = vmatpush1.msra.mxu0 0.0
    %2383 = vmatprep.subr.mxu0 0.0
    %2384 = vmatpush1.msra.mxu0 0.0
    %2385 = vmatprep.subr.mxu0 0.0
    %2386 = vmatpush1.msra.mxu0 0.0
    %2387 = vmatprep.subr.mxu0 0.0
    %2388 = vmatpush1.msra.mxu0 0.0
    %2389 = vmatprep.subr.mxu0 0.0
    %2390 = vmatpush1.msra.mxu0 0.0
    %2391 = vmatprep.subr.mxu0 0.0
    %2392 = vmatpush1.msra.mxu0 0.0
    %2393 = vmatprep.subr.mxu0 0.0
    %2394 = vmatpush1.msra.mxu0 0.0
    %2395 = vmatprep.subr.mxu0 0.0
    %2396 = vmatpush1.msra.mxu0 0.0
    %2397 = vmatprep.subr.mxu0 0.0
    %2398 = vmatpush1.msra.mxu0 0.0
    %2399 = vmatprep.subr.mxu0 0.0
    %2400 = vmatpush1.msra.mxu0 0.0
    %2401 = vmatprep.subr.mxu0 0.0
    %2402 = vmatpush1.msra.mxu0 0.0
    %2403 = vmatprep.subr.mxu0 0.0
    %2404 = vmatpush1.msra.mxu0 0.0
    %2405 = vmatprep.subr.mxu0 0.0
    %2406 = vmatpush1.msra.mxu0 0.0
    %2407 = vmatprep.subr.mxu0 0.0
    %2408 = vmatpush1.msra.mxu0 0.0
    %2409 = vmatprep.mubr.f32.mxu0 0.0
    %2410 = vmatmul.mubr.f32.gmra.mrb[0].mxu0 0.0
    %v2411 = vpop.f32.mrb[0].mxu0
    %v2412 = vadd.f32 0.0, %v2411
    %v2413 = vpop.f32.mrb[0].mxu0
    %v2414 = vadd.f32 0.0, %v2413
    %2415 = vdwg.mxu0
    %2416 = vmatprep.subr.mxu0 %v2284
    %2417 = vmatpush1.msra.mxu0 %v2283
    %2418 = vmatprep.subr.mxu0 %v2288
    %2419 = vmatpush1.msra.mxu0 %v2287
    %2420 = vmatprep.subr.mxu0 %v2292
    %2421 = vmatpush1.msra.mxu0 %v2291
    %2422 = vmatprep.subr.mxu0 %v2296
    %2423 = vmatpush1.msra.mxu0 %v2295
    %2424 = vmatprep.subr.mxu0 %v2300
    %2425 = vmatpush1.msra.mxu0 %v2299
    %2426 = vmatprep.subr.mxu0 %v2304
    %2427 = vmatpush1.msra.mxu0 %v2303
    %2428 = vmatprep.subr.mxu0 %v2308
    %2429 = vmatpush1.msra.mxu0 %v2307
    %2430 = vmatprep.subr.mxu0 %v2312
    %2431 = vmatpush1.msra.mxu0 %v2311
    %2432 = vmatprep.subr.mxu0 %v2316
    %2433 = vmatpush1.msra.mxu0 %v2315
    %2434 = vmatprep.subr.mxu0 %v2320
    %2435 = vmatpush1.msra.mxu0 %v2319
    %2436 = vmatprep.subr.mxu0 %v2324
    %2437 = vmatpush1.msra.mxu0 %v2323
    %2438 = vmatprep.subr.mxu0 %v2328
    %2439 = vmatpush1.msra.mxu0 %v2327
    %2440 = vmatprep.subr.mxu0 %v2332
    %2441 = vmatpush1.msra.mxu0 %v2331
    %2442 = vmatprep.subr.mxu0 %v2336
    %2443 = vmatpush1.msra.mxu0 %v2335
    %2444 = vmatprep.subr.mxu0 %v2340
    %2445 = vmatpush1.msra.mxu0 %v2339
    %2446 = vmatprep.subr.mxu0 %v2344
    %2447 = vmatpush1.msra.mxu0 %v2343
    %2448 = vmatprep.subr.mxu0 0.0
    %2449 = vmatpush1.msra.mxu0 0.0
    %2450 = vmatprep.subr.mxu0 0.0
    %2451 = vmatpush1.msra.mxu0 0.0
    %2452 = vmatprep.subr.mxu0 0.0
    %2453 = vmatpush1.msra.mxu0 0.0
    %2454 = vmatprep.subr.mxu0 0.0
    %2455 = vmatpush1.msra.mxu0 0.0
    %2456 = vmatprep.subr.mxu0 0.0
    %2457 = vmatpush1.msra.mxu0 0.0
    %2458 = vmatprep.subr.mxu0 0.0
    %2459 = vmatpush1.msra.mxu0 0.0
    %2460 = vmatprep.subr.mxu0 0.0
    %2461 = vmatpush1.msra.mxu0 0.0
    %2462 = vmatprep.subr.mxu0 0.0
    %2463 = vmatpush1.msra.mxu0 0.0
    %2464 = vmatprep.subr.mxu0 0.0
    %2465 = vmatpush1.msra.mxu0 0.0
    %2466 = vmatprep.subr.mxu0 0.0
    %2467 = vmatpush1.msra.mxu0 0.0
    %2468 = vmatprep.subr.mxu0 0.0
    %2469 = vmatpush1.msra.mxu0 0.0
    %2470 = vmatprep.subr.mxu0 0.0
    %2471 = vmatpush1.msra.mxu0 0.0
    %2472 = vmatprep.subr.mxu0 0.0
    %2473 = vmatpush1.msra.mxu0 0.0
    %2474 = vmatprep.subr.mxu0 0.0
    %2475 = vmatpush1.msra.mxu0 0.0
    %2476 = vmatprep.subr.mxu0 0.0
    %2477 = vmatpush1.msra.mxu0 0.0
    %2478 = vmatprep.subr.mxu0 0.0
    %2479 = vmatpush1.msra.mxu0 0.0
    %2480 = vmatprep.mubr.f32.mxu0 0.0
    %2481 = vmatmul.mubr.f32.gmra.mrb[0].mxu0 0.0
    %v2482 = vpop.f32.mrb[0].mxu0
    %v2483 = vadd.f32 0.0, %v2482
    %v2484 = vpop.f32.mrb[0].mxu0
    %v2485 = vadd.f32 0.0, %v2484
    %2486 = vdwg.mxu0
    %v2487 = vadd.f32 %v2249, %v2412
    %v2488 = vadd.f32 %v2250, %v2414
    %v2489 = vadd.f32 %v2251, %v2483
    %v2490 = vadd.f32 %v2252, %v2485
    %v2491 = vtanh.pop %v2487
    %v2492 = vtanh.pop %v2488
    %v2493 = vtanh.pop %v2489
    %v2494 = vtanh.pop %v2490
    %v2495 = vmul.f32 %v214, %v2491
    %v2496 = vmul.f32 %v215, %v2492
    %v2497 = vmul.f32 %v216, %v2493
    %v2498 = vmul.f32 %v217, %v2494
    %v2499 = vadd.f32 %v218, %v2495
    %v2500 = vadd.f32 %v219, %v2496
    %v2501 = vadd.f32 %v220, %v2497
    %v2502 = vadd.f32 %v221, %v2498
    %v2503 = vmul.f32 %v2500, 0.0
    %v2504 = vmul.f32 %v2499, %v2501
    %v2505 = vadd.f32 %v2503, %v2504
    %v2506 = vtanh.pop %v2505
    %v2507 = vmul.f32 %v2502, %v2506
    %2508 = vmatprep.subr.mxu0 %v2282
    %2509 = vmatpush1.msra.mxu0 %v2281
    %2510 = vmatprep.subr.mxu0 %v2286
    %2511 = vmatpush1.msra.mxu0 %v2285
    %2512 = vmatprep.subr.mxu0 %v2290
    %2513 = vmatpush1.msra.mxu0 %v2289
    %2514 = vmatprep.subr.mxu0 %v2294
    %2515 = vmatpush1.msra.mxu0 %v2293
    %2516 = vmatprep.subr.mxu0 %v2298
    %2517 = vmatpush1.msra.mxu0 %v2297
    %2518 = vmatprep.subr.mxu0 %v2302
    %2519 = vmatpush1.msra.mxu0 %v2301
    %2520 = vmatprep.subr.mxu0 %v2306
    %2521 = vmatpush1.msra.mxu0 %v2305
    %2522 = vmatprep.subr.mxu0 %v2310
    %2523 = vmatpush1.msra.mxu0 %v2309
    %2524 = vmatprep.subr.mxu0 %v2314
    %2525 = vmatpush1.msra.mxu0 %v2313
    %2526 = vmatprep.subr.mxu0 %v2318
    %2527 = vmatpush1.msra.mxu0 %v2317
    %2528 = vmatprep.subr.mxu0 %v2322
    %2529 = vmatpush1.msra.mxu0 %v2321
    %2530 = vmatprep.subr.mxu0 %v2326
    %2531 = vmatpush1.msra.mxu0 %v2325
    %2532 = vmatprep.subr.mxu0 %v2330
    %2533 = vmatpush1.msra.mxu0 %v2329
    %2534 = vmatprep.subr.mxu0 %v2334
    %2535 = vmatpush1.msra.mxu0 %v2333
    %2536 = vmatprep.subr.mxu0 %v2338
    %2537 = vmatpush1.msra.mxu0 %v2337
    %2538 = vmatprep.subr.mxu0 %v2342
    %2539 = vmatpush1.msra.mxu0 %v2341
    %2540 = vmatprep.subr.mxu0 0.0
    %2541 = vmatpush1.msra.mxu0 0.0
    %2542 = vmatprep.subr.mxu0 0.0
    %2543 = vmatpush1.msra.mxu0 0.0
    %2544 = vmatprep.subr.mxu0 0.0
    %2545 = vmatpush1.msra.mxu0 0.0
    %2546 = vmatprep.subr.mxu0 0.0
    %2547 = vmatpush1.msra.mxu0 0.0
    %2548 = vmatprep.subr.mxu0 0.0
    %2549 = vmatpush1.msra.mxu0 0.0
    %2550 = vmatprep.subr.mxu0 0.0
    %2551 = vmatpush1.msra.mxu0 0.0
    %2552 = vmatprep.subr.mxu0 0.0
    %2553 = vmatpush1.msra.mxu0 0.0
    %2554 = vmatprep.subr.mxu0 0.0
    %2555 = vmatpush1.msra.mxu0 0.0
    %2556 = vmatprep.subr.mxu0 0.0
    %2557 = vmatpush1.msra.mxu0 0.0
    %2558 = vmatprep.subr.mxu0 0.0
    %2559 = vmatpush1.msra.mxu0 0.0
    %2560 = vmatprep.subr.mxu0 0.0
    %2561 = vmatpush1.msra.mxu0 0.0
    %2562 = vmatprep.subr.mxu0 0.0
    %2563 = vmatpush1.msra.mxu0 0.0
    %2564 = vmatprep.subr.mxu0 0.0
    %2565 = vmatpush1.msra.mxu0 0.0
    %2566 = vmatprep.subr.mxu0 0.0
    %2567 = vmatpush1.msra.mxu0 0.0
    %2568 = vmatprep.subr.mxu0 0.0
    %2569 = vmatpush1.msra.mxu0 0.0
    %2570 = vmatprep.subr.mxu0 0.0
    %2571 = vmatpush1.msra.mxu0 0.0
    %2572 = vmatprep.mubr.f32.mxu0 0.0
    %2573 = vmatmul.mubr.f32.gmra.mrb[0].mxu0 %v2507
    %v2574 = vpop.f32.mrb[0].mxu0
    %v2575 = vadd.f32 0.0, %v2574
    %v2576 = vpop.f32.mrb[0].mxu0
    %v2577 = vadd.f32 0.0, %v2576
    %2578 = vdwg.mxu0
    %2579 = vmatprep.subr.mxu0 %v2284
    %2580 = vmatpush1.msra.mxu0 %v2283
    %2581 = vmatprep.subr.mxu0 %v2288
    %2582 = vmatpush1.msra.mxu0 %v2287
    %2583 = vmatprep.subr.mxu0 %v2292
    %2584 = vmatpush1.msra.mxu0 %v2291
    %2585 = vmatprep.subr.mxu0 %v2296
    %2586 = vmatpush1.msra.mxu0 %v2295
    %2587 = vmatprep.subr.mxu0 %v2300
    %2588 = vmatpush1.msra.mxu0 %v2299
    %2589 = vmatprep.subr.mxu0 %v2304
    %2590 = vmatpush1.msra.mxu0 %v2303
    %2591 = vmatprep.subr.mxu0 %v2308
    %2592 = vmatpush1.msra.mxu0 %v2307
    %2593 = vmatprep.subr.mxu0 %v2312
    %2594 = vmatpush1.msra.mxu0 %v2311
    %2595 = vmatprep.subr.mxu0 %v2316
    %2596 = vmatpush1.msra.mxu0 %v2315
    %2597 = vmatprep.subr.mxu0 %v2320
    %2598 = vmatpush1.msra.mxu0 %v2319
    %2599 = vmatprep.subr.mxu0 %v2324
    %2600 = vmatpush1.msra.mxu0 %v2323
    %2601 = vmatprep.subr.mxu0 %v2328
    %2602 = vmatpush1.msra.mxu0 %v2327
    %2603 = vmatprep.subr.mxu0 %v2332
    %2604 = vmatpush1.msra.mxu0 %v2331
    %2605 = vmatprep.subr.mxu0 %v2336
    %2606 = vmatpush1.msra.mxu0 %v2335
    %2607 = vmatprep.subr.mxu0 %v2340
    %2608 = vmatpush1.msra.mxu0 %v2339
    %2609 = vmatprep.subr.mxu0 %v2344
    %2610 = vmatpush1.msra.mxu0 %v2343
    %2611 = vmatprep.subr.mxu0 0.0
    %2612 = vmatpush1.msra.mxu0 0.0
    %2613 = vmatprep.subr.mxu0 0.0
    %2614 = vmatpush1.msra.mxu0 0.0
    %2615 = vmatprep.subr.mxu0 0.0
    %2616 = vmatpush1.msra.mxu0 0.0
    %2617 = vmatprep.subr.mxu0 0.0
    %2618 = vmatpush1.msra.mxu0 0.0
    %2619 = vmatprep.subr.mxu0 0.0
    %2620 = vmatpush1.msra.mxu0 0.0
    %2621 = vmatprep.subr.mxu0 0.0
    %2622 = vmatpush1.msra.mxu0 0.0
    %2623 = vmatprep.subr.mxu0 0.0
    %2624 = vmatpush1.msra.mxu0 0.0
    %2625 = vmatprep.subr.mxu0 0.0
    %2626 = vmatpush1.msra.mxu0 0.0
    %2627 = vmatprep.subr.mxu0 0.0
    %2628 = vmatpush1.msra.mxu0 0.0
    %2629 = vmatprep.subr.mxu0 0.0
    %2630 = vmatpush1.msra.mxu0 0.0
    %2631 = vmatprep.subr.mxu0 0.0
    %2632 = vmatpush1.msra.mxu0 0.0
    %2633 = vmatprep.subr.mxu0 0.0
    %2634 = vmatpush1.msra.mxu0 0.0
    %2635 = vmatprep.subr.mxu0 0.0
    %2636 = vmatpush1.msra.mxu0 0.0
    %2637 = vmatprep.subr.mxu0 0.0
    %2638 = vmatpush1.msra.mxu0 0.0
    %2639 = vmatprep.subr.mxu0 0.0
    %2640 = vmatpush1.msra.mxu0 0.0
    %2641 = vmatprep.subr.mxu0 0.0
    %2642 = vmatpush1.msra.mxu0 0.0
    %2643 = vmatprep.mubr.f32.mxu0 0.0
    %2644 = vmatmul.mubr.f32.gmra.mrb[0].mxu0 %v2507
    %v2645 = vpop.f32.mrb[0].mxu0
    %v2646 = vadd.f32 0.0, %v2645
    %v2647 = vpop.f32.mrb[0].mxu0
    %v2648 = vadd.f32 0.0, %v2647
    %2649 = vdwg.mxu0
    %v2650 = vadd.f32 %v2253, %v2575
    %v2651 = vadd.f32 %v2254, %v2577
    %v2652 = vadd.f32 %v2255, %v2646
    %v2653 = vadd.f32 %v2256, %v2648
    %v2654 = vtanh.pop %v2650
    %v2655 = vtanh.pop %v2651
    %v2656 = vtanh.pop %v2652
    %v2657 = vtanh.pop %v2653
    %v2658 = vmul.f32 %v214, %v2654
    %v2659 = vmul.f32 %v215, %v2655
    %v2660 = vmul.f32 %v216, %v2656
    %v2661 = vmul.f32 %v217, %v2657
    %v2662 = vadd.f32 %v218, %v2658
    %v2663 = vadd.f32 %v219, %v2659
    %v2664 = vadd.f32 %v220, %v2660
    %v2665 = vadd.f32 %v221, %v2661
    %v2666 = vmul.f32 %v2663, %v2505
    %v2667 = vmul.f32 %v2662, %v2664
    %v2668 = vadd.f32 %v2666, %v2667
    %v2669 = vtanh.pop %v2668
    %v2670 = vmul.f32 %v2665, %v2669
    %2671 = vmatprep.subr.mxu0 %v2282
    %2672 = vmatpush1.msra.mxu0 %v2281
    %2673 = vmatprep.subr.mxu0 %v2286
    %2674 = vmatpush1.msra.mxu0 %v2285
    %2675 = vmatprep.subr.mxu0 %v2290
    %2676 = vmatpush1.msra.mxu0 %v2289
    %2677 = vmatprep.subr.mxu0 %v2294
    %2678 = vmatpush1.msra.mxu0 %v2293
    %2679 = vmatprep.subr.mxu0 %v2298
    %2680 = vmatpush1.msra.mxu0 %v2297
    %2681 = vmatprep.subr.mxu0 %v2302
    %2682 = vmatpush1.msra.mxu0 %v2301
    %2683 = vmatprep.subr.mxu0 %v2306
    %2684 = vmatpush1.msra.mxu0 %v2305
    %2685 = vmatprep.subr.mxu0 %v2310
    %2686 = vmatpush1.msra.mxu0 %v2309
    %2687 = vmatprep.subr.mxu0 %v2314
    %2688 = vmatpush1.msra.mxu0 %v2313
    %2689 = vmatprep.subr.mxu0 %v2318
    %2690 = vmatpush1.msra.mxu0 %v2317
    %2691 = vmatprep.subr.mxu0 %v2322
    %2692 = vmatpush1.msra.mxu0 %v2321
    %2693 = vmatprep.subr.mxu0 %v2326
    %2694 = vmatpush1.msra.mxu0 %v2325
    %2695 = vmatprep.subr.mxu0 %v2330
    %2696 = vmatpush1.msra.mxu0 %v2329
    %2697 = vmatprep.subr.mxu0 %v2334
    %2698 = vmatpush1.msra.mxu0 %v2333
    %2699 = vmatprep.subr.mxu0 %v2338
    %2700 = vmatpush1.msra.mxu0 %v2337
    %2701 = vmatprep.subr.mxu0 %v2342
    %2702 = vmatpush1.msra.mxu0 %v2341
    %2703 = vmatprep.subr.mxu0 0.0
    %2704 = vmatpush1.msra.mxu0 0.0
    %2705 = vmatprep.subr.mxu0 0.0
    %2706 = vmatpush1.msra.mxu0 0.0
    %2707 = vmatprep.subr.mxu0 0.0
    %2708 = vmatpush1.msra.mxu0 0.0
    %2709 = vmatprep.subr.mxu0 0.0
    %2710 = vmatpush1.msra.mxu0 0.0
    %2711 = vmatprep.subr.mxu0 0.0
    %2712 = vmatpush1.msra.mxu0 0.0
    %2713 = vmatprep.subr.mxu0 0.0
    %2714 = vmatpush1.msra.mxu0 0.0
    %2715 = vmatprep.subr.mxu0 0.0
    %2716 = vmatpush1.msra.mxu0 0.0
    %2717 = vmatprep.subr.mxu0 0.0
    %2718 = vmatpush1.msra.mxu0 0.0
    %2719 = vmatprep.subr.mxu0 0.0
    %2720 = vmatpush1.msra.mxu0 0.0
    %2721 = vmatprep.subr.mxu0 0.0
    %2722 = vmatpush1.msra.mxu0 0.0
    %2723 = vmatprep.subr.mxu0 0.0
    %2724 = vmatpush1.msra.mxu0 0.0
    %2725 = vmatprep.subr.mxu0 0.0
    %2726 = vmatpush1.msra.mxu0 0.0
    %2727 = vmatprep.subr.mxu0 0.0
    %2728 = vmatpush1.msra.mxu0 0.0
    %2729 = vmatprep.subr.mxu0 0.0
    %2730 = vmatpush1.msra.mxu0 0.0
    %2731 = vmatprep.subr.mxu0 0.0
    %2732 = vmatpush1.msra.mxu0 0.0
    %2733 = vmatprep.subr.mxu0 0.0
    %2734 = vmatpush1.msra.mxu0 0.0
    %2735 = vmatprep.mubr.f32.mxu0 0.0
    %2736 = vmatmul.mubr.f32.gmra.mrb[0].mxu0 %v2670
    %v2737 = vpop.f32.mrb[0].mxu0
    %v2738 = vadd.f32 0.0, %v2737
    %v2739 = vpop.f32.mrb[0].mxu0
    %v2740 = vadd.f32 0.0, %v2739
    %2741 = vdwg.mxu0
    %2742 = vmatprep.subr.mxu0 %v2284
    %2743 = vmatpush1.msra.mxu0 %v2283
    %2744 = vmatprep.subr.mxu0 %v2288
    %2745 = vmatpush1.msra.mxu0 %v2287
    %2746 = vmatprep.subr.mxu0 %v2292
    %2747 = vmatpush1.msra.mxu0 %v2291
    %2748 = vmatprep.subr.mxu0 %v2296
    %2749 = vmatpush1.msra.mxu0 %v2295
    %2750 = vmatprep.subr.mxu0 %v2300
    %2751 = vmatpush1.msra.mxu0 %v2299
    %2752 = vmatprep.subr.mxu0 %v2304
    %2753 = vmatpush1.msra.mxu0 %v2303
    %2754 = vmatprep.subr.mxu0 %v2308
    %2755 = vmatpush1.msra.mxu0 %v2307
    %2756 = vmatprep.subr.mxu0 %v2312
    %2757 = vmatpush1.msra.mxu0 %v2311
    %2758 = vmatprep.subr.mxu0 %v2316
    %2759 = vmatpush1.msra.mxu0 %v2315
    %2760 = vmatprep.subr.mxu0 %v2320
    %2761 = vmatpush1.msra.mxu0 %v2319
    %2762 = vmatprep.subr.mxu0 %v2324
    %2763 = vmatpush1.msra.mxu0 %v2323
    %2764 = vmatprep.subr.mxu0 %v2328
    %2765 = vmatpush1.msra.mxu0 %v2327
    %2766 = vmatprep.subr.mxu0 %v2332
    %2767 = vmatpush1.msra.mxu0 %v2331
    %2768 = vmatprep.subr.mxu0 %v2336
    %2769 = vmatpush1.msra.mxu0 %v2335
    %2770 = vmatprep.subr.mxu0 %v2340
    %2771 = vmatpush1.msra.mxu0 %v2339
    %2772 = vmatprep.subr.mxu0 %v2344
    %2773 = vmatpush1.msra.mxu0 %v2343
    %2774 = vmatprep.subr.mxu0 0.0
    %2775 = vmatpush1.msra.mxu0 0.0
    %2776 = vmatprep.subr.mxu0 0.0
    %2777 = vmatpush1.msra.mxu0 0.0
    %2778 = vmatprep.subr.mxu0 0.0
    %2779 = vmatpush1.msra.mxu0 0.0
    %2780 = vmatprep.subr.mxu0 0.0
    %2781 = vmatpush1.msra.mxu0 0.0
    %2782 = vmatprep.subr.mxu0 0.0
    %2783 = vmatpush1.msra.mxu0 0.0
    %2784 = vmatprep.subr.mxu0 0.0
    %2785 = vmatpush1.msra.mxu0 0.0
    %2786 = vmatprep.subr.mxu0 0.0
    %2787 = vmatpush1.msra.mxu0 0.0
    %2788 = vmatprep.subr.mxu0 0.0
    %2789 = vmatpush1.msra.mxu0 0.0
    %2790 = vmatprep.subr.mxu0 0.0
    %2791 = vmatpush1.msra.mxu0 0.0
    %2792 = vmatprep.subr.mxu0 0.0
    %2793 = vmatpush1.msra.mxu0 0.0
    %2794 = vmatprep.subr.mxu0 0.0
    %2795 = vmatpush1.msra.mxu0 0.0
    %2796 = vmatprep.subr.mxu0 0.0
    %2797 = vmatpush1.msra.mxu0 0.0
    %2798 = vmatprep.subr.mxu0 0.0
    %2799 = vmatpush1.msra.mxu0 0.0
    %2800 = vmatprep.subr.mxu0 0.0
    %2801 = vmatpush1.msra.mxu0 0.0
    %2802 = vmatprep.subr.mxu0 0.0
    %2803 = vmatpush1.msra.mxu0 0.0
    %2804 = vmatprep.subr.mxu0 0.0
    %2805 = vmatpush1.msra.mxu0 0.0
    %2806 = vmatprep.mubr.f32.mxu0 0.0
    %2807 = vmatmul.mubr.f32.gmra.mrb[0].mxu0 %v2670
    %v2808 = vpop.f32.mrb[0].mxu0
    %v2809 = vadd.f32 0.0, %v2808
    %v2810 = vpop.f32.mrb[0].mxu0
    %v2811 = vadd.f32 0.0, %v2810
    %2812 = vdwg.mxu0
    %v2813 = vadd.f32 %v2257, %v2738
    %v2814 = vadd.f32 %v2258, %v2740
    %v2815 = vadd.f32 %v2259, %v2809
    %v2816 = vadd.f32 %v2260, %v2811
    %v2817 = vtanh.pop %v2813
    %v2818 = vtanh.pop %v2814
    %v2819 = vtanh.pop %v2815
    %v2820 = vtanh.pop %v2816
    %v2821 = vmul.f32 %v214, %v2817
    %v2822 = vmul.f32 %v215, %v2818
    %v2823 = vmul.f32 %v216, %v2819
    %v2824 = vmul.f32 %v217, %v2820
    %v2825 = vadd.f32 %v218, %v2821
    %v2826 = vadd.f32 %v219, %v2822
    %v2827 = vadd.f32 %v220, %v2823
    %v2828 = vadd.f32 %v221, %v2824
    %v2829 = vmul.f32 %v2826, %v2668
    %v2830 = vmul.f32 %v2825, %v2827
    %v2831 = vadd.f32 %v2829, %v2830
    %v2832 = vtanh.pop %v2831
    %v2833 = vmul.f32 %v2828, %v2832
    %2834 = vmatprep.subr.mxu0 %v2282
    %2835 = vmatpush1.msra.mxu0 %v2281
    %2836 = vmatprep.subr.mxu0 %v2286
    %2837 = vmatpush1.msra.mxu0 %v2285
    %2838 = vmatprep.subr.mxu0 %v2290
    %2839 = vmatpush1.msra.mxu0 %v2289
    %2840 = vmatprep.subr.mxu0 %v2294
    %2841 = vmatpush1.msra.mxu0 %v2293
    %2842 = vmatprep.subr.mxu0 %v2298
    %2843 = vmatpush1.msra.mxu0 %v2297
    %2844 = vmatprep.subr.mxu0 %v2302
    %2845 = vmatpush1.msra.mxu0 %v2301
    %2846 = vmatprep.subr.mxu0 %v2306
    %2847 = vmatpush1.msra.mxu0 %v2305
    %2848 = vmatprep.subr.mxu0 %v2310
    %2849 = vmatpush1.msra.mxu0 %v2309
    %2850 = vmatprep.subr.mxu0 %v2314
    %2851 = vmatpush1.msra.mxu0 %v2313
    %2852 = vmatprep.subr.mxu0 %v2318
    %2853 = vmatpush1.msra.mxu0 %v2317
    %2854 = vmatprep.subr.mxu0 %v2322
    %2855 = vmatpush1.msra.mxu0 %v2321
    %2856 = vmatprep.subr.mxu0 %v2326
    %2857 = vmatpush1.msra.mxu0 %v2325
    %2858 = vmatprep.subr.mxu0 %v2330
    %2859 = vmatpush1.msra.mxu0 %v2329
    %2860 = vmatprep.subr.mxu0 %v2334
    %2861 = vmatpush1.msra.mxu0 %v2333
    %2862 = vmatprep.subr.mxu0 %v2338
    %2863 = vmatpush1.msra.mxu0 %v2337
    %2864 = vmatprep.subr.mxu0 %v2342
    %2865 = vmatpush1.msra.mxu0 %v2341
    %2866 = vmatprep.subr.mxu0 0.0
    %2867 = vmatpush1.msra.mxu0 0.0
    %2868 = vmatprep.subr.mxu0 0.0
    %2869 = vmatpush1.msra.mxu0 0.0
    %2870 = vmatprep.subr.mxu0 0.0
    %2871 = vmatpush1.msra.mxu0 0.0
    %2872 = vmatprep.subr.mxu0 0.0
    %2873 = vmatpush1.msra.mxu0 0.0
    %2874 = vmatprep.subr.mxu0 0.0
    %2875 = vmatpush1.msra.mxu0 0.0
    %2876 = vmatprep.subr.mxu0 0.0
    %2877 = vmatpush1.msra.mxu0 0.0
    %2878 = vmatprep.subr.mxu0 0.0
    %2879 = vmatpush1.msra.mxu0 0.0
    %2880 = vmatprep.subr.mxu0 0.0
    %2881 = vmatpush1.msra.mxu0 0.0
    %2882 = vmatprep.subr.mxu0 0.0
    %2883 = vmatpush1.msra.mxu0 0.0
    %2884 = vmatprep.subr.mxu0 0.0
    %2885 = vmatpush1.msra.mxu0 0.0
    %2886 = vmatprep.subr.mxu0 0.0
    %2887 = vmatpush1.msra.mxu0 0.0
    %2888 = vmatprep.subr.mxu0 0.0
    %2889 = vmatpush1.msra.mxu0 0.0
    %2890 = vmatprep.subr.mxu0 0.0
    %2891 = vmatpush1.msra.mxu0 0.0
    %2892 = vmatprep.subr.mxu0 0.0
    %2893 = vmatpush1.msra.mxu0 0.0
    %2894 = vmatprep.subr.mxu0 0.0
    %2895 = vmatpush1.msra.mxu0 0.0
    %2896 = vmatprep.subr.mxu0 0.0
    %2897 = vmatpush1.msra.mxu0 0.0
    %2898 = vmatprep.mubr.f32.mxu0 0.0
    %2899 = vmatmul.mubr.f32.gmra.mrb[0].mxu0 %v2833
    %v2900 = vpop.f32.mrb[0].mxu0
    %v2901 = vadd.f32 0.0, %v2900
    %v2902 = vpop.f32.mrb[0].mxu0
    %v2903 = vadd.f32 0.0, %v2902
    %2904 = vdwg.mxu0
    %2905 = vmatprep.subr.mxu0 %v2284
    %2906 = vmatpush1.msra.mxu0 %v2283
    %2907 = vmatprep.subr.mxu0 %v2288
    %2908 = vmatpush1.msra.mxu0 %v2287
    %2909 = vmatprep.subr.mxu0 %v2292
    %2910 = vmatpush1.msra.mxu0 %v2291
    %2911 = vmatprep.subr.mxu0 %v2296
    %2912 = vmatpush1.msra.mxu0 %v2295
    %2913 = vmatprep.subr.mxu0 %v2300
    %2914 = vmatpush1.msra.mxu0 %v2299
    %2915 = vmatprep.subr.mxu0 %v2304
    %2916 = vmatpush1.msra.mxu0 %v2303
    %2917 = vmatprep.subr.mxu0 %v2308
    %2918 = vmatpush1.msra.mxu0 %v2307
    %2919 = vmatprep.subr.mxu0 %v2312
    %2920 = vmatpush1.msra.mxu0 %v2311
    %2921 = vmatprep.subr.mxu0 %v2316
    %2922 = vmatpush1.msra.mxu0 %v2315
    %2923 = vmatprep.subr.mxu0 %v2320
    %2924 = vmatpush1.msra.mxu0 %v2319
    %2925 = vmatprep.subr.mxu0 %v2324
    %2926 = vmatpush1.msra.mxu0 %v2323
    %2927 = vmatprep.subr.mxu0 %v2328
    %2928 = vmatpush1.msra.mxu0 %v2327
    %2929 = vmatprep.subr.mxu0 %v2332
    %2930 = vmatpush1.msra.mxu0 %v2331
    %2931 = vmatprep.subr.mxu0 %v2336
    %2932 = vmatpush1.msra.mxu0 %v2335
    %2933 = vmatprep.subr.mxu0 %v2340
    %2934 = vmatpush1.msra.mxu0 %v2339
    %2935 = vmatprep.subr.mxu0 %v2344
    %2936 = vmatpush1.msra.mxu0 %v2343
    %2937 = vmatprep.subr.mxu0 0.0
    %2938 = vmatpush1.msra.mxu0 0.0
    %2939 = vmatprep.subr.mxu0 0.0
    %2940 = vmatpush1.msra.mxu0 0.0
    %2941 = vmatprep.subr.mxu0 0.0
    %2942 = vmatpush1.msra.mxu0 0.0
    %2943 = vmatprep.subr.mxu0 0.0
    %2944 = vmatpush1.msra.mxu0 0.0
    %2945 = vmatprep.subr.mxu0 0.0
    %2946 = vmatpush1.msra.mxu0 0.0
    %2947 = vmatprep.subr.mxu0 0.0
    %2948 = vmatpush1.msra.mxu0 0.0
    %2949 = vmatprep.subr.mxu0 0.0
    %2950 = vmatpush1.msra.mxu0 0.0
    %2951 = vmatprep.subr.mxu0 0.0
    %2952 = vmatpush1.msra.mxu0 0.0
    %2953 = vmatprep.subr.mxu0 0.0
    %2954 = vmatpush1.msra.mxu0 0.0
    %2955 = vmatprep.subr.mxu0 0.0
    %2956 = vmatpush1.msra.mxu0 0.0
    %2957 = vmatprep.subr.mxu0 0.0
    %2958 = vmatpush1.msra.mxu0 0.0
    %2959 = vmatprep.subr.mxu0 0.0
    %2960 = vmatpush1.msra.mxu0 0.0
    %2961 = vmatprep.subr.mxu0 0.0
    %2962 = vmatpush1.msra.mxu0 0.0
    %2963 = vmatprep.subr.mxu0 0.0
    %2964 = vmatpush1.msra.mxu0 0.0
    %2965 = vmatprep.subr.mxu0 0.0
    %2966 = vmatpush1.msra.mxu0 0.0
    %2967 = vmatprep.subr.mxu0 0.0
    %2968 = vmatpush1.msra.mxu0 0.0
    %2969 = vmatprep.mubr.f32.mxu0 0.0
    %2970 = vmatmul.mubr.f32.gmra.mrb[0].mxu0 %v2833
    %v2971 = vpop.f32.mrb[0].mxu0
    %v2972 = vadd.f32 0.0, %v2971
    %v2973 = vpop.f32.mrb[0].mxu0
    %v2974 = vadd.f32 0.0, %v2973
    %2975 = vdwg.mxu0
    %v2976 = vadd.f32 %v2261, %v2901
    %v2977 = vadd.f32 %v2262, %v2903
    %v2978 = vadd.f32 %v2263, %v2972
    %v2979 = vadd.f32 %v2264, %v2974
    %v2980 = vtanh.pop %v2976
    %v2981 = vtanh.pop %v2977
    %v2982 = vtanh.pop %v2978
    %v2983 = vtanh.pop %v2979
    %v2984 = vmul.f32 %v214, %v2980
    %v2985 = vmul.f32 %v215, %v2981
    %v2986 = vmul.f32 %v216, %v2982
    %v2987 = vmul.f32 %v217, %v2983
    %v2988 = vadd.f32 %v218, %v2984
    %v2989 = vadd.f32 %v219, %v2985
    %v2990 = vadd.f32 %v220, %v2986
    %v2991 = vadd.f32 %v221, %v2987
    %v2992 = vmul.f32 %v2989, %v2831
    %v2993 = vmul.f32 %v2988, %v2990
    %v2994 = vadd.f32 %v2992, %v2993
    %v2995 = vtanh.pop %v2994
    %v2996 = vmul.f32 %v2991, %v2995
    %2997 = vmatprep.subr.mxu0 %v2282
    %2998 = vmatpush1.msra.mxu0 %v2281
    %2999 = vmatprep.subr.mxu0 %v2286
    %3000 = vmatpush1.msra.mxu0 %v2285
    %3001 = vmatprep.subr.mxu0 %v2290
    %3002 = vmatpush1.msra.mxu0 %v2289
    %3003 = vmatprep.subr.mxu0 %v2294
    %3004 = vmatpush1.msra.mxu0 %v2293
    %3005 = vmatprep.subr.mxu0 %v2298
    %3006 = vmatpush1.msra.mxu0 %v2297
    %3007 = vmatprep.subr.mxu0 %v2302
    %3008 = vmatpush1.msra.mxu0 %v2301
    %3009 = vmatprep.subr.mxu0 %v2306
    %3010 = vmatpush1.msra.mxu0 %v2305
    %3011 = vmatprep.subr.mxu0 %v2310
    %3012 = vmatpush1.msra.mxu0 %v2309
    %3013 = vmatprep.subr.mxu0 %v2314
    %3014 = vmatpush1.msra.mxu0 %v2313
    %3015 = vmatprep.subr.mxu0 %v2318
    %3016 = vmatpush1.msra.mxu0 %v2317
    %3017 = vmatprep.subr.mxu0 %v2322
    %3018 = vmatpush1.msra.mxu0 %v2321
    %3019 = vmatprep.subr.mxu0 %v2326
    %3020 = vmatpush1.msra.mxu0 %v2325
    %3021 = vmatprep.subr.mxu0 %v2330
    %3022 = vmatpush1.msra.mxu0 %v2329
    %3023 = vmatprep.subr.mxu0 %v2334
    %3024 = vmatpush1.msra.mxu0 %v2333
    %3025 = vmatprep.subr.mxu0 %v2338
    %3026 = vmatpush1.msra.mxu0 %v2337
    %3027 = vmatprep.subr.mxu0 %v2342
    %3028 = vmatpush1.msra.mxu0 %v2341
    %3029 = vmatprep.subr.mxu0 0.0
    %3030 = vmatpush1.msra.mxu0 0.0
    %3031 = vmatprep.subr.mxu0 0.0
    %3032 = vmatpush1.msra.mxu0 0.0
    %3033 = vmatprep.subr.mxu0 0.0
    %3034 = vmatpush1.msra.mxu0 0.0
    %3035 = vmatprep.subr.mxu0 0.0
    %3036 = vmatpush1.msra.mxu0 0.0
    %3037 = vmatprep.subr.mxu0 0.0
    %3038 = vmatpush1.msra.mxu0 0.0
    %3039 = vmatprep.subr.mxu0 0.0
    %3040 = vmatpush1.msra.mxu0 0.0
    %3041 = vmatprep.subr.mxu0 0.0
    %3042 = vmatpush1.msra.mxu0 0.0
    %3043 = vmatprep.subr.mxu0 0.0
    %3044 = vmatpush1.msra.mxu0 0.0
    %3045 = vmatprep.subr.mxu0 0.0
    %3046 = vmatpush1.msra.mxu0 0.0
    %3047 = vmatprep.subr.mxu0 0.0
    %3048 = vmatpush1.msra.mxu0 0.0
    %3049 = vmatprep.subr.mxu0 0.0
    %3050 = vmatpush1.msra.mxu0 0.0
    %3051 = vmatprep.subr.mxu0 0.0
    %3052 = vmatpush1.msra.mxu0 0.0
    %3053 = vmatprep.subr.mxu0 0.0
    %3054 = vmatpush1.msra.mxu0 0.0
    %3055 = vmatprep.subr.mxu0 0.0
    %3056 = vmatpush1.msra.mxu0 0.0
    %3057 = vmatprep.subr.mxu0 0.0
    %3058 = vmatpush1.msra.mxu0 0.0
    %3059 = vmatprep.subr.mxu0 0.0
    %3060 = vmatpush1.msra.mxu0 0.0
    %3061 = vmatprep.mubr.f32.mxu0 0.0
    %3062 = vmatmul.mubr.f32.gmra.mrb[0].mxu0 %v2996
    %v3063 = vpop.f32.mrb[0].mxu0
    %v3064 = vadd.f32 0.0, %v3063
    %v3065 = vpop.f32.mrb[0].mxu0
    %v3066 = vadd.f32 0.0, %v3065
    %3067 = vdwg.mxu0
    %3068 = vmatprep.subr.mxu0 %v2284
    %3069 = vmatpush1.msra.mxu0 %v2283
    %3070 = vmatprep.subr.mxu0 %v2288
    %3071 = vmatpush1.msra.mxu0 %v2287
    %3072 = vmatprep.subr.mxu0 %v2292
    %3073 = vmatpush1.msra.mxu0 %v2291
    %3074 = vmatprep.subr.mxu0 %v2296
    %3075 = vmatpush1.msra.mxu0 %v2295
    %3076 = vmatprep.subr.mxu0 %v2300
    %3077 = vmatpush1.msra.mxu0 %v2299
    %3078 = vmatprep.subr.mxu0 %v2304
    %3079 = vmatpush1.msra.mxu0 %v2303
    %3080 = vmatprep.subr.mxu0 %v2308
    %3081 = vmatpush1.msra.mxu0 %v2307
    %3082 = vmatprep.subr.mxu0 %v2312
    %3083 = vmatpush1.msra.mxu0 %v2311
    %3084 = vmatprep.subr.mxu0 %v2316
    %3085 = vmatpush1.msra.mxu0 %v2315
    %3086 = vmatprep.subr.mxu0 %v2320
    %3087 = vmatpush1.msra.mxu0 %v2319
    %3088 = vmatprep.subr.mxu0 %v2324
    %3089 = vmatpush1.msra.mxu0 %v2323
    %3090 = vmatprep.subr.mxu0 %v2328
    %3091 = vmatpush1.msra.mxu0 %v2327
    %3092 = vmatprep.subr.mxu0 %v2332
    %3093 = vmatpush1.msra.mxu0 %v2331
    %3094 = vmatprep.subr.mxu0 %v2336
    %3095 = vmatpush1.msra.mxu0 %v2335
    %3096 = vmatprep.subr.mxu0 %v2340
    %3097 = vmatpush1.msra.mxu0 %v2339
    %3098 = vmatprep.subr.mxu0 %v2344
    %3099 = vmatpush1.msra.mxu0 %v2343
    %3100 = vmatprep.subr.mxu0 0.0
    %3101 = vmatpush1.msra.mxu0 0.0
    %3102 = vmatprep.subr.mxu0 0.0
    %3103 = vmatpush1.msra.mxu0 0.0
    %3104 = vmatprep.subr.mxu0 0.0
    %3105 = vmatpush1.msra.mxu0 0.0
    %3106 = vmatprep.subr.mxu0 0.0
    %3107 = vmatpush1.msra.mxu0 0.0
    %3108 = vmatprep.subr.mxu0 0.0
    %3109 = vmatpush1.msra.mxu0 0.0
    %3110 = vmatprep.subr.mxu0 0.0
    %3111 = vmatpush1.msra.mxu0 0.0
    %3112 = vmatprep.subr.mxu0 0.0
    %3113 = vmatpush1.msra.mxu0 0.0
    %3114 = vmatprep.subr.mxu0 0.0
    %3115 = vmatpush1.msra.mxu0 0.0
    %3116 = vmatprep.subr.mxu0 0.0
    %3117 = vmatpush1.msra.mxu0 0.0
    %3118 = vmatprep.subr.mxu0 0.0
    %3119 = vmatpush1.msra.mxu0 0.0
    %3120 = vmatprep.subr.mxu0 0.0
    %3121 = vmatpush1.msra.mxu0 0.0
    %3122 = vmatprep.subr.mxu0 0.0
    %3123 = vmatpush1.msra.mxu0 0.0
    %3124 = vmatprep.subr.mxu0 0.0
    %3125 = vmatpush1.msra.mxu0 0.0
    %3126 = vmatprep.subr.mxu0 0.0
    %3127 = vmatpush1.msra.mxu0 0.0
    %3128 = vmatprep.subr.mxu0 0.0
    %3129 = vmatpush1.msra.mxu0 0.0
    %3130 = vmatprep.subr.mxu0 0.0
    %3131 = vmatpush1.msra.mxu0 0.0
    %3132 = vmatprep.mubr.f32.mxu0 0.0
    %3133 = vmatmul.mubr.f32.gmra.mrb[0].mxu0 %v2996
    %v3134 = vpop.f32.mrb[0].mxu0
    %v3135 = vadd.f32 0.0, %v3134
    %v3136 = vpop.f32.mrb[0].mxu0
    %v3137 = vadd.f32 0.0, %v3136
    %3138 = vdwg.mxu0
    %v3139 = vadd.f32 %v2265, %v3064
    %v3140 = vadd.f32 %v2266, %v3066
    %v3141 = vadd.f32 %v2267, %v3135
    %v3142 = vadd.f32 %v2268, %v3137
    %v3143 = vtanh.pop %v3139
    %v3144 = vtanh.pop %v3140
    %v3145 = vtanh.pop %v3141
    %v3146 = vtanh.pop %v3142
    %v3147 = vmul.f32 %v214, %v3143
    %v3148 = vmul.f32 %v215, %v3144
    %v3149 = vmul.f32 %v216, %v3145
    %v3150 = vmul.f32 %v217, %v3146
    %v3151 = vadd.f32 %v218, %v3147
    %v3152 = vadd.f32 %v219, %v3148
    %v3153 = vadd.f32 %v220, %v3149
    %v3154 = vadd.f32 %v221, %v3150
    %v3155 = vmul.f32 %v3152, %v2994
    %v3156 = vmul.f32 %v3151, %v3153
    %v3157 = vadd.f32 %v3155, %v3156
    %v3158 = vtanh.pop %v3157
    %v3159 = vmul.f32 %v3154, %v3158
    %3160 = vmatprep.subr.mxu0 %v2282
    %3161 = vmatpush1.msra.mxu0 %v2281
    %3162 = vmatprep.subr.mxu0 %v2286
    %3163 = vmatpush1.msra.mxu0 %v2285
    %3164 = vmatprep.subr.mxu0 %v2290
    %3165 = vmatpush1.msra.mxu0 %v2289
    %3166 = vmatprep.subr.mxu0 %v2294
    %3167 = vmatpush1.msra.mxu0 %v2293
    %3168 = vmatprep.subr.mxu0 %v2298
    %3169 = vmatpush1.msra.mxu0 %v2297
    %3170 = vmatprep.subr.mxu0 %v2302
    %3171 = vmatpush1.msra.mxu0 %v2301
    %3172 = vmatprep.subr.mxu0 %v2306
    %3173 = vmatpush1.msra.mxu0 %v2305
    %3174 = vmatprep.subr.mxu0 %v2310
    %3175 = vmatpush1.msra.mxu0 %v2309
    %3176 = vmatprep.subr.mxu0 %v2314
    %3177 = vmatpush1.msra.mxu0 %v2313
    %3178 = vmatprep.subr.mxu0 %v2318
    %3179 = vmatpush1.msra.mxu0 %v2317
    %3180 = vmatprep.subr.mxu0 %v2322
    %3181 = vmatpush1.msra.mxu0 %v2321
    %3182 = vmatprep.subr.mxu0 %v2326
    %3183 = vmatpush1.msra.mxu0 %v2325
    %3184 = vmatprep.subr.mxu0 %v2330
    %3185 = vmatpush1.msra.mxu0 %v2329
    %3186 = vmatprep.subr.mxu0 %v2334
    %3187 = vmatpush1.msra.mxu0 %v2333
    %3188 = vmatprep.subr.mxu0 %v2338
    %3189 = vmatpush1.msra.mxu0 %v2337
    %3190 = vmatprep.subr.mxu0 %v2342
    %3191 = vmatpush1.msra.mxu0 %v2341
    %3192 = vmatprep.subr.mxu0 0.0
    %3193 = vmatpush1.msra.mxu0 0.0
    %3194 = vmatprep.subr.mxu0 0.0
    %3195 = vmatpush1.msra.mxu0 0.0
    %3196 = vmatprep.subr.mxu0 0.0
    %3197 = vmatpush1.msra.mxu0 0.0
    %3198 = vmatprep.subr.mxu0 0.0
    %3199 = vmatpush1.msra.mxu0 0.0
    %3200 = vmatprep.subr.mxu0 0.0
    %3201 = vmatpush1.msra.mxu0 0.0
    %3202 = vmatprep.subr.mxu0 0.0
    %3203 = vmatpush1.msra.mxu0 0.0
    %3204 = vmatprep.subr.mxu0 0.0
    %3205 = vmatpush1.msra.mxu0 0.0
    %3206 = vmatprep.subr.mxu0 0.0
    %3207 = vmatpush1.msra.mxu0 0.0
    %3208 = vmatprep.subr.mxu0 0.0
    %3209 = vmatpush1.msra.mxu0 0.0
    %3210 = vmatprep.subr.mxu0 0.0
    %3211 = vmatpush1.msra.mxu0 0.0
    %3212 = vmatprep.subr.mxu0 0.0
    %3213 = vmatpush1.msra.mxu0 0.0
    %3214 = vmatprep.subr.mxu0 0.0
    %3215 = vmatpush1.msra.mxu0 0.0
    %3216 = vmatprep.subr.mxu0 0.0
    %3217 = vmatpush1.msra.mxu0 0.0
    %3218 = vmatprep.subr.mxu0 0.0
    %3219 = vmatpush1.msra.mxu0 0.0
    %3220 = vmatprep.subr.mxu0 0.0
    %3221 = vmatpush1.msra.mxu0 0.0
    %3222 = vmatprep.subr.mxu0 0.0
    %3223 = vmatpush1.msra.mxu0 0.0
    %3224 = vmatprep.mubr.f32.mxu0 0.0
    %3225 = vmatmul.mubr.f32.gmra.mrb[0].mxu0 %v3159
    %v3226 = vpop.f32.mrb[0].mxu0
    %v3227 = vadd.f32 0.0, %v3226
    %v3228 = vpop.f32.mrb[0].mxu0
    %v3229 = vadd.f32 0.0, %v3228
    %3230 = vdwg.mxu0
    %3231 = vmatprep.subr.mxu0 %v2284
    %3232 = vmatpush1.msra.mxu0 %v2283
    %3233 = vmatprep.subr.mxu0 %v2288
    %3234 = vmatpush1.msra.mxu0 %v2287
    %3235 = vmatprep.subr.mxu0 %v2292
    %3236 = vmatpush1.msra.mxu0 %v2291
    %3237 = vmatprep.subr.mxu0 %v2296
    %3238 = vmatpush1.msra.mxu0 %v2295
    %3239 = vmatprep.subr.mxu0 %v2300
    %3240 = vmatpush1.msra.mxu0 %v2299
    %3241 = vmatprep.subr.mxu0 %v2304
    %3242 = vmatpush1.msra.mxu0 %v2303
    %3243 = vmatprep.subr.mxu0 %v2308
    %3244 = vmatpush1.msra.mxu0 %v2307
    %3245 = vmatprep.subr.mxu0 %v2312
    %3246 = vmatpush1.msra.mxu0 %v2311
    %3247 = vmatprep.subr.mxu0 %v2316
    %3248 = vmatpush1.msra.mxu0 %v2315
    %3249 = vmatprep.subr.mxu0 %v2320
    %3250 = vmatpush1.msra.mxu0 %v2319
    %3251 = vmatprep.subr.mxu0 %v2324
    %3252 = vmatpush1.msra.mxu0 %v2323
    %3253 = vmatprep.subr.mxu0 %v2328
    %3254 = vmatpush1.msra.mxu0 %v2327
    %3255 = vmatprep.subr.mxu0 %v2332
    %3256 = vmatpush1.msra.mxu0 %v2331
    %3257 = vmatprep.subr.mxu0 %v2336
    %3258 = vmatpush1.msra.mxu0 %v2335
    %3259 = vmatprep.subr.mxu0 %v2340
    %3260 = vmatpush1.msra.mxu0 %v2339
    %3261 = vmatprep.subr.mxu0 %v2344
    %3262 = vmatpush1.msra.mxu0 %v2343
    %3263 = vmatprep.subr.mxu0 0.0
    %3264 = vmatpush1.msra.mxu0 0.0
    %3265 = vmatprep.subr.mxu0 0.0
    %3266 = vmatpush1.msra.mxu0 0.0
    %3267 = vmatprep.subr.mxu0 0.0
    %3268 = vmatpush1.msra.mxu0 0.0
    %3269 = vmatprep.subr.mxu0 0.0
    %3270 = vmatpush1.msra.mxu0 0.0
    %3271 = vmatprep.subr.mxu0 0.0
    %3272 = vmatpush1.msra.mxu0 0.0
    %3273 = vmatprep.subr.mxu0 0.0
    %3274 = vmatpush1.msra.mxu0 0.0
    %3275 = vmatprep.subr.mxu0 0.0
    %3276 = vmatpush1.msra.mxu0 0.0
    %3277 = vmatprep.subr.mxu0 0.0
    %3278 = vmatpush1.msra.mxu0 0.0
    %3279 = vmatprep.subr.mxu0 0.0
    %3280 = vmatpush1.msra.mxu0 0.0
    %3281 = vmatprep.subr.mxu0 0.0
    %3282 = vmatpush1.msra.mxu0 0.0
    %3283 = vmatprep.subr.mxu0 0.0
    %3284 = vmatpush1.msra.mxu0 0.0
    %3285 = vmatprep.subr.mxu0 0.0
    %3286 = vmatpush1.msra.mxu0 0.0
    %3287 = vmatprep.subr.mxu0 0.0
    %3288 = vmatpush1.msra.mxu0 0.0
    %3289 = vmatprep.subr.mxu0 0.0
    %3290 = vmatpush1.msra.mxu0 0.0
    %3291 = vmatprep.subr.mxu0 0.0
    %3292 = vmatpush1.msra.mxu0 0.0
    %3293 = vmatprep.subr.mxu0 0.0
    %3294 = vmatpush1.msra.mxu0 0.0
    %3295 = vmatprep.mubr.f32.mxu0 0.0
    %3296 = vmatmul.mubr.f32.gmra.mrb[0].mxu0 %v3159
    %v3297 = vpop.f32.mrb[0].mxu0
    %v3298 = vadd.f32 0.0, %v3297
    %v3299 = vpop.f32.mrb[0].mxu0
    %v3300 = vadd.f32 0.0, %v3299
    %3301 = vdwg.mxu0
    %v3302 = vadd.f32 %v2269, %v3227
    %v3303 = vadd.f32 %v2270, %v3229
    %v3304 = vadd.f32 %v2271, %v3298
    %v3305 = vadd.f32 %v2272, %v3300
    %v3306 = vtanh.pop %v3302
    %v3307 = vtanh.pop %v3303
    %v3308 = vtanh.pop %v3304
    %v3309 = vtanh.pop %v3305
    %v3310 = vmul.f32 %v214, %v3306
    %v3311 = vmul.f32 %v215, %v3307
    %v3312 = vmul.f32 %v216, %v3308
    %v3313 = vmul.f32 %v217, %v3309
    %v3314 = vadd.f32 %v218, %v3310
    %v3315 = vadd.f32 %v219, %v3311
    %v3316 = vadd.f32 %v220, %v3312
    %v3317 = vadd.f32 %v221, %v3313
    %v3318 = vmul.f32 %v3315, %v3157
    %v3319 = vmul.f32 %v3314, %v3316
    %v3320 = vadd.f32 %v3318, %v3319
    %v3321 = vtanh.pop %v3320
    %v3322 = vmul.f32 %v3317, %v3321
    %3323 = vmatprep.subr.mxu0 %v2282
    %3324 = vmatpush1.msra.mxu0 %v2281
    %3325 = vmatprep.subr.mxu0 %v2286
    %3326 = vmatpush1.msra.mxu0 %v2285
    %3327 = vmatprep.subr.mxu0 %v2290
    %3328 = vmatpush1.msra.mxu0 %v2289
    %3329 = vmatprep.subr.mxu0 %v2294
    %3330 = vmatpush1.msra.mxu0 %v2293
    %3331 = vmatprep.subr.mxu0 %v2298
    %3332 = vmatpush1.msra.mxu0 %v2297
    %3333 = vmatprep.subr.mxu0 %v2302
    %3334 = vmatpush1.msra.mxu0 %v2301
    %3335 = vmatprep.subr.mxu0 %v2306
    %3336 = vmatpush1.msra.mxu0 %v2305
    %3337 = vmatprep.subr.mxu0 %v2310
    %3338 = vmatpush1.msra.mxu0 %v2309
    %3339 = vmatprep.subr.mxu0 %v2314
    %3340 = vmatpush1.msra.mxu0 %v2313
    %3341 = vmatprep.subr.mxu0 %v2318
    %3342 = vmatpush1.msra.mxu0 %v2317
    %3343 = vmatprep.subr.mxu0 %v2322
    %3344 = vmatpush1.msra.mxu0 %v2321
    %3345 = vmatprep.subr.mxu0 %v2326
    %3346 = vmatpush1.msra.mxu0 %v2325
    %3347 = vmatprep.subr.mxu0 %v2330
    %3348 = vmatpush1.msra.mxu0 %v2329
    %3349 = vmatprep.subr.mxu0 %v2334
    %3350 = vmatpush1.msra.mxu0 %v2333
    %3351 = vmatprep.subr.mxu0 %v2338
    %3352 = vmatpush1.msra.mxu0 %v2337
    %3353 = vmatprep.subr.mxu0 %v2342
    %3354 = vmatpush1.msra.mxu0 %v2341
    %3355 = vmatprep.subr.mxu0 0.0
    %3356 = vmatpush1.msra.mxu0 0.0
    %3357 = vmatprep.subr.mxu0 0.0
    %3358 = vmatpush1.msra.mxu0 0.0
    %3359 = vmatprep.subr.mxu0 0.0
    %3360 = vmatpush1.msra.mxu0 0.0
    %3361 = vmatprep.subr.mxu0 0.0
    %3362 = vmatpush1.msra.mxu0 0.0
    %3363 = vmatprep.subr.mxu0 0.0
    %3364 = vmatpush1.msra.mxu0 0.0
    %3365 = vmatprep.subr.mxu0 0.0
    %3366 = vmatpush1.msra.mxu0 0.0
    %3367 = vmatprep.subr.mxu0 0.0
    %3368 = vmatpush1.msra.mxu0 0.0
    %3369 = vmatprep.subr.mxu0 0.0
    %3370 = vmatpush1.msra.mxu0 0.0
    %3371 = vmatprep.subr.mxu0 0.0
    %3372 = vmatpush1.msra.mxu0 0.0
    %3373 = vmatprep.subr.mxu0 0.0
    %3374 = vmatpush1.msra.mxu0 0.0
    %3375 = vmatprep.subr.mxu0 0.0
    %3376 = vmatpush1.msra.mxu0 0.0
    %3377 = vmatprep.subr.mxu0 0.0
    %3378 = vmatpush1.msra.mxu0 0.0
    %3379 = vmatprep.subr.mxu0 0.0
    %3380 = vmatpush1.msra.mxu0 0.0
    %3381 = vmatprep.subr.mxu0 0.0
    %3382 = vmatpush1.msra.mxu0 0.0
    %3383 = vmatprep.subr.mxu0 0.0
    %3384 = vmatpush1.msra.mxu0 0.0
    %3385 = vmatprep.subr.mxu0 0.0
    %3386 = vmatpush1.msra.mxu0 0.0
    %3387 = vmatprep.mubr.f32.mxu0 0.0
    %3388 = vmatmul.mubr.f32.gmra.mrb[0].mxu0 %v3322
    %v3389 = vpop.f32.mrb[0].mxu0
    %v3390 = vadd.f32 0.0, %v3389
    %v3391 = vpop.f32.mrb[0].mxu0
    %v3392 = vadd.f32 0.0, %v3391
    %3393 = vdwg.mxu0
    %3394 = vmatprep.subr.mxu0 %v2284
    %3395 = vmatpush1.msra.mxu0 %v2283
    %3396 = vmatprep.subr.mxu0 %v2288
    %3397 = vmatpush1.msra.mxu0 %v2287
    %3398 = vmatprep.subr.mxu0 %v2292
    %3399 = vmatpush1.msra.mxu0 %v2291
    %3400 = vmatprep.subr.mxu0 %v2296
    %3401 = vmatpush1.msra.mxu0 %v2295
    %3402 = vmatprep.subr.mxu0 %v2300
    %3403 = vmatpush1.msra.mxu0 %v2299
    %3404 = vmatprep.subr.mxu0 %v2304
    %3405 = vmatpush1.msra.mxu0 %v2303
    %3406 = vmatprep.subr.mxu0 %v2308
    %3407 = vmatpush1.msra.mxu0 %v2307
    %3408 = vmatprep.subr.mxu0 %v2312
    %3409 = vmatpush1.msra.mxu0 %v2311
    %3410 = vmatprep.subr.mxu0 %v2316
    %3411 = vmatpush1.msra.mxu0 %v2315
    %3412 = vmatprep.subr.mxu0 %v2320
    %3413 = vmatpush1.msra.mxu0 %v2319
    %3414 = vmatprep.subr.mxu0 %v2324
    %3415 = vmatpush1.msra.mxu0 %v2323
    %3416 = vmatprep.subr.mxu0 %v2328
    %3417 = vmatpush1.msra.mxu0 %v2327
    %3418 = vmatprep.subr.mxu0 %v2332
    %3419 = vmatpush1.msra.mxu0 %v2331
    %3420 = vmatprep.subr.mxu0 %v2336
    %3421 = vmatpush1.msra.mxu0 %v2335
    %3422 = vmatprep.subr.mxu0 %v2340
    %3423 = vmatpush1.msra.mxu0 %v2339
    %3424 = vmatprep.subr.mxu0 %v2344
    %3425 = vmatpush1.msra.mxu0 %v2343
    %3426 = vmatprep.subr.mxu0 0.0
    %3427 = vmatpush1.msra.mxu0 0.0
    %3428 = vmatprep.subr.mxu0 0.0
    %3429 = vmatpush1.msra.mxu0 0.0
    %3430 = vmatprep.subr.mxu0 0.0
    %3431 = vmatpush1.msra.mxu0 0.0
    %3432 = vmatprep.subr.mxu0 0.0
    %3433 = vmatpush1.msra.mxu0 0.0
    %3434 = vmatprep.subr.mxu0 0.0
    %3435 = vmatpush1.msra.mxu0 0.0
    %3436 = vmatprep.subr.mxu0 0.0
    %3437 = vmatpush1.msra.mxu0 0.0
    %3438 = vmatprep.subr.mxu0 0.0
    %3439 = vmatpush1.msra.mxu0 0.0
    %3440 = vmatprep.subr.mxu0 0.0
    %3441 = vmatpush1.msra.mxu0 0.0
    %3442 = vmatprep.subr.mxu0 0.0
    %3443 = vmatpush1.msra.mxu0 0.0
    %3444 = vmatprep.subr.mxu0 0.0
    %3445 = vmatpush1.msra.mxu0 0.0
    %3446 = vmatprep.subr.mxu0 0.0
    %3447 = vmatpush1.msra.mxu0 0.0
    %3448 = vmatprep.subr.mxu0 0.0
    %3449 = vmatpush1.msra.mxu0 0.0
    %3450 = vmatprep.subr.mxu0 0.0
    %3451 = vmatpush1.msra.mxu0 0.0
    %3452 = vmatprep.subr.mxu0 0.0
    %3453 = vmatpush1.msra.mxu0 0.0
    %3454 = vmatprep.subr.mxu0 0.0
    %3455 = vmatpush1.msra.mxu0 0.0
    %3456 = vmatprep.subr.mxu0 0.0
    %3457 = vmatpush1.msra.mxu0 0.0
    %3458 = vmatprep.mubr.f32.mxu0 0.0
    %3459 = vmatmul.mubr.f32.gmra.mrb[0].mxu0 %v3322
    %v3460 = vpop.f32.mrb[0].mxu0
    %v3461 = vadd.f32 0.0, %v3460
    %v3462 = vpop.f32.mrb[0].mxu0
    %v3463 = vadd.f32 0.0, %v3462
    %3464 = vdwg.mxu0
    %v3465 = vadd.f32 %v2273, %v3390
    %v3466 = vadd.f32 %v2274, %v3392
    %v3467 = vadd.f32 %v2275, %v3461
    %v3468 = vadd.f32 %v2276, %v3463
    %v3469 = vtanh.pop %v3465
    %v3470 = vtanh.pop %v3466
    %v3471 = vtanh.pop %v3467
    %v3472 = vtanh.pop %v3468
    %v3473 = vmul.f32 %v214, %v3469
    %v3474 = vmul.f32 %v215, %v3470
    %v3475 = vmul.f32 %v216, %v3471
    %v3476 = vmul.f32 %v217, %v3472
    %v3477 = vadd.f32 %v218, %v3473
    %v3478 = vadd.f32 %v219, %v3474
    %v3479 = vadd.f32 %v220, %v3475
    %v3480 = vadd.f32 %v221, %v3476
    %v3481 = vmul.f32 %v3478, %v3320
    %v3482 = vmul.f32 %v3477, %v3479
    %v3483 = vadd.f32 %v3481, %v3482
    %v3484 = vtanh.pop %v3483
    %v3485 = vmul.f32 %v3480, %v3484
    %3486 = vmatprep.subr.mxu0 %v2282
    %3487 = vmatpush1.msra.mxu0 %v2281
    %3488 = vmatprep.subr.mxu0 %v2286
    %3489 = vmatpush1.msra.mxu0 %v2285
    %3490 = vmatprep.subr.mxu0 %v2290
    %3491 = vmatpush1.msra.mxu0 %v2289
    %3492 = vmatprep.subr.mxu0 %v2294
    %3493 = vmatpush1.msra.mxu0 %v2293
    %3494 = vmatprep.subr.mxu0 %v2298
    %3495 = vmatpush1.msra.mxu0 %v2297
    %3496 = vmatprep.subr.mxu0 %v2302
    %3497 = vmatpush1.msra.mxu0 %v2301
    %3498 = vmatprep.subr.mxu0 %v2306
    %3499 = vmatpush1.msra.mxu0 %v2305
    %3500 = vmatprep.subr.mxu0 %v2310
    %3501 = vmatpush1.msra.mxu0 %v2309
    %3502 = vmatprep.subr.mxu0 %v2314
    %3503 = vmatpush1.msra.mxu0 %v2313
    %3504 = vmatprep.subr.mxu0 %v2318
    %3505 = vmatpush1.msra.mxu0 %v2317
    %3506 = vmatprep.subr.mxu0 %v2322
    %3507 = vmatpush1.msra.mxu0 %v2321
    %3508 = vmatprep.subr.mxu0 %v2326
    %3509 = vmatpush1.msra.mxu0 %v2325
    %3510 = vmatprep.subr.mxu0 %v2330
    %3511 = vmatpush1.msra.mxu0 %v2329
    %3512 = vmatprep.subr.mxu0 %v2334
    %3513 = vmatpush1.msra.mxu0 %v2333
    %3514 = vmatprep.subr.mxu0 %v2338
    %3515 = vmatpush1.msra.mxu0 %v2337
    %3516 = vmatprep.subr.mxu0 %v2342
    %3517 = vmatpush1.msra.mxu0 %v2341
    %3518 = vmatprep.subr.mxu0 0.0
    %3519 = vmatpush1.msra.mxu0 0.0
    %3520 = vmatprep.subr.mxu0 0.0
    %3521 = vmatpush1.msra.mxu0 0.0
    %3522 = vmatprep.subr.mxu0 0.0
    %3523 = vmatpush1.msra.mxu0 0.0
    %3524 = vmatprep.subr.mxu0 0.0
    %3525 = vmatpush1.msra.mxu0 0.0
    %3526 = vmatprep.subr.mxu0 0.0
    %3527 = vmatpush1.msra.mxu0 0.0
    %3528 = vmatprep.subr.mxu0 0.0
    %3529 = vmatpush1.msra.mxu0 0.0
    %3530 = vmatprep.subr.mxu0 0.0
    %3531 = vmatpush1.msra.mxu0 0.0
    %3532 = vmatprep.subr.mxu0 0.0
    %3533 = vmatpush1.msra.mxu0 0.0
    %3534 = vmatprep.subr.mxu0 0.0
    %3535 = vmatpush1.msra.mxu0 0.0
    %3536 = vmatprep.subr.mxu0 0.0
    %3537 = vmatpush1.msra.mxu0 0.0
    %3538 = vmatprep.subr.mxu0 0.0
    %3539 = vmatpush1.msra.mxu0 0.0
    %3540 = vmatprep.subr.mxu0 0.0
    %3541 = vmatpush1.msra.mxu0 0.0
    %3542 = vmatprep.subr.mxu0 0.0
    %3543 = vmatpush1.msra.mxu0 0.0
    %3544 = vmatprep.subr.mxu0 0.0
    %3545 = vmatpush1.msra.mxu0 0.0
    %3546 = vmatprep.subr.mxu0 0.0
    %3547 = vmatpush1.msra.mxu0 0.0
    %3548 = vmatprep.subr.mxu0 0.0
    %3549 = vmatpush1.msra.mxu0 0.0
    %3550 = vmatprep.mubr.f32.mxu0 0.0
    %3551 = vmatmul.mubr.f32.gmra.mrb[0].mxu0 %v3485
    %v3552 = vpop.f32.mrb[0].mxu0
    %v3553 = vadd.f32 0.0, %v3552
    %v3554 = vpop.f32.mrb[0].mxu0
    %v3555 = vadd.f32 0.0, %v3554
    %3556 = vdwg.mxu0
    %3557 = vmatprep.subr.mxu0 %v2284
    %3558 = vmatpush1.msra.mxu0 %v2283
    %3559 = vmatprep.subr.mxu0 %v2288
    %3560 = vmatpush1.msra.mxu0 %v2287
    %3561 = vmatprep.subr.mxu0 %v2292
    %3562 = vmatpush1.msra.mxu0 %v2291
    %3563 = vmatprep.subr.mxu0 %v2296
    %3564 = vmatpush1.msra.mxu0 %v2295
    %3565 = vmatprep.subr.mxu0 %v2300
    %3566 = vmatpush1.msra.mxu0 %v2299
    %3567 = vmatprep.subr.mxu0 %v2304
    %3568 = vmatpush1.msra.mxu0 %v2303
    %3569 = vmatprep.subr.mxu0 %v2308
    %3570 = vmatpush1.msra.mxu0 %v2307
    %3571 = vmatprep.subr.mxu0 %v2312
    %3572 = vmatpush1.msra.mxu0 %v2311
    %3573 = vmatprep.subr.mxu0 %v2316
    %3574 = vmatpush1.msra.mxu0 %v2315
    %3575 = vmatprep.subr.mxu0 %v2320
    %3576 = vmatpush1.msra.mxu0 %v2319
    %3577 = vmatprep.subr.mxu0 %v2324
    %3578 = vmatpush1.msra.mxu0 %v2323
    %3579 = vmatprep.subr.mxu0 %v2328
    %3580 = vmatpush1.msra.mxu0 %v2327
    %3581 = vmatprep.subr.mxu0 %v2332
    %3582 = vmatpush1.msra.mxu0 %v2331
    %3583 = vmatprep.subr.mxu0 %v2336
    %3584 = vmatpush1.msra.mxu0 %v2335
    %3585 = vmatprep.subr.mxu0 %v2340
    %3586 = vmatpush1.msra.mxu0 %v2339
    %3587 = vmatprep.subr.mxu0 %v2344
    %3588 = vmatpush1.msra.mxu0 %v2343
    %3589 = vmatprep.subr.mxu0 0.0
    %3590 = vmatpush1.msra.mxu0 0.0
    %3591 = vmatprep.subr.mxu0 0.0
    %3592 = vmatpush1.msra.mxu0 0.0
    %3593 = vmatprep.subr.mxu0 0.0
    %3594 = vmatpush1.msra.mxu0 0.0
    %3595 = vmatprep.subr.mxu0 0.0
    %3596 = vmatpush1.msra.mxu0 0.0
    %3597 = vmatprep.subr.mxu0 0.0
    %3598 = vmatpush1.msra.mxu0 0.0
    %3599 = vmatprep.subr.mxu0 0.0
    %3600 = vmatpush1.msra.mxu0 0.0
    %3601 = vmatprep.subr.mxu0 0.0
    %3602 = vmatpush1.msra.mxu0 0.0
    %3603 = vmatprep.subr.mxu0 0.0
    %3604 = vmatpush1.msra.mxu0 0.0
    %3605 = vmatprep.subr.mxu0 0.0
    %3606 = vmatpush1.msra.mxu0 0.0
    %3607 = vmatprep.subr.mxu0 0.0
    %3608 = vmatpush1.msra.mxu0 0.0
    %3609 = vmatprep.subr.mxu0 0.0
    %3610 = vmatpush1.msra.mxu0 0.0
    %3611 = vmatprep.subr.mxu0 0.0
    %3612 = vmatpush1.msra.mxu0 0.0
    %3613 = vmatprep.subr.mxu0 0.0
    %3614 = vmatpush1.msra.mxu0 0.0
    %3615 = vmatprep.subr.mxu0 0.0
    %3616 = vmatpush1.msra.mxu0 0.0
    %3617 = vmatprep.subr.mxu0 0.0
    %3618 = vmatpush1.msra.mxu0 0.0
    %3619 = vmatprep.subr.mxu0 0.0
    %3620 = vmatpush1.msra.mxu0 0.0
    %3621 = vmatprep.mubr.f32.mxu0 0.0
    %3622 = vmatmul.mubr.f32.gmra.mrb[0].mxu0 %v3485
    %v3623 = vpop.f32.mrb[0].mxu0
    %v3624 = vadd.f32 0.0, %v3623
    %v3625 = vpop.f32.mrb[0].mxu0
    %v3626 = vadd.f32 0.0, %v3625
    %3627 = vdwg.mxu0
    %v3628 = vadd.f32 %v2277, %v3553
    %v3629 = vadd.f32 %v2278, %v3555
    %v3630 = vadd.f32 %v2279, %v3624
    %v3631 = vadd.f32 %v2280, %v3626
    %v3632 = vtanh.pop %v3628
    %v3633 = vtanh.pop %v3629
    %v3634 = vtanh.pop %v3630
    %v3635 = vtanh.pop %v3631
    %v3636 = vmul.f32 %v214, %v3632
    %v3637 = vmul.f32 %v215, %v3633
    %v3638 = vmul.f32 %v216, %v3634
    %v3639 = vmul.f32 %v217, %v3635
    %v3640 = vadd.f32 %v218, %v3636
    %v3641 = vadd.f32 %v219, %v3637
    %v3642 = vadd.f32 %v220, %v3638
    %v3643 = vadd.f32 %v221, %v3639
    %v3644 = vmul.f32 %v3641, %v3483
    %v3645 = vmul.f32 %v3640, %v3642
    %v3646 = vadd.f32 %v3644, %v3645
    %v3647 = vtanh.pop %v3646
    %v3648 = vmul.f32 %v3643, %v3647
    %v3649 = vld [vmem:[#allocation15] sm:$0xff]
    %v3650 = vld [vmem:[#allocation15 + $0x8] sm:$0xff]
    %v3651 = vld [vmem:[#allocation15 + $0x10] sm:$0xff]
    %v3652 = vld [vmem:[#allocation15 + $0x18] sm:$0xff]
    %v3653 = vld [vmem:[#allocation15 + $0x20] sm:$0xff]
    %v3654 = vld [vmem:[#allocation15 + $0x28] sm:$0xff]
    %v3655 = vld [vmem:[#allocation15 + $0x30] sm:$0xff]
    %v3656 = vld [vmem:[#allocation15 + $0x38] sm:$0xff]
    %v3657 = vld [vmem:[#allocation15 + $0x40] sm:$0xff]
    %v3658 = vld [vmem:[#allocation15 + $0x48] sm:$0xff]
    %v3659 = vld [vmem:[#allocation15 + $0x50] sm:$0xff]
    %v3660 = vld [vmem:[#allocation15 + $0x58] sm:$0xff]
    %v3661 = vld [vmem:[#allocation15 + $0x60] sm:$0xff]
    %v3662 = vld [vmem:[#allocation15 + $0x68] sm:$0xff]
    %v3663 = vld [vmem:[#allocation15 + $0x70] sm:$0xff]
    %v3664 = vld [vmem:[#allocation15 + $0x78] sm:$0xff]
    %v3665 = vld [vmem:[#allocation17] sm:$0x1]
    %v3667 = vlaneseq
    %v3668 = vshrl.u32 %v3667, 7
    %v3669 = vsub.s32 0, %v3668
    %v3670 = vrot.slane %v3665, %v3669
    %3672 = vmatprep.subr.mxu0 0.0
    %3673 = vmatpush1.msra.mxu0 %v3649
    %3674 = vmatprep.subr.mxu0 0.0
    %3675 = vmatpush1.msra.mxu0 %v3650
    %3676 = vmatprep.subr.mxu0 0.0
    %3677 = vmatpush1.msra.mxu0 %v3651
    %3678 = vmatprep.subr.mxu0 0.0
    %3679 = vmatpush1.msra.mxu0 %v3652
    %3680 = vmatprep.subr.mxu0 0.0
    %3681 = vmatpush1.msra.mxu0 %v3653
    %3682 = vmatprep.subr.mxu0 0.0
    %3683 = vmatpush1.msra.mxu0 %v3654
    %3684 = vmatprep.subr.mxu0 0.0
    %3685 = vmatpush1.msra.mxu0 %v3655
    %3686 = vmatprep.subr.mxu0 0.0
    %3687 = vmatpush1.msra.mxu0 %v3656
    %3688 = vmatprep.subr.mxu0 0.0
    %3689 = vmatpush1.msra.mxu0 %v3657
    %3690 = vmatprep.subr.mxu0 0.0
    %3691 = vmatpush1.msra.mxu0 %v3658
    %3692 = vmatprep.subr.mxu0 0.0
    %3693 = vmatpush1.msra.mxu0 %v3659
    %3694 = vmatprep.subr.mxu0 0.0
    %3695 = vmatpush1.msra.mxu0 %v3660
    %3696 = vmatprep.subr.mxu0 0.0
    %3697 = vmatpush1.msra.mxu0 %v3661
    %3698 = vmatprep.subr.mxu0 0.0
    %3699 = vmatpush1.msra.mxu0 %v3662
    %3700 = vmatprep.subr.mxu0 0.0
    %3701 = vmatpush1.msra.mxu0 %v3663
    %3702 = vmatprep.subr.mxu0 0.0
    %3703 = vmatpush1.msra.mxu0 %v3664
    %3704 = vmatprep.subr.mxu0 0.0
    %3705 = vmatpush1.msra.mxu0 0.0
    %3706 = vmatprep.subr.mxu0 0.0
    %3707 = vmatpush1.msra.mxu0 0.0
    %3708 = vmatprep.subr.mxu0 0.0
    %3709 = vmatpush1.msra.mxu0 0.0
    %3710 = vmatprep.subr.mxu0 0.0
    %3711 = vmatpush1.msra.mxu0 0.0
    %3712 = vmatprep.subr.mxu0 0.0
    %3713 = vmatpush1.msra.mxu0 0.0
    %3714 = vmatprep.subr.mxu0 0.0
    %3715 = vmatpush1.msra.mxu0 0.0
    %3716 = vmatprep.subr.mxu0 0.0
    %3717 = vmatpush1.msra.mxu0 0.0
    %3718 = vmatprep.subr.mxu0 0.0
    %3719 = vmatpush1.msra.mxu0 0.0
    %3720 = vmatprep.subr.mxu0 0.0
    %3721 = vmatpush1.msra.mxu0 0.0
    %3722 = vmatprep.subr.mxu0 0.0
    %3723 = vmatpush1.msra.mxu0 0.0
    %3724 = vmatprep.subr.mxu0 0.0
    %3725 = vmatpush1.msra.mxu0 0.0
    %3726 = vmatprep.subr.mxu0 0.0
    %3727 = vmatpush1.msra.mxu0 0.0
    %3728 = vmatprep.subr.mxu0 0.0
    %3729 = vmatpush1.msra.mxu0 0.0
    %3730 = vmatprep.subr.mxu0 0.0
    %3731 = vmatpush1.msra.mxu0 0.0
    %3732 = vmatprep.subr.mxu0 0.0
    %3733 = vmatpush1.msra.mxu0 0.0
    %3734 = vmatprep.subr.mxu0 0.0
    %3735 = vmatpush1.msra.mxu0 0.0
    %3736 = vmatprep.mubr.f32.mxu0 0.0
    %3737 = vmatmul.mubr.f32.gmra.mrb[0].mxu0 %v3648
    %v3738 = vpop.f32.mrb[0].mxu0
    %v3739 = vadd.f32 %v3670, %v3738
    %v3740 = vpop.f32.mrb[0].mxu0
    %3741 = vdwg.mxu0
    %3742 = vst [vmem:[#allocation18] sm:$0xff] %v3739
    // Predicated region
    $region74: #{tpu_custom_call.1} parent=1 // pred_check
      _
    $region75: #{tpu_custom_call.1} parent=1 // pred_check_branch
      %3744 = sbr.rel (0) target = $region77
    $region76: #{tpu_custom_call.1} parent=1 // pred_region
      %s3746 = ssub.s32 128, 128
      %3747 = vsyncadd [#allocation5], %s3746
      %s3749 = sshll.u32 [#allocation18], 4
      %s3750 = int_to_ptr.vmem [resolvable:$true] %s3749
      %3752 = dma.vmem_to_hbm [thread:$0]  %s3750, 128, %s9, [#allocation5]
    $region77: #{tpu_custom_call.1} parent=1 // pred_fallthru
      _
    // Predicated region
    $region78: #{tpu_custom_call.1} parent=1 // pred_check
      _
    $region79: #{tpu_custom_call.1} parent=1 // pred_check_branch
      %3754 = sbr.rel (0) target = $region81
    $region80: #{tpu_custom_call.1} parent=1 // pred_region
      %3755 = dma.done [#allocation5], 128
    $region81: #{tpu_custom_call.1} parent=1 // pred_fallthru
      _
    %3756 = vsyncpa [#allocation4], 1
    %3757 = vsyncpa [#allocation7], 1
    %3758 = vsyncpa [#allocation10], 1
    %3759 = vsyncpa [#allocation13], 1
    %3760 = vsyncpa [#allocation16], 1
    %3761 = vsyncpa [#allocation5], 1

</llo_original>
